<compile_context>
chip_gen: v7x
topology: tpu7x:2x2x1
jax: 0.10.0
libtpu: 0.0.40
codegen_flags: <defaults>
</compile_context>

<pallas_src>
import functools

import jax
import jax.numpy as jnp
from jax.experimental import pallas as pl
from jax.experimental.pallas import tpu as pltpu

KH = 6            # conv kernel height
SH = 3            # conv stride along H
W = 3             # sensor-axis width (preserved by the (6,1)/(3,1)/(1,0) convs)
C1, C2, C3 = 16, 32, 64
_BN_EPS = 1e-5


def _conv_h_out(h):
    # Conv2d(kernel=(6,1), stride=(3,1), padding=(1,0)) output height.
    return (h + 2 - KH) // SH + 1


def _round_up(x, m):
    return ((x + m - 1) // m) * m


# ----------------------------- fused Pallas kernel ---------------------------

def _fused_kernel(x_ref, w1_ref, b1_ref, w2_ref, b2_ref, w3_ref, b3_ref,
                  wfc_ref, bfc_ref, flat_ref, out_ref, y1_scr, y2_scr,
                  *, n_h1, n_h2, n_h3):
    """Whole network for one batch tile (tb rows on the MXU M axis).

    x_ref   : (tb, (H+2)*W*c_in)   lane-dense padded input, (h, w, c) order.
    w1_ref  : (KH*W*c_in, W*C1)    layer-1 weight (BN folded, block-diag over w).
    w2_ref  : (KH*W*C1, W*C2)      layer-2 taps concatenated along K.
    w3_ref  : (KH*W*C2, W*C3)      layer-3 taps concatenated along K.
    wfc_ref : (n_h3*W*C3, ncls_pad) fc weight, rows in (h, w, c) order, cols padded.
    b*_ref  : (1, N) f32           folded biases (BN shift + conv bias).
    flat_ref: (tb, n_h3*W*C3)      layer-3 activation, features ordered (h, w, c).
    out_ref : (tb, ncls_pad)       logits (lane-padded).
    y1_scr  : (tb, blocks1*W*C1)   f32 scratch; block b holds layer-1 row b-1.
    y2_scr  : (tb, blocks2*W*C2)   f32 scratch; block b holds layer-2 row b-1.
    """
    f32 = jnp.float32
    cdt = w1_ref.dtype                   # matmul compute dtype (bf16 by default)
    tb = flat_ref.shape[0]
    WC1, WC2, WC3 = W * C1, W * C2, W * C3
    k1 = w1_ref.shape[0]                 # KH*W*c_in
    step1 = (k1 // KH) * SH              # lane stride between layer-1 patches
    blocks1 = y1_scr.shape[1] // WC1
    blocks2 = y2_scr.shape[1] // WC2

    w1 = w1_ref[...]
    w2 = w2_ref[...]
    w3 = w3_ref[...]
    wfc = wfc_ref[...]
    # Hoisted bias broadcasts (JAX does not CSE broadcast_in_dim).
    b1 = jnp.broadcast_to(b1_ref[...], (tb, WC1))
    b2 = jnp.broadcast_to(b2_ref[...], (tb, WC2))
    b3 = jnp.broadcast_to(b3_ref[...], (tb, WC3))
    bfc = jnp.broadcast_to(bfc_ref[...], (tb, out_ref.shape[1]))

    # Zero only the conv-padding blocks of the row scratches (row -1 and any
    # unused trailing rows); every other block is overwritten below.
    y1_scr[:, :WC1] = jnp.zeros((tb, WC1), f32)
    if n_h1 + 1 < blocks1:
        y1_scr[:, (n_h1 + 1) * WC1:] = jnp.zeros(
            (tb, (blocks1 - n_h1 - 1) * WC1), f32)
    y2_scr[:, :WC2] = jnp.zeros((tb, WC2), f32)
    if n_h2 + 1 < blocks2:
        y2_scr[:, (n_h2 + 1) * WC2:] = jnp.zeros(
            (tb, (blocks2 - n_h2 - 1) * WC2), f32)

    # ---- layer 1: per output row, one contiguous lane slice of the raw input
    # and one (tb, 18) @ (18, 48) matmul (same RHS stays resident for all rows).
    for h in range(n_h1):
        patch = x_ref[:, pl.ds(h * step1, k1)].astype(cdt)
        acc = jnp.dot(patch, w1, preferred_element_type=f32)
        y1_scr[:, pl.ds((h + 1) * WC1, WC1)] = jnp.maximum(acc + b1, 0.0)

    # ---- layer 2: taps concatenated along K -> one (tb, 288) @ (288, 96)
    # matmul per output row over a contiguous slice of the y1 scratch.
    for ho in range(n_h2):
        lhs = y1_scr[:, pl.ds(SH * ho * WC1, KH * WC1)].astype(cdt)
        acc = jnp.dot(lhs, w2, preferred_element_type=f32)
        y2_scr[:, pl.ds((ho + 1) * WC2, WC2)] = jnp.maximum(acc + b2, 0.0)

    # ---- layer 3: one (tb, 576) @ (576, 192) matmul per output row, written
    # straight into the lane-dense flat output block in (h, w, c) order.
    for ho in range(n_h3):
        lhs = y2_scr[:, pl.ds(SH * ho * WC2, KH * WC2)].astype(cdt)
        acc = jnp.dot(lhs, w3, preferred_element_type=f32)
        flat_ref[:, pl.ds(ho * WC3, WC3)] = jnp.maximum(acc + b3, 0.0)

    # ---- fc: single (tb, 384) @ (384, ncls_pad) matmul, lane-dense output.
    flat = flat_ref[...].astype(cdt)
    out_ref[...] = jnp.dot(flat, wfc, preferred_element_type=f32) + bfc


# ----------------------- one-time parameter folding --------------------------

def fold_params(params, eps=_BN_EPS, compute_dtype=jnp.bfloat16):
    """Fold torch-layout parameters into the fused-kernel layout (call ONCE).

    - eval-mode BatchNorm is folded into the conv weights / a single bias;
    - each conv tap becomes a (W*C_in, W*C_out) block-diag-over-w matrix and the
      taps are concatenated along K (layers 2/3) so each output row is ONE matmul;
    - the fc weight is transposed/permuted once to consume (h, w, c) order;
    - matmul weights are cast to `compute_dtype` (bf16 is MXU-native on v6e/v7x
      and a valid MXU input on v5e); biases stay f32 (bias + ReLU run in f32).
    """
    def bn_fold(bias, gamma, beta, mean, var):
        s = gamma / jnp.sqrt(var + eps)
        return s, beta + (bias - mean) * s

    eye_w = jnp.eye(W, dtype=jnp.float32)

    def conv_cat(w, s):
        # w: (C_out, C_in, KH, 1) -> (KH*W*C_in, W*C_out), BN scale folded in,
        # K rows ordered (kh, w, c_in), columns ordered (w, c_out).
        a = jnp.transpose(w[:, :, :, 0], (2, 1, 0)) * s           # (KH, C_in, C_out)
        taps = jnp.stack([jnp.kron(eye_w, a[k]) for k in range(KH)], axis=0)
        return taps.reshape(KH * W * w.shape[1], W * w.shape[0])

    (w1, bias1, g1, be1, m1, v1) = params["layer1"]
    (w2, bias2, g2, be2, m2, v2) = params["layer2"]
    (w3, bias3, g3, be3, m3, v3) = params["layer3"]
    s1, t1 = bn_fold(bias1, g1, be1, m1, v1)
    s2, t2 = bn_fold(bias2, g2, be2, m2, v2)
    s3, t3 = bn_fold(bias3, g3, be3, m3, v3)

    fc_w, fc_b = params["fc_w"], params["fc_b"]
    num_classes, fc_in = fc_w.shape
    n_h3 = fc_in // (C3 * W)
    assert fc_in == n_h3 * C3 * W
    # torch flatten order is (c, h, w); the kernel produces (h, w, c).
    wfc = jnp.transpose(fc_w.reshape(num_classes, C3, n_h3, W), (2, 3, 1, 0))
    wfc = wfc.reshape(n_h3 * W * C3, num_classes)

    return {
        "w1": conv_cat(w1, s1).astype(compute_dtype),
        "b1": jnp.tile(t1, W).reshape(1, W * C1),
        "w2": conv_cat(w2, s2).astype(compute_dtype),
        "b2": jnp.tile(t2, W).reshape(1, W * C2),
        "w3": conv_cat(w3, s3).astype(compute_dtype),
        "b3": jnp.tile(t3, W).reshape(1, W * C3),
        "wfc": wfc.astype(compute_dtype),
        "bfc": fc_b.reshape(1, num_classes),
    }


# ------------------------------- fused forward --------------------------------

def cnn_reduce_filters_forward(x, folded, *, tile_b=512):
    """Fused forward. x: (B, C_in, H, 3) NCHW; folded = fold_params(params).

    Returns (flat, out) with flat in torch's .view(B, -1) (NCHW) order.
    """
    B, c_in, H, width = x.shape
    assert width == W
    n1 = _conv_h_out(H)
    n2 = _conv_h_out(n1)
    n3 = _conv_h_out(n2)
    num_classes = folded["bfc"].shape[1]
    assert folded["wfc"].shape[0] == n3 * W * C3, (
        "fc weight is sized for a different input height")
    # rows of each layer actually needed by the (flat, fc) outputs
    n_h3 = n3
    n_h2 = min(n2, SH * n_h3 + 2)
    n_h1 = min(n1, SH * n_h2 + 2)
    blocks1 = SH * (n_h2 - 1) + KH          # y1 scratch blocks (incl. pad rows)
    blocks2 = SH * (n_h3 - 1) + KH
    k_in = (H + 2) * W * c_in               # lane-dense padded input width
    k_patch = KH * W * c_in

    # The only XLA-side glue: pad H by 1 on each side and flatten to a single
    # lane-dense (B, (H+2)*W*c_in) slab (no im2col gather); layer-1 patches are
    # contiguous lane slices inside the kernel.
    xpad = jnp.pad(x, ((0, 0), (0, 0), (1, 1), (0, 0)))
    xflat = jnp.transpose(xpad, (0, 2, 3, 1)).reshape(B, k_in)

    # Pad fc weight/bias columns so the logits store is lane-dense (unmasked).
    ncp = max(128, _round_up(num_classes, 128))
    wfc = jnp.pad(folded["wfc"], ((0, 0), (0, ncp - num_classes)))
    bfc = jnp.pad(folded["bfc"], ((0, 0), (0, ncp - num_classes)))

    # Batch tiling: sublane-aligned tiles, >=2 grid steps when the batch allows
    # (so the 'parallel' axis shards across v7x's two TensorCores).
    bp8 = _round_up(B, 8)
    tb = min(tile_b, bp8)
    if bp8 > 8:
        tb = min(tb, _round_up((bp8 + 1) // 2, 8))
    tb = _round_up(tb, 8)
    bp = _round_up(B, tb)
    if bp != B:
        xflat = jnp.pad(xflat, ((0, bp - B), (0, 0)))

    kernel = functools.partial(_fused_kernel, n_h1=n_h1, n_h2=n_h2, n_h3=n_h3)
    flat_hwc, out_pad = pl.pallas_call(
        kernel,
        out_shape=(
            jax.ShapeDtypeStruct((bp, n_h3 * W * C3), jnp.float32),
            jax.ShapeDtypeStruct((bp, ncp), jnp.float32),
        ),
        grid=(bp // tb,),
        in_specs=[
            pl.BlockSpec((tb, k_in), lambda i: (i, 0)),
            # NOTE: on v7x, pipeline_mode=pl.Buffered(1) on these constant-index
            # weight specs would drop their second VMEM buffer (~0.4 MiB).
            pl.BlockSpec((k_patch, W * C1), lambda i: (0, 0)),
            pl.BlockSpec((1, W * C1), lambda i: (0, 0)),
            pl.BlockSpec((KH * W * C1, W * C2), lambda i: (0, 0)),
            pl.BlockSpec((1, W * C2), lambda i: (0, 0)),
            pl.BlockSpec((KH * W * C2, W * C3), lambda i: (0, 0)),
            pl.BlockSpec((1, W * C3), lambda i: (0, 0)),
            pl.BlockSpec((n_h3 * W * C3, ncp), lambda i: (0, 0)),
            pl.BlockSpec((1, ncp), lambda i: (0, 0)),
        ],
        out_specs=(
            pl.BlockSpec((tb, n_h3 * W * C3), lambda i: (i, 0)),
            pl.BlockSpec((tb, ncp), lambda i: (i, 0)),
        ),
        scratch_shapes=[
            pltpu.VMEM((tb, blocks1 * W * C1), jnp.float32),
            pltpu.VMEM((tb, blocks2 * W * C2), jnp.float32),
        ],
        compiler_params=pltpu.CompilerParams(
            dimension_semantics=("parallel",),
            vmem_limit_bytes=48 * 1024 * 1024),
    )(xflat, folded["w1"], folded["b1"], folded["w2"], folded["b2"],
      folded["w3"], folded["b3"], wfc, bfc)

    flat_hwc = flat_hwc[:B]
    out = out_pad[:B, :num_classes]
    # Kernel emits the layer-3 activation in (h, w, c) order; restore torch's
    # NCHW .view(B, -1) order with one tiny transpose on the final output only.
    flat = flat_hwc.reshape(B, n_h3, W, C3).transpose(0, 3, 1, 2).reshape(B, -1)
    return flat, out


# ------------------------------- parameters ---------------------------------

def init_params(key, input_channel=1, num_classes=6):
    keys = jax.random.split(key, 5)

    def conv_layer(k, cin, cout, kh=KH):
        k1, k2 = jax.random.split(k)
        fan_in = cin * kh * 1
        bound = 1.0 / jnp.sqrt(jnp.float32(fan_in))
        w = jax.random.uniform(k1, (cout, cin, kh, 1), jnp.float32, -bound, bound)
        b = jax.random.uniform(k2, (cout,), jnp.float32, -bound, bound)
        gamma = jnp.ones((cout,), jnp.float32)        # PyTorch BN defaults
        beta = jnp.zeros((cout,), jnp.float32)
        mean = jnp.zeros((cout,), jnp.float32)
        var = jnp.ones((cout,), jnp.float32)
        return (w, b, gamma, beta, mean, var)

    bound_fc = 1.0 / jnp.sqrt(jnp.float32(384))
    return {
        "layer1": conv_layer(keys[0], input_channel, C1),
        "layer2": conv_layer(keys[1], C1, C2),
        "layer3": conv_layer(keys[2], C2, C3),
        "fc_w": jax.random.uniform(keys[3], (num_classes, 384), jnp.float32,
                                   -bound_fc, bound_fc),
        "fc_b": jax.random.uniform(keys[4], (num_classes,), jnp.float32,
                                   -bound_fc, bound_fc),
    }


# --------------------- plain-JAX reference (for self-check) ------------------

def _reference_forward(x, params, eps=_BN_EPS):
    def layer(a, w, b, gamma, beta, mean, var):
        y = jax.lax.conv_general_dilated(
            a, w, window_strides=(SH, 1), padding=((1, 1), (0, 0)),
            dimension_numbers=("NCHW", "OIHW", "NCHW"))
        y = y + b[None, :, None, None]
        s = gamma / jnp.sqrt(var + eps)
        y = y * s[None, :, None, None] + (beta - mean * s)[None, :, None, None]
        return jnp.maximum(y, 0.0)

    a = layer(x, *params["layer1"])
    a = layer(a, *params["layer2"])
    a = layer(a, *params["layer3"])
    flat = a.reshape(a.shape[0], -1)
    out = flat @ params["fc_w"].T + params["fc_b"]
    return flat, out


# ---------------------------------- main -------------------------------------

if __name__ == "__main__":
    key = jax.random.PRNGKey(0)
    k_param, k_x = jax.random.split(key)

    params = init_params(k_param, input_channel=1, num_classes=6)
    # WISDM-style input: batch=2, 1 channel, 90 time steps, 3 accelerometer axes.
    x = jax.random.normal(k_x, (2, 1, 90, 3), dtype=jnp.float32)

    folded = fold_params(params)                 # one-time weight folding (outside jit)
    fwd = jax.jit(cnn_reduce_filters_forward)
    flat, out = fwd(x, folded)
    jax.block_until_ready((flat, out))

    assert flat.shape == (2, 384), flat.shape
    assert out.shape == (2, 6), out.shape
    assert bool(jnp.all(jnp.isfinite(flat))) and bool(jnp.all(jnp.isfinite(out)))

    # numerical cross-check against a plain-JAX (XLA conv) f32 reference;
    # tolerance covers the bf16 matmul operands (accumulation is f32).
    ref_flat, ref_out = _reference_forward(x, params)
    assert jnp.allclose(flat, ref_flat, atol=3e-2, rtol=3e-2), (
        float(jnp.max(jnp.abs(flat - ref_flat))))
    assert jnp.allclose(out, ref_out, atol=3e-2, rtol=3e-2), (
        float(jnp.max(jnp.abs(out - ref_out))))

    print("KERNEL_OK")
</pallas_src>

<mosaic_0001>
module attributes {stable_mosaic.version = 11 : i64} {
  func.func @_fused_kernel(%arg0: i32, %arg1: memref<8x276xf32, #tpu.memory_space<vmem>>, %arg2: memref<18x48xbf16, #tpu.memory_space<vmem>>, %arg3: memref<1x48xf32, #tpu.memory_space<vmem>>, %arg4: memref<288x96xbf16, #tpu.memory_space<vmem>>, %arg5: memref<1x96xf32, #tpu.memory_space<vmem>>, %arg6: memref<576x192xbf16, #tpu.memory_space<vmem>>, %arg7: memref<1x192xf32, #tpu.memory_space<vmem>>, %arg8: memref<384x128xbf16, #tpu.memory_space<vmem>>, %arg9: memref<1x128xf32, #tpu.memory_space<vmem>>, %arg10: memref<8x384xf32, #tpu.memory_space<vmem>>, %arg11: memref<8x128xf32, #tpu.memory_space<vmem>>, %arg12: memref<8x1296xf32, #tpu.memory_space<vmem>>, %arg13: memref<8x864xf32, #tpu.memory_space<vmem>>) attributes {dimension_semantics = [#tpu.dimension_semantics<parallel>], iteration_bounds = array<i64: 1>, scalar_prefetch = 0 : i64, scratch_operands = 2 : i64, tpu.core_type = #tpu.core_type<tc>, window_params = [{transform_indices = @transform_0, window_bounds = array<i64: 8, 276>}, {pipeline_mode = #tpu.pipeline_mode<synchronous>, transform_indices = @transform_1, window_bounds = array<i64: 18, 48>}, {pipeline_mode = #tpu.pipeline_mode<synchronous>, transform_indices = @transform_2, window_bounds = array<i64: 1, 48>}, {pipeline_mode = #tpu.pipeline_mode<synchronous>, transform_indices = @transform_3, window_bounds = array<i64: 288, 96>}, {pipeline_mode = #tpu.pipeline_mode<synchronous>, transform_indices = @transform_4, window_bounds = array<i64: 1, 96>}, {pipeline_mode = #tpu.pipeline_mode<synchronous>, transform_indices = @transform_5, window_bounds = array<i64: 576, 192>}, {pipeline_mode = #tpu.pipeline_mode<synchronous>, transform_indices = @transform_6, window_bounds = array<i64: 1, 192>}, {pipeline_mode = #tpu.pipeline_mode<synchronous>, transform_indices = @transform_7, window_bounds = array<i64: 384, 128>}, {pipeline_mode = #tpu.pipeline_mode<synchronous>, transform_indices = @transform_8, window_bounds = array<i64: 1, 128>}, {transform_indices = @transform_9, window_bounds = array<i64: 8, 384>}, {transform_indices = @transform_10, window_bounds = array<i64: 8, 128>}]} {
    %c0 = arith.constant 0 : index
    %c0_0 = arith.constant 0 : index
    %0 = vector.load %arg2[%c0, %c0_0] : memref<18x48xbf16, #tpu.memory_space<vmem>>, vector<18x48xbf16>
    %c0_1 = arith.constant 0 : index
    %c0_2 = arith.constant 0 : index
    %1 = vector.load %arg4[%c0_1, %c0_2] : memref<288x96xbf16, #tpu.memory_space<vmem>>, vector<288x96xbf16>
    %c0_3 = arith.constant 0 : index
    %c0_4 = arith.constant 0 : index
    %2 = vector.load %arg6[%c0_3, %c0_4] : memref<576x192xbf16, #tpu.memory_space<vmem>>, vector<576x192xbf16>
    %c0_5 = arith.constant 0 : index
    %c0_6 = arith.constant 0 : index
    %3 = vector.load %arg8[%c0_5, %c0_6] : memref<384x128xbf16, #tpu.memory_space<vmem>>, vector<384x128xbf16>
    %c0_7 = arith.constant 0 : index
    %c0_8 = arith.constant 0 : index
    %4 = vector.load %arg3[%c0_7, %c0_8] : memref<1x48xf32, #tpu.memory_space<vmem>>, vector<1x48xf32>
    %5 = vector.shape_cast %4 : vector<1x48xf32> to vector<1x48xf32>
    %6 = vector.broadcast %5 : vector<1x48xf32> to vector<8x48xf32>
    %c0_9 = arith.constant 0 : index
    %c0_10 = arith.constant 0 : index
    %7 = vector.load %arg5[%c0_9, %c0_10] : memref<1x96xf32, #tpu.memory_space<vmem>>, vector<1x96xf32>
    %8 = vector.shape_cast %7 : vector<1x96xf32> to vector<1x96xf32>
    %9 = vector.broadcast %8 : vector<1x96xf32> to vector<8x96xf32>
    %c0_11 = arith.constant 0 : index
    %c0_12 = arith.constant 0 : index
    %10 = vector.load %arg7[%c0_11, %c0_12] : memref<1x192xf32, #tpu.memory_space<vmem>>, vector<1x192xf32>
    %11 = vector.shape_cast %10 : vector<1x192xf32> to vector<1x192xf32>
    %12 = vector.broadcast %11 : vector<1x192xf32> to vector<8x192xf32>
    %c0_13 = arith.constant 0 : index
    %c0_14 = arith.constant 0 : index
    %13 = vector.load %arg9[%c0_13, %c0_14] : memref<1x128xf32, #tpu.memory_space<vmem>>, vector<1x128xf32>
    %14 = vector.shape_cast %13 : vector<1x128xf32> to vector<1x128xf32>
    %15 = vector.broadcast %14 : vector<1x128xf32> to vector<8x128xf32>
    %cst = arith.constant 0.000000e+00 : f32
    %16 = vector.broadcast %cst : f32 to vector<8x48xf32>
    %c0_15 = arith.constant 0 : index
    %c0_16 = arith.constant 0 : index
    %17 = vector.load %arg12[%c0_15, %c0_16] : memref<8x1296xf32, #tpu.memory_space<vmem>>, vector<8x48xf32>
    tpu.vector_store %arg12[%c0_15, %c0_16], %16 {strides = array<i32>} : memref<8x1296xf32, #tpu.memory_space<vmem>>, vector<8x48xf32>,
    %cst_17 = arith.constant 0.000000e+00 : f32
    %18 = vector.broadcast %cst_17 : f32 to vector<8x96xf32>
    %c0_18 = arith.constant 0 : index
    %c0_19 = arith.constant 0 : index
    %19 = vector.load %arg13[%c0_18, %c0_19] : memref<8x864xf32, #tpu.memory_space<vmem>>, vector<8x96xf32>
    tpu.vector_store %arg13[%c0_18, %c0_19], %18 {strides = array<i32>} : memref<8x864xf32, #tpu.memory_space<vmem>>, vector<8x96xf32>,
    %c0_20 = arith.constant 0 : index
    %c0_21 = arith.constant 0 : index
    %20 = vector.load %arg1[%c0_20, %c0_21] : memref<8x276xf32, #tpu.memory_space<vmem>>, vector<8x18xf32>
    %21 = arith.truncf %20 : vector<8x18xf32> to vector<8x18xbf16>
    %cst_22 = arith.constant dense<0.000000e+00> : vector<8x48xf32>
    %22 = tpu.matmul %21, %0, %cst_22 {dimension_numbers = #tpu.dot_dimension_numbers<[1], [0], [0], [1], [0, 0, 1, 1], [], []>} : vector<8x18xbf16>, vector<18x48xbf16>, vector<8x48xf32> -> vector<8x48xf32>
    %23 = arith.addf %22, %6 : vector<8x48xf32>
    %cst_23 = arith.constant 0.000000e+00 : f32
    %24 = vector.broadcast %cst_23 : f32 to vector<8x48xf32>
    %25 = arith.maximumf %23, %24 : vector<8x48xf32>
    %c0_24 = arith.constant 0 : index
    %c48 = arith.constant 48 : index
    %26 = vector.load %arg12[%c0_24, %c48] : memref<8x1296xf32, #tpu.memory_space<vmem>>, vector<8x48xf32>
    tpu.vector_store %arg12[%c0_24, %c48], %25 {strides = array<i32>} : memref<8x1296xf32, #tpu.memory_space<vmem>>, vector<8x48xf32>,
    %c0_25 = arith.constant 0 : index
    %c9 = arith.constant 9 : index
    %27 = vector.load %arg1[%c0_25, %c9] : memref<8x276xf32, #tpu.memory_space<vmem>>, vector<8x18xf32>
    %28 = arith.truncf %27 : vector<8x18xf32> to vector<8x18xbf16>
    %cst_26 = arith.constant dense<0.000000e+00> : vector<8x48xf32>
    %29 = tpu.matmul %28, %0, %cst_26 {dimension_numbers = #tpu.dot_dimension_numbers<[1], [0], [0], [1], [0, 0, 1, 1], [], []>} : vector<8x18xbf16>, vector<18x48xbf16>, vector<8x48xf32> -> vector<8x48xf32>
    %30 = arith.addf %29, %6 : vector<8x48xf32>
    %cst_27 = arith.constant 0.000000e+00 : f32
    %31 = vector.broadcast %cst_27 : f32 to vector<8x48xf32>
    %32 = arith.maximumf %30, %31 : vector<8x48xf32>
    %c0_28 = arith.constant 0 : index
    %c96 = arith.constant 96 : index
    %33 = vector.load %arg12[%c0_28, %c96] : memref<8x1296xf32, #tpu.memory_space<vmem>>, vector<8x48xf32>
    tpu.vector_store %arg12[%c0_28, %c96], %32 {strides = array<i32>} : memref<8x1296xf32, #tpu.memory_space<vmem>>, vector<8x48xf32>,
    %c0_29 = arith.constant 0 : index
    %c18 = arith.constant 18 : index
    %34 = vector.load %arg1[%c0_29, %c18] : memref<8x276xf32, #tpu.memory_space<vmem>>, vector<8x18xf32>
    %35 = arith.truncf %34 : vector<8x18xf32> to vector<8x18xbf16>
    %cst_30 = arith.constant dense<0.000000e+00> : vector<8x48xf32>
    %36 = tpu.matmul %35, %0, %cst_30 {dimension_numbers = #tpu.dot_dimension_numbers<[1], [0], [0], [1], [0, 0, 1, 1], [], []>} : vector<8x18xbf16>, vector<18x48xbf16>, vector<8x48xf32> -> vector<8x48xf32>
    %37 = arith.addf %36, %6 : vector<8x48xf32>
    %cst_31 = arith.constant 0.000000e+00 : f32
    %38 = vector.broadcast %cst_31 : f32 to vector<8x48xf32>
    %39 = arith.maximumf %37, %38 : vector<8x48xf32>
    %c0_32 = arith.constant 0 : index
    %c144 = arith.constant 144 : index
    %40 = vector.load %arg12[%c0_32, %c144] : memref<8x1296xf32, #tpu.memory_space<vmem>>, vector<8x48xf32>
    tpu.vector_store %arg12[%c0_32, %c144], %39 {strides = array<i32>} : memref<8x1296xf32, #tpu.memory_space<vmem>>, vector<8x48xf32>,
    %c0_33 = arith.constant 0 : index
    %c27 = arith.constant 27 : index
    %41 = vector.load %arg1[%c0_33, %c27] : memref<8x276xf32, #tpu.memory_space<vmem>>, vector<8x18xf32>
    %42 = arith.truncf %41 : vector<8x18xf32> to vector<8x18xbf16>
    %cst_34 = arith.constant dense<0.000000e+00> : vector<8x48xf32>
    %43 = tpu.matmul %42, %0, %cst_34 {dimension_numbers = #tpu.dot_dimension_numbers<[1], [0], [0], [1], [0, 0, 1, 1], [], []>} : vector<8x18xbf16>, vector<18x48xbf16>, vector<8x48xf32> -> vector<8x48xf32>
    %44 = arith.addf %43, %6 : vector<8x48xf32>
    %cst_35 = arith.constant 0.000000e+00 : f32
    %45 = vector.broadcast %cst_35 : f32 to vector<8x48xf32>
    %46 = arith.maximumf %44, %45 : vector<8x48xf32>
    %c0_36 = arith.constant 0 : index
    %c192 = arith.constant 192 : index
    %47 = vector.load %arg12[%c0_36, %c192] : memref<8x1296xf32, #tpu.memory_space<vmem>>, vector<8x48xf32>
    tpu.vector_store %arg12[%c0_36, %c192], %46 {strides = array<i32>} : memref<8x1296xf32, #tpu.memory_space<vmem>>, vector<8x48xf32>,
    %c0_37 = arith.constant 0 : index
    %c36 = arith.constant 36 : index
    %48 = vector.load %arg1[%c0_37, %c36] : memref<8x276xf32, #tpu.memory_space<vmem>>, vector<8x18xf32>
    %49 = arith.truncf %48 : vector<8x18xf32> to vector<8x18xbf16>
    %cst_38 = arith.constant dense<0.000000e+00> : vector<8x48xf32>
    %50 = tpu.matmul %49, %0, %cst_38 {dimension_numbers = #tpu.dot_dimension_numbers<[1], [0], [0], [1], [0, 0, 1, 1], [], []>} : vector<8x18xbf16>, vector<18x48xbf16>, vector<8x48xf32> -> vector<8x48xf32>
    %51 = arith.addf %50, %6 : vector<8x48xf32>
    %cst_39 = arith.constant 0.000000e+00 : f32
    %52 = vector.broadcast %cst_39 : f32 to vector<8x48xf32>
    %53 = arith.maximumf %51, %52 : vector<8x48xf32>
    %c0_40 = arith.constant 0 : index
    %c240 = arith.constant 240 : index
    %54 = vector.load %arg12[%c0_40, %c240] : memref<8x1296xf32, #tpu.memory_space<vmem>>, vector<8x48xf32>
    tpu.vector_store %arg12[%c0_40, %c240], %53 {strides = array<i32>} : memref<8x1296xf32, #tpu.memory_space<vmem>>, vector<8x48xf32>,
    %c0_41 = arith.constant 0 : index
    %c45 = arith.constant 45 : index
    %55 = vector.load %arg1[%c0_41, %c45] : memref<8x276xf32, #tpu.memory_space<vmem>>, vector<8x18xf32>
    %56 = arith.truncf %55 : vector<8x18xf32> to vector<8x18xbf16>
    %cst_42 = arith.constant dense<0.000000e+00> : vector<8x48xf32>
    %57 = tpu.matmul %56, %0, %cst_42 {dimension_numbers = #tpu.dot_dimension_numbers<[1], [0], [0], [1], [0, 0, 1, 1], [], []>} : vector<8x18xbf16>, vector<18x48xbf16>, vector<8x48xf32> -> vector<8x48xf32>
    %58 = arith.addf %57, %6 : vector<8x48xf32>
    %cst_43 = arith.constant 0.000000e+00 : f32
    %59 = vector.broadcast %cst_43 : f32 to vector<8x48xf32>
    %60 = arith.maximumf %58, %59 : vector<8x48xf32>
    %c0_44 = arith.constant 0 : index
    %c288 = arith.constant 288 : index
    %61 = vector.load %arg12[%c0_44, %c288] : memref<8x1296xf32, #tpu.memory_space<vmem>>, vector<8x48xf32>
    tpu.vector_store %arg12[%c0_44, %c288], %60 {strides = array<i32>} : memref<8x1296xf32, #tpu.memory_space<vmem>>, vector<8x48xf32>,
    %c0_45 = arith.constant 0 : index
    %c54 = arith.constant 54 : index
    %62 = vector.load %arg1[%c0_45, %c54] : memref<8x276xf32, #tpu.memory_space<vmem>>, vector<8x18xf32>
    %63 = arith.truncf %62 : vector<8x18xf32> to vector<8x18xbf16>
    %cst_46 = arith.constant dense<0.000000e+00> : vector<8x48xf32>
    %64 = tpu.matmul %63, %0, %cst_46 {dimension_numbers = #tpu.dot_dimension_numbers<[1], [0], [0], [1], [0, 0, 1, 1], [], []>} : vector<8x18xbf16>, vector<18x48xbf16>, vector<8x48xf32> -> vector<8x48xf32>
    %65 = arith.addf %64, %6 : vector<8x48xf32>
    %cst_47 = arith.constant 0.000000e+00 : f32
    %66 = vector.broadcast %cst_47 : f32 to vector<8x48xf32>
    %67 = arith.maximumf %65, %66 : vector<8x48xf32>
    %c0_48 = arith.constant 0 : index
    %c336 = arith.constant 336 : index
    %68 = vector.load %arg12[%c0_48, %c336] : memref<8x1296xf32, #tpu.memory_space<vmem>>, vector<8x48xf32>
    tpu.vector_store %arg12[%c0_48, %c336], %67 {strides = array<i32>} : memref<8x1296xf32, #tpu.memory_space<vmem>>, vector<8x48xf32>,
    %c0_49 = arith.constant 0 : index
    %c63 = arith.constant 63 : index
    %69 = vector.load %arg1[%c0_49, %c63] : memref<8x276xf32, #tpu.memory_space<vmem>>, vector<8x18xf32>
    %70 = arith.truncf %69 : vector<8x18xf32> to vector<8x18xbf16>
    %cst_50 = arith.constant dense<0.000000e+00> : vector<8x48xf32>
    %71 = tpu.matmul %70, %0, %cst_50 {dimension_numbers = #tpu.dot_dimension_numbers<[1], [0], [0], [1], [0, 0, 1, 1], [], []>} : vector<8x18xbf16>, vector<18x48xbf16>, vector<8x48xf32> -> vector<8x48xf32>
    %72 = arith.addf %71, %6 : vector<8x48xf32>
    %cst_51 = arith.constant 0.000000e+00 : f32
    %73 = vector.broadcast %cst_51 : f32 to vector<8x48xf32>
    %74 = arith.maximumf %72, %73 : vector<8x48xf32>
    %c0_52 = arith.constant 0 : index
    %c384 = arith.constant 384 : index
    %75 = vector.load %arg12[%c0_52, %c384] : memref<8x1296xf32, #tpu.memory_space<vmem>>, vector<8x48xf32>
    tpu.vector_store %arg12[%c0_52, %c384], %74 {strides = array<i32>} : memref<8x1296xf32, #tpu.memory_space<vmem>>, vector<8x48xf32>,
    %c0_53 = arith.constant 0 : index
    %c72 = arith.constant 72 : index
    %76 = vector.load %arg1[%c0_53, %c72] : memref<8x276xf32, #tpu.memory_space<vmem>>, vector<8x18xf32>
    %77 = arith.truncf %76 : vector<8x18xf32> to vector<8x18xbf16>
    %cst_54 = arith.constant dense<0.000000e+00> : vector<8x48xf32>
    %78 = tpu.matmul %77, %0, %cst_54 {dimension_numbers = #tpu.dot_dimension_numbers<[1], [0], [0], [1], [0, 0, 1, 1], [], []>} : vector<8x18xbf16>, vector<18x48xbf16>, vector<8x48xf32> -> vector<8x48xf32>
    %79 = arith.addf %78, %6 : vector<8x48xf32>
    %cst_55 = arith.constant 0.000000e+00 : f32
    %80 = vector.broadcast %cst_55 : f32 to vector<8x48xf32>
    %81 = arith.maximumf %79, %80 : vector<8x48xf32>
    %c0_56 = arith.constant 0 : index
    %c432 = arith.constant 432 : index
    %82 = vector.load %arg12[%c0_56, %c432] : memref<8x1296xf32, #tpu.memory_space<vmem>>, vector<8x48xf32>
    tpu.vector_store %arg12[%c0_56, %c432], %81 {strides = array<i32>} : memref<8x1296xf32, #tpu.memory_space<vmem>>, vector<8x48xf32>,
    %c0_57 = arith.constant 0 : index
    %c81 = arith.constant 81 : index
    %83 = vector.load %arg1[%c0_57, %c81] : memref<8x276xf32, #tpu.memory_space<vmem>>, vector<8x18xf32>
    %84 = arith.truncf %83 : vector<8x18xf32> to vector<8x18xbf16>
    %cst_58 = arith.constant dense<0.000000e+00> : vector<8x48xf32>
    %85 = tpu.matmul %84, %0, %cst_58 {dimension_numbers = #tpu.dot_dimension_numbers<[1], [0], [0], [1], [0, 0, 1, 1], [], []>} : vector<8x18xbf16>, vector<18x48xbf16>, vector<8x48xf32> -> vector<8x48xf32>
    %86 = arith.addf %85, %6 : vector<8x48xf32>
    %cst_59 = arith.constant 0.000000e+00 : f32
    %87 = vector.broadcast %cst_59 : f32 to vector<8x48xf32>
    %88 = arith.maximumf %86, %87 : vector<8x48xf32>
    %c0_60 = arith.constant 0 : index
    %c480 = arith.constant 480 : index
    %89 = vector.load %arg12[%c0_60, %c480] : memref<8x1296xf32, #tpu.memory_space<vmem>>, vector<8x48xf32>
    tpu.vector_store %arg12[%c0_60, %c480], %88 {strides = array<i32>} : memref<8x1296xf32, #tpu.memory_space<vmem>>, vector<8x48xf32>,
    %c0_61 = arith.constant 0 : index
    %c90 = arith.constant 90 : index
    %90 = vector.load %arg1[%c0_61, %c90] : memref<8x276xf32, #tpu.memory_space<vmem>>, vector<8x18xf32>
    %91 = arith.truncf %90 : vector<8x18xf32> to vector<8x18xbf16>
    %cst_62 = arith.constant dense<0.000000e+00> : vector<8x48xf32>
    %92 = tpu.matmul %91, %0, %cst_62 {dimension_numbers = #tpu.dot_dimension_numbers<[1], [0], [0], [1], [0, 0, 1, 1], [], []>} : vector<8x18xbf16>, vector<18x48xbf16>, vector<8x48xf32> -> vector<8x48xf32>
    %93 = arith.addf %92, %6 : vector<8x48xf32>
    %cst_63 = arith.constant 0.000000e+00 : f32
    %94 = vector.broadcast %cst_63 : f32 to vector<8x48xf32>
    %95 = arith.maximumf %93, %94 : vector<8x48xf32>
    %c0_64 = arith.constant 0 : index
    %c528 = arith.constant 528 : index
    %96 = vector.load %arg12[%c0_64, %c528] : memref<8x1296xf32, #tpu.memory_space<vmem>>, vector<8x48xf32>
    tpu.vector_store %arg12[%c0_64, %c528], %95 {strides = array<i32>} : memref<8x1296xf32, #tpu.memory_space<vmem>>, vector<8x48xf32>,
    %c0_65 = arith.constant 0 : index
    %c99 = arith.constant 99 : index
    %97 = vector.load %arg1[%c0_65, %c99] : memref<8x276xf32, #tpu.memory_space<vmem>>, vector<8x18xf32>
    %98 = arith.truncf %97 : vector<8x18xf32> to vector<8x18xbf16>
    %cst_66 = arith.constant dense<0.000000e+00> : vector<8x48xf32>
    %99 = tpu.matmul %98, %0, %cst_66 {dimension_numbers = #tpu.dot_dimension_numbers<[1], [0], [0], [1], [0, 0, 1, 1], [], []>} : vector<8x18xbf16>, vector<18x48xbf16>, vector<8x48xf32> -> vector<8x48xf32>
    %100 = arith.addf %99, %6 : vector<8x48xf32>
    %cst_67 = arith.constant 0.000000e+00 : f32
    %101 = vector.broadcast %cst_67 : f32 to vector<8x48xf32>
    %102 = arith.maximumf %100, %101 : vector<8x48xf32>
    %c0_68 = arith.constant 0 : index
    %c576 = arith.constant 576 : index
    %103 = vector.load %arg12[%c0_68, %c576] : memref<8x1296xf32, #tpu.memory_space<vmem>>, vector<8x48xf32>
    tpu.vector_store %arg12[%c0_68, %c576], %102 {strides = array<i32>} : memref<8x1296xf32, #tpu.memory_space<vmem>>, vector<8x48xf32>,
    %c0_69 = arith.constant 0 : index
    %c108 = arith.constant 108 : index
    %104 = vector.load %arg1[%c0_69, %c108] : memref<8x276xf32, #tpu.memory_space<vmem>>, vector<8x18xf32>
    %105 = arith.truncf %104 : vector<8x18xf32> to vector<8x18xbf16>
    %cst_70 = arith.constant dense<0.000000e+00> : vector<8x48xf32>
    %106 = tpu.matmul %105, %0, %cst_70 {dimension_numbers = #tpu.dot_dimension_numbers<[1], [0], [0], [1], [0, 0, 1, 1], [], []>} : vector<8x18xbf16>, vector<18x48xbf16>, vector<8x48xf32> -> vector<8x48xf32>
    %107 = arith.addf %106, %6 : vector<8x48xf32>
    %cst_71 = arith.constant 0.000000e+00 : f32
    %108 = vector.broadcast %cst_71 : f32 to vector<8x48xf32>
    %109 = arith.maximumf %107, %108 : vector<8x48xf32>
    %c0_72 = arith.constant 0 : index
    %c624 = arith.constant 624 : index
    %110 = vector.load %arg12[%c0_72, %c624] : memref<8x1296xf32, #tpu.memory_space<vmem>>, vector<8x48xf32>
    tpu.vector_store %arg12[%c0_72, %c624], %109 {strides = array<i32>} : memref<8x1296xf32, #tpu.memory_space<vmem>>, vector<8x48xf32>,
    %c0_73 = arith.constant 0 : index
    %c117 = arith.constant 117 : index
    %111 = vector.load %arg1[%c0_73, %c117] : memref<8x276xf32, #tpu.memory_space<vmem>>, vector<8x18xf32>
    %112 = arith.truncf %111 : vector<8x18xf32> to vector<8x18xbf16>
    %cst_74 = arith.constant dense<0.000000e+00> : vector<8x48xf32>
    %113 = tpu.matmul %112, %0, %cst_74 {dimension_numbers = #tpu.dot_dimension_numbers<[1], [0], [0], [1], [0, 0, 1, 1], [], []>} : vector<8x18xbf16>, vector<18x48xbf16>, vector<8x48xf32> -> vector<8x48xf32>
    %114 = arith.addf %113, %6 : vector<8x48xf32>
    %cst_75 = arith.constant 0.000000e+00 : f32
    %115 = vector.broadcast %cst_75 : f32 to vector<8x48xf32>
    %116 = arith.maximumf %114, %115 : vector<8x48xf32>
    %c0_76 = arith.constant 0 : index
    %c672 = arith.constant 672 : index
    %117 = vector.load %arg12[%c0_76, %c672] : memref<8x1296xf32, #tpu.memory_space<vmem>>, vector<8x48xf32>
    tpu.vector_store %arg12[%c0_76, %c672], %116 {strides = array<i32>} : memref<8x1296xf32, #tpu.memory_space<vmem>>, vector<8x48xf32>,
    %c0_77 = arith.constant 0 : index
    %c126 = arith.constant 126 : index
    %118 = vector.load %arg1[%c0_77, %c126] : memref<8x276xf32, #tpu.memory_space<vmem>>, vector<8x18xf32>
    %119 = arith.truncf %118 : vector<8x18xf32> to vector<8x18xbf16>
    %cst_78 = arith.constant dense<0.000000e+00> : vector<8x48xf32>
    %120 = tpu.matmul %119, %0, %cst_78 {dimension_numbers = #tpu.dot_dimension_numbers<[1], [0], [0], [1], [0, 0, 1, 1], [], []>} : vector<8x18xbf16>, vector<18x48xbf16>, vector<8x48xf32> -> vector<8x48xf32>
    %121 = arith.addf %120, %6 : vector<8x48xf32>
    %cst_79 = arith.constant 0.000000e+00 : f32
    %122 = vector.broadcast %cst_79 : f32 to vector<8x48xf32>
    %123 = arith.maximumf %121, %122 : vector<8x48xf32>
    %c0_80 = arith.constant 0 : index
    %c720 = arith.constant 720 : index
    %124 = vector.load %arg12[%c0_80, %c720] : memref<8x1296xf32, #tpu.memory_space<vmem>>, vector<8x48xf32>
    tpu.vector_store %arg12[%c0_80, %c720], %123 {strides = array<i32>} : memref<8x1296xf32, #tpu.memory_space<vmem>>, vector<8x48xf32>,
    %c0_81 = arith.constant 0 : index
    %c135 = arith.constant 135 : index
    %125 = vector.load %arg1[%c0_81, %c135] : memref<8x276xf32, #tpu.memory_space<vmem>>, vector<8x18xf32>
    %126 = arith.truncf %125 : vector<8x18xf32> to vector<8x18xbf16>
    %cst_82 = arith.constant dense<0.000000e+00> : vector<8x48xf32>
    %127 = tpu.matmul %126, %0, %cst_82 {dimension_numbers = #tpu.dot_dimension_numbers<[1], [0], [0], [1], [0, 0, 1, 1], [], []>} : vector<8x18xbf16>, vector<18x48xbf16>, vector<8x48xf32> -> vector<8x48xf32>
    %128 = arith.addf %127, %6 : vector<8x48xf32>
    %cst_83 = arith.constant 0.000000e+00 : f32
    %129 = vector.broadcast %cst_83 : f32 to vector<8x48xf32>
    %130 = arith.maximumf %128, %129 : vector<8x48xf32>
    %c0_84 = arith.constant 0 : index
    %c768 = arith.constant 768 : index
    %131 = vector.load %arg12[%c0_84, %c768] : memref<8x1296xf32, #tpu.memory_space<vmem>>, vector<8x48xf32>
    tpu.vector_store %arg12[%c0_84, %c768], %130 {strides = array<i32>} : memref<8x1296xf32, #tpu.memory_space<vmem>>, vector<8x48xf32>,
    %c0_85 = arith.constant 0 : index
    %c144_86 = arith.constant 144 : index
    %132 = vector.load %arg1[%c0_85, %c144_86] : memref<8x276xf32, #tpu.memory_space<vmem>>, vector<8x18xf32>
    %133 = arith.truncf %132 : vector<8x18xf32> to vector<8x18xbf16>
    %cst_87 = arith.constant dense<0.000000e+00> : vector<8x48xf32>
    %134 = tpu.matmul %133, %0, %cst_87 {dimension_numbers = #tpu.dot_dimension_numbers<[1], [0], [0], [1], [0, 0, 1, 1], [], []>} : vector<8x18xbf16>, vector<18x48xbf16>, vector<8x48xf32> -> vector<8x48xf32>
    %135 = arith.addf %134, %6 : vector<8x48xf32>
    %cst_88 = arith.constant 0.000000e+00 : f32
    %136 = vector.broadcast %cst_88 : f32 to vector<8x48xf32>
    %137 = arith.maximumf %135, %136 : vector<8x48xf32>
    %c0_89 = arith.constant 0 : index
    %c816 = arith.constant 816 : index
    %138 = vector.load %arg12[%c0_89, %c816] : memref<8x1296xf32, #tpu.memory_space<vmem>>, vector<8x48xf32>
    tpu.vector_store %arg12[%c0_89, %c816], %137 {strides = array<i32>} : memref<8x1296xf32, #tpu.memory_space<vmem>>, vector<8x48xf32>,
    %c0_90 = arith.constant 0 : index
    %c153 = arith.constant 153 : index
    %139 = vector.load %arg1[%c0_90, %c153] : memref<8x276xf32, #tpu.memory_space<vmem>>, vector<8x18xf32>
    %140 = arith.truncf %139 : vector<8x18xf32> to vector<8x18xbf16>
    %cst_91 = arith.constant dense<0.000000e+00> : vector<8x48xf32>
    %141 = tpu.matmul %140, %0, %cst_91 {dimension_numbers = #tpu.dot_dimension_numbers<[1], [0], [0], [1], [0, 0, 1, 1], [], []>} : vector<8x18xbf16>, vector<18x48xbf16>, vector<8x48xf32> -> vector<8x48xf32>
    %142 = arith.addf %141, %6 : vector<8x48xf32>
    %cst_92 = arith.constant 0.000000e+00 : f32
    %143 = vector.broadcast %cst_92 : f32 to vector<8x48xf32>
    %144 = arith.maximumf %142, %143 : vector<8x48xf32>
    %c0_93 = arith.constant 0 : index
    %c864 = arith.constant 864 : index
    %145 = vector.load %arg12[%c0_93, %c864] : memref<8x1296xf32, #tpu.memory_space<vmem>>, vector<8x48xf32>
    tpu.vector_store %arg12[%c0_93, %c864], %144 {strides = array<i32>} : memref<8x1296xf32, #tpu.memory_space<vmem>>, vector<8x48xf32>,
    %c0_94 = arith.constant 0 : index
    %c162 = arith.constant 162 : index
    %146 = vector.load %arg1[%c0_94, %c162] : memref<8x276xf32, #tpu.memory_space<vmem>>, vector<8x18xf32>
    %147 = arith.truncf %146 : vector<8x18xf32> to vector<8x18xbf16>
    %cst_95 = arith.constant dense<0.000000e+00> : vector<8x48xf32>
    %148 = tpu.matmul %147, %0, %cst_95 {dimension_numbers = #tpu.dot_dimension_numbers<[1], [0], [0], [1], [0, 0, 1, 1], [], []>} : vector<8x18xbf16>, vector<18x48xbf16>, vector<8x48xf32> -> vector<8x48xf32>
    %149 = arith.addf %148, %6 : vector<8x48xf32>
    %cst_96 = arith.constant 0.000000e+00 : f32
    %150 = vector.broadcast %cst_96 : f32 to vector<8x48xf32>
    %151 = arith.maximumf %149, %150 : vector<8x48xf32>
    %c0_97 = arith.constant 0 : index
    %c912 = arith.constant 912 : index
    %152 = vector.load %arg12[%c0_97, %c912] : memref<8x1296xf32, #tpu.memory_space<vmem>>, vector<8x48xf32>
    tpu.vector_store %arg12[%c0_97, %c912], %151 {strides = array<i32>} : memref<8x1296xf32, #tpu.memory_space<vmem>>, vector<8x48xf32>,
    %c0_98 = arith.constant 0 : index
    %c171 = arith.constant 171 : index
    %153 = vector.load %arg1[%c0_98, %c171] : memref<8x276xf32, #tpu.memory_space<vmem>>, vector<8x18xf32>
    %154 = arith.truncf %153 : vector<8x18xf32> to vector<8x18xbf16>
    %cst_99 = arith.constant dense<0.000000e+00> : vector<8x48xf32>
    %155 = tpu.matmul %154, %0, %cst_99 {dimension_numbers = #tpu.dot_dimension_numbers<[1], [0], [0], [1], [0, 0, 1, 1], [], []>} : vector<8x18xbf16>, vector<18x48xbf16>, vector<8x48xf32> -> vector<8x48xf32>
    %156 = arith.addf %155, %6 : vector<8x48xf32>
    %cst_100 = arith.constant 0.000000e+00 : f32
    %157 = vector.broadcast %cst_100 : f32 to vector<8x48xf32>
    %158 = arith.maximumf %156, %157 : vector<8x48xf32>
    %c0_101 = arith.constant 0 : index
    %c960 = arith.constant 960 : index
    %159 = vector.load %arg12[%c0_101, %c960] : memref<8x1296xf32, #tpu.memory_space<vmem>>, vector<8x48xf32>
    tpu.vector_store %arg12[%c0_101, %c960], %158 {strides = array<i32>} : memref<8x1296xf32, #tpu.memory_space<vmem>>, vector<8x48xf32>,
    %c0_102 = arith.constant 0 : index
    %c180 = arith.constant 180 : index
    %160 = vector.load %arg1[%c0_102, %c180] : memref<8x276xf32, #tpu.memory_space<vmem>>, vector<8x18xf32>
    %161 = arith.truncf %160 : vector<8x18xf32> to vector<8x18xbf16>
    %cst_103 = arith.constant dense<0.000000e+00> : vector<8x48xf32>
    %162 = tpu.matmul %161, %0, %cst_103 {dimension_numbers = #tpu.dot_dimension_numbers<[1], [0], [0], [1], [0, 0, 1, 1], [], []>} : vector<8x18xbf16>, vector<18x48xbf16>, vector<8x48xf32> -> vector<8x48xf32>
    %163 = arith.addf %162, %6 : vector<8x48xf32>
    %cst_104 = arith.constant 0.000000e+00 : f32
    %164 = vector.broadcast %cst_104 : f32 to vector<8x48xf32>
    %165 = arith.maximumf %163, %164 : vector<8x48xf32>
    %c0_105 = arith.constant 0 : index
    %c1008 = arith.constant 1008 : index
    %166 = vector.load %arg12[%c0_105, %c1008] : memref<8x1296xf32, #tpu.memory_space<vmem>>, vector<8x48xf32>
    tpu.vector_store %arg12[%c0_105, %c1008], %165 {strides = array<i32>} : memref<8x1296xf32, #tpu.memory_space<vmem>>, vector<8x48xf32>,
    %c0_106 = arith.constant 0 : index
    %c189 = arith.constant 189 : index
    %167 = vector.load %arg1[%c0_106, %c189] : memref<8x276xf32, #tpu.memory_space<vmem>>, vector<8x18xf32>
    %168 = arith.truncf %167 : vector<8x18xf32> to vector<8x18xbf16>
    %cst_107 = arith.constant dense<0.000000e+00> : vector<8x48xf32>
    %169 = tpu.matmul %168, %0, %cst_107 {dimension_numbers = #tpu.dot_dimension_numbers<[1], [0], [0], [1], [0, 0, 1, 1], [], []>} : vector<8x18xbf16>, vector<18x48xbf16>, vector<8x48xf32> -> vector<8x48xf32>
    %170 = arith.addf %169, %6 : vector<8x48xf32>
    %cst_108 = arith.constant 0.000000e+00 : f32
    %171 = vector.broadcast %cst_108 : f32 to vector<8x48xf32>
    %172 = arith.maximumf %170, %171 : vector<8x48xf32>
    %c0_109 = arith.constant 0 : index
    %c1056 = arith.constant 1056 : index
    %173 = vector.load %arg12[%c0_109, %c1056] : memref<8x1296xf32, #tpu.memory_space<vmem>>, vector<8x48xf32>
    tpu.vector_store %arg12[%c0_109, %c1056], %172 {strides = array<i32>} : memref<8x1296xf32, #tpu.memory_space<vmem>>, vector<8x48xf32>,
    %c0_110 = arith.constant 0 : index
    %c198 = arith.constant 198 : index
    %174 = vector.load %arg1[%c0_110, %c198] : memref<8x276xf32, #tpu.memory_space<vmem>>, vector<8x18xf32>
    %175 = arith.truncf %174 : vector<8x18xf32> to vector<8x18xbf16>
    %cst_111 = arith.constant dense<0.000000e+00> : vector<8x48xf32>
    %176 = tpu.matmul %175, %0, %cst_111 {dimension_numbers = #tpu.dot_dimension_numbers<[1], [0], [0], [1], [0, 0, 1, 1], [], []>} : vector<8x18xbf16>, vector<18x48xbf16>, vector<8x48xf32> -> vector<8x48xf32>
    %177 = arith.addf %176, %6 : vector<8x48xf32>
    %cst_112 = arith.constant 0.000000e+00 : f32
    %178 = vector.broadcast %cst_112 : f32 to vector<8x48xf32>
    %179 = arith.maximumf %177, %178 : vector<8x48xf32>
    %c0_113 = arith.constant 0 : index
    %c1104 = arith.constant 1104 : index
    %180 = vector.load %arg12[%c0_113, %c1104] : memref<8x1296xf32, #tpu.memory_space<vmem>>, vector<8x48xf32>
    tpu.vector_store %arg12[%c0_113, %c1104], %179 {strides = array<i32>} : memref<8x1296xf32, #tpu.memory_space<vmem>>, vector<8x48xf32>,
    %c0_114 = arith.constant 0 : index
    %c207 = arith.constant 207 : index
    %181 = vector.load %arg1[%c0_114, %c207] : memref<8x276xf32, #tpu.memory_space<vmem>>, vector<8x18xf32>
    %182 = arith.truncf %181 : vector<8x18xf32> to vector<8x18xbf16>
    %cst_115 = arith.constant dense<0.000000e+00> : vector<8x48xf32>
    %183 = tpu.matmul %182, %0, %cst_115 {dimension_numbers = #tpu.dot_dimension_numbers<[1], [0], [0], [1], [0, 0, 1, 1], [], []>} : vector<8x18xbf16>, vector<18x48xbf16>, vector<8x48xf32> -> vector<8x48xf32>
    %184 = arith.addf %183, %6 : vector<8x48xf32>
    %cst_116 = arith.constant 0.000000e+00 : f32
    %185 = vector.broadcast %cst_116 : f32 to vector<8x48xf32>
    %186 = arith.maximumf %184, %185 : vector<8x48xf32>
    %c0_117 = arith.constant 0 : index
    %c1152 = arith.constant 1152 : index
    %187 = vector.load %arg12[%c0_117, %c1152] : memref<8x1296xf32, #tpu.memory_space<vmem>>, vector<8x48xf32>
    tpu.vector_store %arg12[%c0_117, %c1152], %186 {strides = array<i32>} : memref<8x1296xf32, #tpu.memory_space<vmem>>, vector<8x48xf32>,
    %c0_118 = arith.constant 0 : index
    %c216 = arith.constant 216 : index
    %188 = vector.load %arg1[%c0_118, %c216] : memref<8x276xf32, #tpu.memory_space<vmem>>, vector<8x18xf32>
    %189 = arith.truncf %188 : vector<8x18xf32> to vector<8x18xbf16>
    %cst_119 = arith.constant dense<0.000000e+00> : vector<8x48xf32>
    %190 = tpu.matmul %189, %0, %cst_119 {dimension_numbers = #tpu.dot_dimension_numbers<[1], [0], [0], [1], [0, 0, 1, 1], [], []>} : vector<8x18xbf16>, vector<18x48xbf16>, vector<8x48xf32> -> vector<8x48xf32>
    %191 = arith.addf %190, %6 : vector<8x48xf32>
    %cst_120 = arith.constant 0.000000e+00 : f32
    %192 = vector.broadcast %cst_120 : f32 to vector<8x48xf32>
    %193 = arith.maximumf %191, %192 : vector<8x48xf32>
    %c0_121 = arith.constant 0 : index
    %c1200 = arith.constant 1200 : index
    %194 = vector.load %arg12[%c0_121, %c1200] : memref<8x1296xf32, #tpu.memory_space<vmem>>, vector<8x48xf32>
    tpu.vector_store %arg12[%c0_121, %c1200], %193 {strides = array<i32>} : memref<8x1296xf32, #tpu.memory_space<vmem>>, vector<8x48xf32>,
    %c0_122 = arith.constant 0 : index
    %c225 = arith.constant 225 : index
    %195 = vector.load %arg1[%c0_122, %c225] : memref<8x276xf32, #tpu.memory_space<vmem>>, vector<8x18xf32>
    %196 = arith.truncf %195 : vector<8x18xf32> to vector<8x18xbf16>
    %cst_123 = arith.constant dense<0.000000e+00> : vector<8x48xf32>
    %197 = tpu.matmul %196, %0, %cst_123 {dimension_numbers = #tpu.dot_dimension_numbers<[1], [0], [0], [1], [0, 0, 1, 1], [], []>} : vector<8x18xbf16>, vector<18x48xbf16>, vector<8x48xf32> -> vector<8x48xf32>
    %198 = arith.addf %197, %6 : vector<8x48xf32>
    %cst_124 = arith.constant 0.000000e+00 : f32
    %199 = vector.broadcast %cst_124 : f32 to vector<8x48xf32>
    %200 = arith.maximumf %198, %199 : vector<8x48xf32>
    %c0_125 = arith.constant 0 : index
    %c1248 = arith.constant 1248 : index
    %201 = vector.load %arg12[%c0_125, %c1248] : memref<8x1296xf32, #tpu.memory_space<vmem>>, vector<8x48xf32>
    tpu.vector_store %arg12[%c0_125, %c1248], %200 {strides = array<i32>} : memref<8x1296xf32, #tpu.memory_space<vmem>>, vector<8x48xf32>,
    %c0_126 = arith.constant 0 : index
    %c0_127 = arith.constant 0 : index
    %202 = vector.load %arg12[%c0_126, %c0_127] : memref<8x1296xf32, #tpu.memory_space<vmem>>, vector<8x288xf32>
    %203 = arith.truncf %202 : vector<8x288xf32> to vector<8x288xbf16>
    %cst_128 = arith.constant dense<0.000000e+00> : vector<8x96xf32>
    %204 = tpu.matmul %203, %1, %cst_128 {dimension_numbers = #tpu.dot_dimension_numbers<[1], [0], [0], [1], [0, 0, 1, 1], [], []>} : vector<8x288xbf16>, vector<288x96xbf16>, vector<8x96xf32> -> vector<8x96xf32>
    %205 = arith.addf %204, %9 : vector<8x96xf32>
    %cst_129 = arith.constant 0.000000e+00 : f32
    %206 = vector.broadcast %cst_129 : f32 to vector<8x96xf32>
    %207 = arith.maximumf %205, %206 : vector<8x96xf32>
    %c0_130 = arith.constant 0 : index
    %c96_131 = arith.constant 96 : index
    %208 = vector.load %arg13[%c0_130, %c96_131] : memref<8x864xf32, #tpu.memory_space<vmem>>, vector<8x96xf32>
    tpu.vector_store %arg13[%c0_130, %c96_131], %207 {strides = array<i32>} : memref<8x864xf32, #tpu.memory_space<vmem>>, vector<8x96xf32>,
    %c0_132 = arith.constant 0 : index
    %c144_133 = arith.constant 144 : index
    %209 = vector.load %arg12[%c0_132, %c144_133] : memref<8x1296xf32, #tpu.memory_space<vmem>>, vector<8x288xf32>
    %210 = arith.truncf %209 : vector<8x288xf32> to vector<8x288xbf16>
    %cst_134 = arith.constant dense<0.000000e+00> : vector<8x96xf32>
    %211 = tpu.matmul %210, %1, %cst_134 {dimension_numbers = #tpu.dot_dimension_numbers<[1], [0], [0], [1], [0, 0, 1, 1], [], []>} : vector<8x288xbf16>, vector<288x96xbf16>, vector<8x96xf32> -> vector<8x96xf32>
    %212 = arith.addf %211, %9 : vector<8x96xf32>
    %cst_135 = arith.constant 0.000000e+00 : f32
    %213 = vector.broadcast %cst_135 : f32 to vector<8x96xf32>
    %214 = arith.maximumf %212, %213 : vector<8x96xf32>
    %c0_136 = arith.constant 0 : index
    %c192_137 = arith.constant 192 : index
    %215 = vector.load %arg13[%c0_136, %c192_137] : memref<8x864xf32, #tpu.memory_space<vmem>>, vector<8x96xf32>
    tpu.vector_store %arg13[%c0_136, %c192_137], %214 {strides = array<i32>} : memref<8x864xf32, #tpu.memory_space<vmem>>, vector<8x96xf32>,
    %c0_138 = arith.constant 0 : index
    %c288_139 = arith.constant 288 : index
    %216 = vector.load %arg12[%c0_138, %c288_139] : memref<8x1296xf32, #tpu.memory_space<vmem>>, vector<8x288xf32>
    %217 = arith.truncf %216 : vector<8x288xf32> to vector<8x288xbf16>
    %cst_140 = arith.constant dense<0.000000e+00> : vector<8x96xf32>
    %218 = tpu.matmul %217, %1, %cst_140 {dimension_numbers = #tpu.dot_dimension_numbers<[1], [0], [0], [1], [0, 0, 1, 1], [], []>} : vector<8x288xbf16>, vector<288x96xbf16>, vector<8x96xf32> -> vector<8x96xf32>
    %219 = arith.addf %218, %9 : vector<8x96xf32>
    %cst_141 = arith.constant 0.000000e+00 : f32
    %220 = vector.broadcast %cst_141 : f32 to vector<8x96xf32>
    %221 = arith.maximumf %219, %220 : vector<8x96xf32>
    %c0_142 = arith.constant 0 : index
    %c288_143 = arith.constant 288 : index
    %222 = vector.load %arg13[%c0_142, %c288_143] : memref<8x864xf32, #tpu.memory_space<vmem>>, vector<8x96xf32>
    tpu.vector_store %arg13[%c0_142, %c288_143], %221 {strides = array<i32>} : memref<8x864xf32, #tpu.memory_space<vmem>>, vector<8x96xf32>,
    %c0_144 = arith.constant 0 : index
    %c432_145 = arith.constant 432 : index
    %223 = vector.load %arg12[%c0_144, %c432_145] : memref<8x1296xf32, #tpu.memory_space<vmem>>, vector<8x288xf32>
    %224 = arith.truncf %223 : vector<8x288xf32> to vector<8x288xbf16>
    %cst_146 = arith.constant dense<0.000000e+00> : vector<8x96xf32>
    %225 = tpu.matmul %224, %1, %cst_146 {dimension_numbers = #tpu.dot_dimension_numbers<[1], [0], [0], [1], [0, 0, 1, 1], [], []>} : vector<8x288xbf16>, vector<288x96xbf16>, vector<8x96xf32> -> vector<8x96xf32>
    %226 = arith.addf %225, %9 : vector<8x96xf32>
    %cst_147 = arith.constant 0.000000e+00 : f32
    %227 = vector.broadcast %cst_147 : f32 to vector<8x96xf32>
    %228 = arith.maximumf %226, %227 : vector<8x96xf32>
    %c0_148 = arith.constant 0 : index
    %c384_149 = arith.constant 384 : index
    %229 = vector.load %arg13[%c0_148, %c384_149] : memref<8x864xf32, #tpu.memory_space<vmem>>, vector<8x96xf32>
    tpu.vector_store %arg13[%c0_148, %c384_149], %228 {strides = array<i32>} : memref<8x864xf32, #tpu.memory_space<vmem>>, vector<8x96xf32>,
    %c0_150 = arith.constant 0 : index
    %c576_151 = arith.constant 576 : index
    %230 = vector.load %arg12[%c0_150, %c576_151] : memref<8x1296xf32, #tpu.memory_space<vmem>>, vector<8x288xf32>
    %231 = arith.truncf %230 : vector<8x288xf32> to vector<8x288xbf16>
    %cst_152 = arith.constant dense<0.000000e+00> : vector<8x96xf32>
    %232 = tpu.matmul %231, %1, %cst_152 {dimension_numbers = #tpu.dot_dimension_numbers<[1], [0], [0], [1], [0, 0, 1, 1], [], []>} : vector<8x288xbf16>, vector<288x96xbf16>, vector<8x96xf32> -> vector<8x96xf32>
    %233 = arith.addf %232, %9 : vector<8x96xf32>
    %cst_153 = arith.constant 0.000000e+00 : f32
    %234 = vector.broadcast %cst_153 : f32 to vector<8x96xf32>
    %235 = arith.maximumf %233, %234 : vector<8x96xf32>
    %c0_154 = arith.constant 0 : index
    %c480_155 = arith.constant 480 : index
    %236 = vector.load %arg13[%c0_154, %c480_155] : memref<8x864xf32, #tpu.memory_space<vmem>>, vector<8x96xf32>
    tpu.vector_store %arg13[%c0_154, %c480_155], %235 {strides = array<i32>} : memref<8x864xf32, #tpu.memory_space<vmem>>, vector<8x96xf32>,
    %c0_156 = arith.constant 0 : index
    %c720_157 = arith.constant 720 : index
    %237 = vector.load %arg12[%c0_156, %c720_157] : memref<8x1296xf32, #tpu.memory_space<vmem>>, vector<8x288xf32>
    %238 = arith.truncf %237 : vector<8x288xf32> to vector<8x288xbf16>
    %cst_158 = arith.constant dense<0.000000e+00> : vector<8x96xf32>
    %239 = tpu.matmul %238, %1, %cst_158 {dimension_numbers = #tpu.dot_dimension_numbers<[1], [0], [0], [1], [0, 0, 1, 1], [], []>} : vector<8x288xbf16>, vector<288x96xbf16>, vector<8x96xf32> -> vector<8x96xf32>
    %240 = arith.addf %239, %9 : vector<8x96xf32>
    %cst_159 = arith.constant 0.000000e+00 : f32
    %241 = vector.broadcast %cst_159 : f32 to vector<8x96xf32>
    %242 = arith.maximumf %240, %241 : vector<8x96xf32>
    %c0_160 = arith.constant 0 : index
    %c576_161 = arith.constant 576 : index
    %243 = vector.load %arg13[%c0_160, %c576_161] : memref<8x864xf32, #tpu.memory_space<vmem>>, vector<8x96xf32>
    tpu.vector_store %arg13[%c0_160, %c576_161], %242 {strides = array<i32>} : memref<8x864xf32, #tpu.memory_space<vmem>>, vector<8x96xf32>,
    %c0_162 = arith.constant 0 : index
    %c864_163 = arith.constant 864 : index
    %244 = vector.load %arg12[%c0_162, %c864_163] : memref<8x1296xf32, #tpu.memory_space<vmem>>, vector<8x288xf32>
    %245 = arith.truncf %244 : vector<8x288xf32> to vector<8x288xbf16>
    %cst_164 = arith.constant dense<0.000000e+00> : vector<8x96xf32>
    %246 = tpu.matmul %245, %1, %cst_164 {dimension_numbers = #tpu.dot_dimension_numbers<[1], [0], [0], [1], [0, 0, 1, 1], [], []>} : vector<8x288xbf16>, vector<288x96xbf16>, vector<8x96xf32> -> vector<8x96xf32>
    %247 = arith.addf %246, %9 : vector<8x96xf32>
    %cst_165 = arith.constant 0.000000e+00 : f32
    %248 = vector.broadcast %cst_165 : f32 to vector<8x96xf32>
    %249 = arith.maximumf %247, %248 : vector<8x96xf32>
    %c0_166 = arith.constant 0 : index
    %c672_167 = arith.constant 672 : index
    %250 = vector.load %arg13[%c0_166, %c672_167] : memref<8x864xf32, #tpu.memory_space<vmem>>, vector<8x96xf32>
    tpu.vector_store %arg13[%c0_166, %c672_167], %249 {strides = array<i32>} : memref<8x864xf32, #tpu.memory_space<vmem>>, vector<8x96xf32>,
    %c0_168 = arith.constant 0 : index
    %c1008_169 = arith.constant 1008 : index
    %251 = vector.load %arg12[%c0_168, %c1008_169] : memref<8x1296xf32, #tpu.memory_space<vmem>>, vector<8x288xf32>
    %252 = arith.truncf %251 : vector<8x288xf32> to vector<8x288xbf16>
    %cst_170 = arith.constant dense<0.000000e+00> : vector<8x96xf32>
    %253 = tpu.matmul %252, %1, %cst_170 {dimension_numbers = #tpu.dot_dimension_numbers<[1], [0], [0], [1], [0, 0, 1, 1], [], []>} : vector<8x288xbf16>, vector<288x96xbf16>, vector<8x96xf32> -> vector<8x96xf32>
    %254 = arith.addf %253, %9 : vector<8x96xf32>
    %cst_171 = arith.constant 0.000000e+00 : f32
    %255 = vector.broadcast %cst_171 : f32 to vector<8x96xf32>
    %256 = arith.maximumf %254, %255 : vector<8x96xf32>
    %c0_172 = arith.constant 0 : index
    %c768_173 = arith.constant 768 : index
    %257 = vector.load %arg13[%c0_172, %c768_173] : memref<8x864xf32, #tpu.memory_space<vmem>>, vector<8x96xf32>
    tpu.vector_store %arg13[%c0_172, %c768_173], %256 {strides = array<i32>} : memref<8x864xf32, #tpu.memory_space<vmem>>, vector<8x96xf32>,
    %c0_174 = arith.constant 0 : index
    %c0_175 = arith.constant 0 : index
    %258 = vector.load %arg13[%c0_174, %c0_175] : memref<8x864xf32, #tpu.memory_space<vmem>>, vector<8x576xf32>
    %259 = arith.truncf %258 : vector<8x576xf32> to vector<8x576xbf16>
    %cst_176 = arith.constant dense<0.000000e+00> : vector<8x192xf32>
    %260 = tpu.matmul %259, %2, %cst_176 {dimension_numbers = #tpu.dot_dimension_numbers<[1], [0], [0], [1], [0, 0, 1, 1], [], []>} : vector<8x576xbf16>, vector<576x192xbf16>, vector<8x192xf32> -> vector<8x192xf32>
    %261 = arith.addf %260, %12 : vector<8x192xf32>
    %cst_177 = arith.constant 0.000000e+00 : f32
    %262 = vector.broadcast %cst_177 : f32 to vector<8x192xf32>
    %263 = arith.maximumf %261, %262 : vector<8x192xf32>
    %c0_178 = arith.constant 0 : index
    %c0_179 = arith.constant 0 : index
    %264 = vector.load %arg10[%c0_178, %c0_179] : memref<8x384xf32, #tpu.memory_space<vmem>>, vector<8x192xf32>
    tpu.vector_store %arg10[%c0_178, %c0_179], %263 {strides = array<i32>} : memref<8x384xf32, #tpu.memory_space<vmem>>, vector<8x192xf32>,
    %c0_180 = arith.constant 0 : index
    %c288_181 = arith.constant 288 : index
    %265 = vector.load %arg13[%c0_180, %c288_181] : memref<8x864xf32, #tpu.memory_space<vmem>>, vector<8x576xf32>
    %266 = arith.truncf %265 : vector<8x576xf32> to vector<8x576xbf16>
    %cst_182 = arith.constant dense<0.000000e+00> : vector<8x192xf32>
    %267 = tpu.matmul %266, %2, %cst_182 {dimension_numbers = #tpu.dot_dimension_numbers<[1], [0], [0], [1], [0, 0, 1, 1], [], []>} : vector<8x576xbf16>, vector<576x192xbf16>, vector<8x192xf32> -> vector<8x192xf32>
    %268 = arith.addf %267, %12 : vector<8x192xf32>
    %cst_183 = arith.constant 0.000000e+00 : f32
    %269 = vector.broadcast %cst_183 : f32 to vector<8x192xf32>
    %270 = arith.maximumf %268, %269 : vector<8x192xf32>
    %c0_184 = arith.constant 0 : index
    %c192_185 = arith.constant 192 : index
    %271 = vector.load %arg10[%c0_184, %c192_185] : memref<8x384xf32, #tpu.memory_space<vmem>>, vector<8x192xf32>
    tpu.vector_store %arg10[%c0_184, %c192_185], %270 {strides = array<i32>} : memref<8x384xf32, #tpu.memory_space<vmem>>, vector<8x192xf32>,
    %c0_186 = arith.constant 0 : index
    %c0_187 = arith.constant 0 : index
    %272 = vector.load %arg10[%c0_186, %c0_187] : memref<8x384xf32, #tpu.memory_space<vmem>>, vector<8x384xf32>
    %273 = arith.truncf %272 : vector<8x384xf32> to vector<8x384xbf16>
    %cst_188 = arith.constant dense<0.000000e+00> : vector<8x128xf32>
    %274 = tpu.matmul %273, %3, %cst_188 {dimension_numbers = #tpu.dot_dimension_numbers<[1], [0], [0], [1], [0, 0, 1, 1], [], []>} : vector<8x384xbf16>, vector<384x128xbf16>, vector<8x128xf32> -> vector<8x128xf32>
    %275 = arith.addf %274, %15 : vector<8x128xf32>
    %c0_189 = arith.constant 0 : index
    %c0_190 = arith.constant 0 : index
    %276 = vector.load %arg11[%c0_189, %c0_190] : memref<8x128xf32, #tpu.memory_space<vmem>>, vector<8x128xf32>
    tpu.vector_store %arg11[%c0_189, %c0_190], %275 {strides = array<i32>} : memref<8x128xf32, #tpu.memory_space<vmem>>, vector<8x128xf32>,
    return
  }
  func.func @transform_0(%arg0: i32) -> (i32, i32) {
    %c0_i32 = arith.constant 0 : i32
    %c0_i32_0 = arith.constant 0 : i32
    return %arg0, %c0_i32 : i32, i32
  }
  func.func @transform_1(%arg0: i32) -> (i32, i32) {
    %c0_i32 = arith.constant 0 : i32
    %c0_i32_0 = arith.constant 0 : i32
    %c0_i32_1 = arith.constant 0 : i32
    return %c0_i32, %c0_i32_0 : i32, i32
  }
  func.func @transform_2(%arg0: i32) -> (i32, i32) {
    %c0_i32 = arith.constant 0 : i32
    %c0_i32_0 = arith.constant 0 : i32
    %c0_i32_1 = arith.constant 0 : i32
    return %c0_i32, %c0_i32_0 : i32, i32
  }
  func.func @transform_3(%arg0: i32) -> (i32, i32) {
    %c0_i32 = arith.constant 0 : i32
    %c0_i32_0 = arith.constant 0 : i32
    %c0_i32_1 = arith.constant 0 : i32
    return %c0_i32, %c0_i32_0 : i32, i32
  }
  func.func @transform_4(%arg0: i32) -> (i32, i32) {
    %c0_i32 = arith.constant 0 : i32
    %c0_i32_0 = arith.constant 0 : i32
    %c0_i32_1 = arith.constant 0 : i32
    return %c0_i32, %c0_i32_0 : i32, i32
  }
  func.func @transform_5(%arg0: i32) -> (i32, i32) {
    %c0_i32 = arith.constant 0 : i32
    %c0_i32_0 = arith.constant 0 : i32
    %c0_i32_1 = arith.constant 0 : i32
    return %c0_i32, %c0_i32_0 : i32, i32
  }
  func.func @transform_6(%arg0: i32) -> (i32, i32) {
    %c0_i32 = arith.constant 0 : i32
    %c0_i32_0 = arith.constant 0 : i32
    %c0_i32_1 = arith.constant 0 : i32
    return %c0_i32, %c0_i32_0 : i32, i32
  }
  func.func @transform_7(%arg0: i32) -> (i32, i32) {
    %c0_i32 = arith.constant 0 : i32
    %c0_i32_0 = arith.constant 0 : i32
    %c0_i32_1 = arith.constant 0 : i32
    return %c0_i32, %c0_i32_0 : i32, i32
  }
  func.func @transform_8(%arg0: i32) -> (i32, i32) {
    %c0_i32 = arith.constant 0 : i32
    %c0_i32_0 = arith.constant 0 : i32
    %c0_i32_1 = arith.constant 0 : i32
    return %c0_i32, %c0_i32_0 : i32, i32
  }
  func.func @transform_9(%arg0: i32) -> (i32, i32) {
    %c0_i32 = arith.constant 0 : i32
    %c0_i32_0 = arith.constant 0 : i32
    return %arg0, %c0_i32 : i32, i32
  }
  func.func @transform_10(%arg0: i32) -> (i32, i32) {
    %c0_i32 = arith.constant 0 : i32
    %c0_i32_0 = arith.constant 0 : i32
    return %arg0, %c0_i32 : i32, i32
  }
}

</mosaic_0001>

<llo_original>
// kernel: cnn_reduce_filters_forward.1
$region0: #{cnn_reduce_filters_forward.1}
  #allocation0 [shape = 'u32[]', space=smem, size = 0x4, offset = 0x4, fixed_abs, tag = 'smem constant byte address 0x4 - core index']
  #allocation1 [shape = 'u32[144,128]{1,0:T(1,128)}', space=vmem, size = 0x12000, scoped, tag = 'internal scratch']
  #allocation2 [shape = 'f32[8,1296]{1,0:T(8,128)}', space=vmem, size = 0xb000, scoped, tag = 'scratch operand']
  #allocation3 [shape = 'f32[8,864]{1,0:T(8,128)}', space=vmem, size = 0x7000, scoped, tag = 'scratch operand']
  %s0 = inlined_call_operand.vmem [shape: f32[8,276], index: 0, kind: input, shape index: {}]
  %s1 = inlined_call_operand.vmem [shape: bf16[18,48], index: 1, kind: input, shape index: {}]
  %s2 = inlined_call_operand.vmem [shape: f32[1,48], index: 2, kind: input, shape index: {}]
  %s3 = inlined_call_operand.vmem [shape: bf16[288,96], index: 3, kind: input, shape index: {}]
  %s4 = inlined_call_operand.vmem [shape: f32[1,96], index: 4, kind: input, shape index: {}]
  %s5 = inlined_call_operand.vmem [shape: bf16[576,192], index: 5, kind: input, shape index: {}]
  %s6 = inlined_call_operand.vmem [shape: f32[1,192], index: 6, kind: input, shape index: {}]
  %s7 = inlined_call_operand.vmem [shape: bf16[384,128], index: 7, kind: input, shape index: {}]
  %s8 = inlined_call_operand.vmem [shape: f32[1,128], index: 8, kind: input, shape index: {}]
  %s9 = inlined_call_operand.vmem [shape: f32[8,384], index: 9, kind: output, shape index: {0}]
  %s10 = inlined_call_operand.vmem [shape: f32[8,128], index: 10, kind: output, shape index: {1}]
  %11 = xla_tuple %s9, %s10
  %s12 = sld [smem:[#allocation0]]
  $region54: #{cnn_reduce_filters_forward.1} parent=0
    _
  %s14 = ssub.s32 1, %s12
  %s15 = scalar_select 0, %s14, %s12
  // Predicated region
  $region2: #{cnn_reduce_filters_forward.1} parent=0 // pred_check
    _
  $region3: #{cnn_reduce_filters_forward.1} parent=0 // pred_check_branch
    %17 = sbr.rel (0) target = $region5
  $region4: #{cnn_reduce_filters_forward.1} parent=0 // pred_region
    _
  $region5: #{cnn_reduce_filters_forward.1} parent=0 // pred_fallthru
    _
  // Predicated region
  $region6: #{cnn_reduce_filters_forward.1} parent=0 // pred_check
    _
  $region7: #{cnn_reduce_filters_forward.1} parent=0 // pred_check_branch
    %19 = sbr.rel (0) target = $region9
  $region8: #{cnn_reduce_filters_forward.1} parent=0 // pred_region
    _
  $region9: #{cnn_reduce_filters_forward.1} parent=0 // pred_fallthru
    _
  // Predicated region
  $region10: #{cnn_reduce_filters_forward.1} parent=0 // pred_check
    _
  $region11: #{cnn_reduce_filters_forward.1} parent=0 // pred_check_branch
    %21 = sbr.rel (0) target = $region13
  $region12: #{cnn_reduce_filters_forward.1} parent=0 // pred_region
    _
  $region13: #{cnn_reduce_filters_forward.1} parent=0 // pred_fallthru
    _
  // Predicated region
  $region14: #{cnn_reduce_filters_forward.1} parent=0 // pred_check
    _
  $region15: #{cnn_reduce_filters_forward.1} parent=0 // pred_check_branch
    %23 = sbr.rel (0) target = $region17
  $region16: #{cnn_reduce_filters_forward.1} parent=0 // pred_region
    _
  $region17: #{cnn_reduce_filters_forward.1} parent=0 // pred_fallthru
    _
  // Predicated region
  $region18: #{cnn_reduce_filters_forward.1} parent=0 // pred_check
    _
  $region19: #{cnn_reduce_filters_forward.1} parent=0 // pred_check_branch
    %25 = sbr.rel (0) target = $region21
  $region20: #{cnn_reduce_filters_forward.1} parent=0 // pred_region
    _
  $region21: #{cnn_reduce_filters_forward.1} parent=0 // pred_fallthru
    _
  // Predicated region
  $region22: #{cnn_reduce_filters_forward.1} parent=0 // pred_check
    _
  $region23: #{cnn_reduce_filters_forward.1} parent=0 // pred_check_branch
    %27 = sbr.rel (0) target = $region25
  $region24: #{cnn_reduce_filters_forward.1} parent=0 // pred_region
    _
  $region25: #{cnn_reduce_filters_forward.1} parent=0 // pred_fallthru
    _
  // Predicated region
  $region26: #{cnn_reduce_filters_forward.1} parent=0 // pred_check
    _
  $region27: #{cnn_reduce_filters_forward.1} parent=0 // pred_check_branch
    %29 = sbr.rel (0) target = $region29
  $region28: #{cnn_reduce_filters_forward.1} parent=0 // pred_region
    _
  $region29: #{cnn_reduce_filters_forward.1} parent=0 // pred_fallthru
    _
  // Predicated region
  $region30: #{cnn_reduce_filters_forward.1} parent=0 // pred_check
    _
  $region31: #{cnn_reduce_filters_forward.1} parent=0 // pred_check_branch
    %31 = sbr.rel (0) target = $region33
  $region32: #{cnn_reduce_filters_forward.1} parent=0 // pred_region
    _
  $region33: #{cnn_reduce_filters_forward.1} parent=0 // pred_fallthru
    _
  // Predicated region
  $region34: #{cnn_reduce_filters_forward.1} parent=0 // pred_check
    _
  $region35: #{cnn_reduce_filters_forward.1} parent=0 // pred_check_branch
    %33 = sbr.rel (0) target = $region37
  $region36: #{cnn_reduce_filters_forward.1} parent=0 // pred_region
    _
  $region37: #{cnn_reduce_filters_forward.1} parent=0 // pred_fallthru
    _
  %v35 = vld [vmem:[%s1] sm:$0xf]
  %v36 = vld [vmem:[%s1 + $0x4] sm:$0xf]
  %v37 = vld [vmem:[%s1 + $0x8] sm:$0x1]
  %v38 = vld [vmem:[%s3] sm:$0xf]
  %v39 = vld [vmem:[%s3 + $0x4] sm:$0xf]
  %v40 = vld [vmem:[%s3 + $0x8] sm:$0xf]
  %v41 = vld [vmem:[%s3 + $0xc] sm:$0xf]
  %v42 = vld [vmem:[%s3 + $0x10] sm:$0xf]
  %v43 = vld [vmem:[%s3 + $0x14] sm:$0xf]
  %v44 = vld [vmem:[%s3 + $0x18] sm:$0xf]
  %v45 = vld [vmem:[%s3 + $0x1c] sm:$0xf]
  %v46 = vld [vmem:[%s3 + $0x20] sm:$0xf]
  %v47 = vld [vmem:[%s3 + $0x24] sm:$0xf]
  %v48 = vld [vmem:[%s3 + $0x28] sm:$0xf]
  %v49 = vld [vmem:[%s3 + $0x2c] sm:$0xf]
  %v50 = vld [vmem:[%s3 + $0x30] sm:$0xf]
  %v51 = vld [vmem:[%s3 + $0x34] sm:$0xf]
  %v52 = vld [vmem:[%s3 + $0x38] sm:$0xf]
  %v53 = vld [vmem:[%s3 + $0x3c] sm:$0xf]
  %v54 = vld [vmem:[%s3 + $0x40] sm:$0xf]
  %v55 = vld [vmem:[%s3 + $0x44] sm:$0xf]
  %v56 = vld [vmem:[%s3 + $0x48] sm:$0xf]
  %v57 = vld [vmem:[%s3 + $0x4c] sm:$0xf]
  %v58 = vld [vmem:[%s3 + $0x50] sm:$0xf]
  %v59 = vld [vmem:[%s3 + $0x54] sm:$0xf]
  %v60 = vld [vmem:[%s3 + $0x58] sm:$0xf]
  %v61 = vld [vmem:[%s3 + $0x5c] sm:$0xf]
  %v62 = vld [vmem:[%s3 + $0x60] sm:$0xf]
  %v63 = vld [vmem:[%s3 + $0x64] sm:$0xf]
  %v64 = vld [vmem:[%s3 + $0x68] sm:$0xf]
  %v65 = vld [vmem:[%s3 + $0x6c] sm:$0xf]
  %v66 = vld [vmem:[%s3 + $0x70] sm:$0xf]
  %v67 = vld [vmem:[%s3 + $0x74] sm:$0xf]
  %v68 = vld [vmem:[%s3 + $0x78] sm:$0xf]
  %v69 = vld [vmem:[%s3 + $0x7c] sm:$0xf]
  %v70 = vld [vmem:[%s3 + $0x80] sm:$0xf]
  %v71 = vld [vmem:[%s3 + $0x84] sm:$0xf]
  %v72 = vld [vmem:[%s3 + $0x88] sm:$0xf]
  %v73 = vld [vmem:[%s3 + $0x8c] sm:$0xf]
  %v74 = vld [vmem:[%s5] sm:$0xff]
  %v75 = vld [vmem:[%s5 + $0x8] sm:$0xff]
  %v76 = vld [vmem:[%s5 + $0x10] sm:$0xff]
  %v77 = vld [vmem:[%s5 + $0x18] sm:$0xff]
  %v78 = vld [vmem:[%s5 + $0x20] sm:$0xff]
  %v79 = vld [vmem:[%s5 + $0x28] sm:$0xff]
  %v80 = vld [vmem:[%s5 + $0x30] sm:$0xff]
  %v81 = vld [vmem:[%s5 + $0x38] sm:$0xff]
  %v82 = vld [vmem:[%s5 + $0x40] sm:$0xff]
  %v83 = vld [vmem:[%s5 + $0x48] sm:$0xff]
  %v84 = vld [vmem:[%s5 + $0x50] sm:$0xff]
  %v85 = vld [vmem:[%s5 + $0x58] sm:$0xff]
  %v86 = vld [vmem:[%s5 + $0x60] sm:$0xff]
  %v87 = vld [vmem:[%s5 + $0x68] sm:$0xff]
  %v88 = vld [vmem:[%s5 + $0x70] sm:$0xff]
  %v89 = vld [vmem:[%s5 + $0x78] sm:$0xff]
  %v90 = vld [vmem:[%s5 + $0x80] sm:$0xff]
  %v91 = vld [vmem:[%s5 + $0x88] sm:$0xff]
  %v92 = vld [vmem:[%s5 + $0x90] sm:$0xff]
  %v93 = vld [vmem:[%s5 + $0x98] sm:$0xff]
  %v94 = vld [vmem:[%s5 + $0xa0] sm:$0xff]
  %v95 = vld [vmem:[%s5 + $0xa8] sm:$0xff]
  %v96 = vld [vmem:[%s5 + $0xb0] sm:$0xff]
  %v97 = vld [vmem:[%s5 + $0xb8] sm:$0xff]
  %v98 = vld [vmem:[%s5 + $0xc0] sm:$0xff]
  %v99 = vld [vmem:[%s5 + $0xc8] sm:$0xff]
  %v100 = vld [vmem:[%s5 + $0xd0] sm:$0xff]
  %v101 = vld [vmem:[%s5 + $0xd8] sm:$0xff]
  %v102 = vld [vmem:[%s5 + $0xe0] sm:$0xff]
  %v103 = vld [vmem:[%s5 + $0xe8] sm:$0xff]
  %v104 = vld [vmem:[%s5 + $0xf0] sm:$0xff]
  %v105 = vld [vmem:[%s5 + $0xf8] sm:$0xff]
  %v106 = vld [vmem:[%s5 + $0x100] sm:$0xff]
  %v107 = vld [vmem:[%s5 + $0x108] sm:$0xff]
  %v108 = vld [vmem:[%s5 + $0x110] sm:$0xff]
  %v109 = vld [vmem:[%s5 + $0x118] sm:$0xff]
  %v110 = vld [vmem:[%s5 + $0x120] sm:$0xff]
  %v111 = vld [vmem:[%s5 + $0x128] sm:$0xff]
  %v112 = vld [vmem:[%s5 + $0x130] sm:$0xff]
  %v113 = vld [vmem:[%s5 + $0x138] sm:$0xff]
  %v114 = vld [vmem:[%s5 + $0x140] sm:$0xff]
  %v115 = vld [vmem:[%s5 + $0x148] sm:$0xff]
  %v116 = vld [vmem:[%s5 + $0x150] sm:$0xff]
  %v117 = vld [vmem:[%s5 + $0x158] sm:$0xff]
  %v118 = vld [vmem:[%s5 + $0x160] sm:$0xff]
  %v119 = vld [vmem:[%s5 + $0x168] sm:$0xff]
  %v120 = vld [vmem:[%s5 + $0x170] sm:$0xff]
  %v121 = vld [vmem:[%s5 + $0x178] sm:$0xff]
  %v122 = vld [vmem:[%s5 + $0x180] sm:$0xff]
  %v123 = vld [vmem:[%s5 + $0x188] sm:$0xff]
  %v124 = vld [vmem:[%s5 + $0x190] sm:$0xff]
  %v125 = vld [vmem:[%s5 + $0x198] sm:$0xff]
  %v126 = vld [vmem:[%s5 + $0x1a0] sm:$0xff]
  %v127 = vld [vmem:[%s5 + $0x1a8] sm:$0xff]
  %v128 = vld [vmem:[%s5 + $0x1b0] sm:$0xff]
  %v129 = vld [vmem:[%s5 + $0x1b8] sm:$0xff]
  %v130 = vld [vmem:[%s5 + $0x1c0] sm:$0xff]
  %v131 = vld [vmem:[%s5 + $0x1c8] sm:$0xff]
  %v132 = vld [vmem:[%s5 + $0x1d0] sm:$0xff]
  %v133 = vld [vmem:[%s5 + $0x1d8] sm:$0xff]
  %v134 = vld [vmem:[%s5 + $0x1e0] sm:$0xff]
  %v135 = vld [vmem:[%s5 + $0x1e8] sm:$0xff]
  %v136 = vld [vmem:[%s5 + $0x1f0] sm:$0xff]
  %v137 = vld [vmem:[%s5 + $0x1f8] sm:$0xff]
  %v138 = vld [vmem:[%s5 + $0x200] sm:$0xff]
  %v139 = vld [vmem:[%s5 + $0x208] sm:$0xff]
  %v140 = vld [vmem:[%s5 + $0x210] sm:$0xff]
  %v141 = vld [vmem:[%s5 + $0x218] sm:$0xff]
  %v142 = vld [vmem:[%s5 + $0x220] sm:$0xff]
  %v143 = vld [vmem:[%s5 + $0x228] sm:$0xff]
  %v144 = vld [vmem:[%s5 + $0x230] sm:$0xff]
  %v145 = vld [vmem:[%s5 + $0x238] sm:$0xff]
  %v146 = vld [vmem:[%s7] sm:$0xf]
  %v147 = vld [vmem:[%s7 + $0x4] sm:$0xf]
  %v148 = vld [vmem:[%s7 + $0x8] sm:$0xf]
  %v149 = vld [vmem:[%s7 + $0xc] sm:$0xf]
  %v150 = vld [vmem:[%s7 + $0x10] sm:$0xf]
  %v151 = vld [vmem:[%s7 + $0x14] sm:$0xf]
  %v152 = vld [vmem:[%s7 + $0x18] sm:$0xf]
  %v153 = vld [vmem:[%s7 + $0x1c] sm:$0xf]
  %v154 = vld [vmem:[%s7 + $0x20] sm:$0xf]
  %v155 = vld [vmem:[%s7 + $0x24] sm:$0xf]
  %v156 = vld [vmem:[%s7 + $0x28] sm:$0xf]
  %v157 = vld [vmem:[%s7 + $0x2c] sm:$0xf]
  %v158 = vld [vmem:[%s7 + $0x30] sm:$0xf]
  %v159 = vld [vmem:[%s7 + $0x34] sm:$0xf]
  %v160 = vld [vmem:[%s7 + $0x38] sm:$0xf]
  %v161 = vld [vmem:[%s7 + $0x3c] sm:$0xf]
  %v162 = vld [vmem:[%s7 + $0x40] sm:$0xf]
  %v163 = vld [vmem:[%s7 + $0x44] sm:$0xf]
  %v164 = vld [vmem:[%s7 + $0x48] sm:$0xf]
  %v165 = vld [vmem:[%s7 + $0x4c] sm:$0xf]
  %v166 = vld [vmem:[%s7 + $0x50] sm:$0xf]
  %v167 = vld [vmem:[%s7 + $0x54] sm:$0xf]
  %v168 = vld [vmem:[%s7 + $0x58] sm:$0xf]
  %v169 = vld [vmem:[%s7 + $0x5c] sm:$0xf]
  %v170 = vld [vmem:[%s7 + $0x60] sm:$0xf]
  %v171 = vld [vmem:[%s7 + $0x64] sm:$0xf]
  %v172 = vld [vmem:[%s7 + $0x68] sm:$0xf]
  %v173 = vld [vmem:[%s7 + $0x6c] sm:$0xf]
  %v174 = vld [vmem:[%s7 + $0x70] sm:$0xf]
  %v175 = vld [vmem:[%s7 + $0x74] sm:$0xf]
  %v176 = vld [vmem:[%s7 + $0x78] sm:$0xf]
  %v177 = vld [vmem:[%s7 + $0x7c] sm:$0xf]
  %v178 = vld [vmem:[%s7 + $0x80] sm:$0xf]
  %v179 = vld [vmem:[%s7 + $0x84] sm:$0xf]
  %v180 = vld [vmem:[%s7 + $0x88] sm:$0xf]
  %v181 = vld [vmem:[%s7 + $0x8c] sm:$0xf]
  %v182 = vld [vmem:[%s7 + $0x90] sm:$0xf]
  %v183 = vld [vmem:[%s7 + $0x94] sm:$0xf]
  %v184 = vld [vmem:[%s7 + $0x98] sm:$0xf]
  %v185 = vld [vmem:[%s7 + $0x9c] sm:$0xf]
  %v186 = vld [vmem:[%s7 + $0xa0] sm:$0xf]
  %v187 = vld [vmem:[%s7 + $0xa4] sm:$0xf]
  %v188 = vld [vmem:[%s7 + $0xa8] sm:$0xf]
  %v189 = vld [vmem:[%s7 + $0xac] sm:$0xf]
  %v190 = vld [vmem:[%s7 + $0xb0] sm:$0xf]
  %v191 = vld [vmem:[%s7 + $0xb4] sm:$0xf]
  %v192 = vld [vmem:[%s7 + $0xb8] sm:$0xf]
  %v193 = vld [vmem:[%s7 + $0xbc] sm:$0xf]
  %v194 = vld [vmem:[%s2] sm:$0x1]
  %v196 = vlaneseq
  %v197 = vshrl.u32 %v196, 7
  %v198 = vsub.s32 0, %v197
  %v199 = vrot.slane %v194, %v198
  %v201 = vld [vmem:[%s4] sm:$0x1]
  %v203 = vlaneseq
  %v204 = vshrl.u32 %v203, 7
  %v205 = vsub.s32 0, %v204
  %v206 = vrot.slane %v201, %v205
  %v208 = vld [vmem:[%s6] sm:$0x3]
  %v210 = vlaneseq
  %v211 = vshrl.u32 %v210, 7
  %v212 = vsub.s32 0, %v211
  %v213 = vrot.slane %v208, %v212
  %v214 = vlaneseq
  %v215 = vshrl.u32 %v214, 7
  %v216 = vsub.s32 1, %v215
  %v217 = vrot.slane %v208, %v216
  %v220 = vld [vmem:[%s8] sm:$0x1]
  %v222 = vlaneseq
  %v223 = vshrl.u32 %v222, 7
  %v224 = vsub.s32 0, %v223
  %v225 = vrot.slane %v220, %v224
  %vm227 = vcmask 392192
  %228 = vst.msk [vmem:[#allocation2] sm:$0xff] %vm227, 0.0
  %vm229 = vcmask 785408
  %230 = vst.msk [vmem:[#allocation3] sm:$0xff] %vm229, 0.0
  %v231 = vld [vmem:[%s0] sm:$0xff]
  %v232 = vpack.c.bf16 %v231, %v231
  %v236 = vunpack.c.l.b16 %v35
  %v237 = vunpack.c.l.b16 %v36
  %v238 = vunpack.c.l.b16 %v37
  %v239 = vpack.c.b16 %v237, %v236
  %v240 = vpack.c.b16 %v238, %v238
  %vm242 = vcmask 146432
  %v244 = vsel %vm242, %v232, 0
  %vm246 = vcmask 1040384
  %v248 = vsel %vm246, %v240, 0
  %250 = vmatprep.subr.bf16.mxu0 0
  %251 = vmatpush1.bf16.msra.mxu0 %v239
  %252 = vmatprep.subr.bf16.mxu0 0
  %253 = vmatpush1.bf16.msra.mxu0 %v248
  %254 = vmatprep.subr.bf16.mxu0 0
  %255 = vmatpush1.bf16.msra.mxu0 0
  %256 = vmatprep.subr.bf16.mxu0 0
  %257 = vmatpush1.bf16.msra.mxu0 0
  %258 = vmatprep.subr.bf16.mxu0 0
  %259 = vmatpush1.bf16.msra.mxu0 0
  %260 = vmatprep.subr.bf16.mxu0 0
  %261 = vmatpush1.bf16.msra.mxu0 0
  %262 = vmatprep.subr.bf16.mxu0 0
  %263 = vmatpush1.bf16.msra.mxu0 0
  %264 = vmatprep.subr.bf16.mxu0 0
  %265 = vmatpush1.bf16.msra.mxu0 0
  %266 = vmatprep.subr.bf16.mxu0 0
  %267 = vmatpush1.bf16.msra.mxu0 0
  %268 = vmatprep.subr.bf16.mxu0 0
  %269 = vmatpush1.bf16.msra.mxu0 0
  %270 = vmatprep.subr.bf16.mxu0 0
  %271 = vmatpush1.bf16.msra.mxu0 0
  %272 = vmatprep.subr.bf16.mxu0 0
  %273 = vmatpush1.bf16.msra.mxu0 0
  %274 = vmatprep.subr.bf16.mxu0 0
  %275 = vmatpush1.bf16.msra.mxu0 0
  %276 = vmatprep.subr.bf16.mxu0 0
  %277 = vmatpush1.bf16.msra.mxu0 0
  %278 = vmatprep.subr.bf16.mxu0 0
  %279 = vmatpush1.bf16.msra.mxu0 0
  %280 = vmatprep.subr.bf16.mxu0 0
  %281 = vmatpush1.bf16.msra.mxu0 0
  %282 = vmatprep.mubr.bf16.mxu0 0
  %283 = vmatmul.mubr.bf16.gmra.mrb[0].mxu0 %v244
  %v284 = vpop.f32.mrb[0].mxu0
  %v285 = vadd.f32 %v199, %v284
  %v286 = vpop.f32.mrb[0].mxu0
  %v287 = vpop.f32.mrb[0].mxu0
  %v288 = vpop.f32.mrb[0].mxu0
  %289 = vdwg.mxu0
  %v290 = vmax.f32 %v285, 0.0
  %292 = vrot.lane.b32.xlu0 %v290, 48
  %v293 = vpop.permute.xlu0 %292
  %vm295 = vcmask 785792
  %296 = vst.msk [vmem:[#allocation2] sm:$0xff] %vm295, %v293
  %v297 = vld [vmem:[%s0] sm:$0xff]
  %v298 = vpack.c.bf16 %v297, %v297
  %300 = vrot.lane.b32.xlu0 %v298, 119
  %v301 = vpop.permute.xlu0 %300
  %v303 = vsel %vm242, %v301, 0
  %305 = vmatprep.subr.bf16.mxu0 0
  %306 = vmatpush1.bf16.msra.mxu0 %v239
  %307 = vmatprep.subr.bf16.mxu0 0
  %308 = vmatpush1.bf16.msra.mxu0 %v248
  %309 = vmatprep.subr.bf16.mxu0 0
  %310 = vmatpush1.bf16.msra.mxu0 0
  %311 = vmatprep.subr.bf16.mxu0 0
  %312 = vmatpush1.bf16.msra.mxu0 0
  %313 = vmatprep.subr.bf16.mxu0 0
  %314 = vmatpush1.bf16.msra.mxu0 0
  %315 = vmatprep.subr.bf16.mxu0 0
  %316 = vmatpush1.bf16.msra.mxu0 0
  %317 = vmatprep.subr.bf16.mxu0 0
  %318 = vmatpush1.bf16.msra.mxu0 0
  %319 = vmatprep.subr.bf16.mxu0 0
  %320 = vmatpush1.bf16.msra.mxu0 0
  %321 = vmatprep.subr.bf16.mxu0 0
  %322 = vmatpush1.bf16.msra.mxu0 0
  %323 = vmatprep.subr.bf16.mxu0 0
  %324 = vmatpush1.bf16.msra.mxu0 0
  %325 = vmatprep.subr.bf16.mxu0 0
  %326 = vmatpush1.bf16.msra.mxu0 0
  %327 = vmatprep.subr.bf16.mxu0 0
  %328 = vmatpush1.bf16.msra.mxu0 0
  %329 = vmatprep.subr.bf16.mxu0 0
  %330 = vmatpush1.bf16.msra.mxu0 0
  %331 = vmatprep.subr.bf16.mxu0 0
  %332 = vmatpush1.bf16.msra.mxu0 0
  %333 = vmatprep.subr.bf16.mxu0 0
  %334 = vmatpush1.bf16.msra.mxu0 0
  %335 = vmatprep.subr.bf16.mxu0 0
  %336 = vmatpush1.bf16.msra.mxu0 0
  %337 = vmatprep.mubr.bf16.mxu0 0
  %338 = vmatmul.mubr.bf16.gmra.mrb[0].mxu0 %v303
  %v339 = vpop.f32.mrb[0].mxu0
  %v340 = vadd.f32 %v199, %v339
  %v341 = vpop.f32.mrb[0].mxu0
  %v342 = vpop.f32.mrb[0].mxu0
  %v343 = vpop.f32.mrb[0].mxu0
  %344 = vdwg.mxu0
  %v345 = vmax.f32 %v340, 0.0
  %347 = vrot.lane.b32.xlu0 %v345, 96
  %v348 = vpop.permute.xlu0 %347
  %vm350 = vcmask 1048320
  %351 = vst.msk [vmem:[#allocation2] sm:$0xff] %vm350, %v348
  %vm352 = vcmask 130048
  %353 = vst.msk [vmem:[#allocation2 + $0x8] sm:$0xff] %vm352, %v348
  %v354 = vld [vmem:[%s0] sm:$0xff]
  %v355 = vpack.c.bf16 %v354, %v354
  %357 = vrot.lane.b32.xlu0 %v355, 110
  %v358 = vpop.permute.xlu0 %357
  %v360 = vsel %vm242, %v358, 0
  %362 = vmatprep.subr.bf16.mxu0 0
  %363 = vmatpush1.bf16.msra.mxu0 %v239
  %364 = vmatprep.subr.bf16.mxu0 0
  %365 = vmatpush1.bf16.msra.mxu0 %v248
  %366 = vmatprep.subr.bf16.mxu0 0
  %367 = vmatpush1.bf16.msra.mxu0 0
  %368 = vmatprep.subr.bf16.mxu0 0
  %369 = vmatpush1.bf16.msra.mxu0 0
  %370 = vmatprep.subr.bf16.mxu0 0
  %371 = vmatpush1.bf16.msra.mxu0 0
  %372 = vmatprep.subr.bf16.mxu0 0
  %373 = vmatpush1.bf16.msra.mxu0 0
  %374 = vmatprep.subr.bf16.mxu0 0
  %375 = vmatpush1.bf16.msra.mxu0 0
  %376 = vmatprep.subr.bf16.mxu0 0
  %377 = vmatpush1.bf16.msra.mxu0 0
  %378 = vmatprep.subr.bf16.mxu0 0
  %379 = vmatpush1.bf16.msra.mxu0 0
  %380 = vmatprep.subr.bf16.mxu0 0
  %381 = vmatpush1.bf16.msra.mxu0 0
  %382 = vmatprep.subr.bf16.mxu0 0
  %383 = vmatpush1.bf16.msra.mxu0 0
  %384 = vmatprep.subr.bf16.mxu0 0
  %385 = vmatpush1.bf16.msra.mxu0 0
  %386 = vmatprep.subr.bf16.mxu0 0
  %387 = vmatpush1.bf16.msra.mxu0 0
  %388 = vmatprep.subr.bf16.mxu0 0
  %389 = vmatpush1.bf16.msra.mxu0 0
  %390 = vmatprep.subr.bf16.mxu0 0
  %391 = vmatpush1.bf16.msra.mxu0 0
  %392 = vmatprep.subr.bf16.mxu0 0
  %393 = vmatpush1.bf16.msra.mxu0 0
  %394 = vmatprep.mubr.bf16.mxu0 0
  %395 = vmatmul.mubr.bf16.gmra.mrb[0].mxu0 %v360
  %v396 = vpop.f32.mrb[0].mxu0
  %v397 = vadd.f32 %v199, %v396
  %v398 = vpop.f32.mrb[0].mxu0
  %v399 = vpop.f32.mrb[0].mxu0
  %v400 = vpop.f32.mrb[0].mxu0
  %401 = vdwg.mxu0
  %v402 = vmax.f32 %v397, 0.0
  %404 = vrot.lane.b32.xlu0 %v402, 16
  %v405 = vpop.permute.xlu0 %404
  %vm407 = vcmask 523392
  %408 = vst.msk [vmem:[#allocation2 + $0x8] sm:$0xff] %vm407, %v405
  %v409 = vld [vmem:[%s0] sm:$0xff]
  %v410 = vpack.c.bf16 %v409, %v409
  %412 = vrot.lane.b32.xlu0 %v410, 101
  %v413 = vpop.permute.xlu0 %412
  %v415 = vsel %vm242, %v413, 0
  %417 = vmatprep.subr.bf16.mxu0 0
  %418 = vmatpush1.bf16.msra.mxu0 %v239
  %419 = vmatprep.subr.bf16.mxu0 0
  %420 = vmatpush1.bf16.msra.mxu0 %v248
  %421 = vmatprep.subr.bf16.mxu0 0
  %422 = vmatpush1.bf16.msra.mxu0 0
  %423 = vmatprep.subr.bf16.mxu0 0
  %424 = vmatpush1.bf16.msra.mxu0 0
  %425 = vmatprep.subr.bf16.mxu0 0
  %426 = vmatpush1.bf16.msra.mxu0 0
  %427 = vmatprep.subr.bf16.mxu0 0
  %428 = vmatpush1.bf16.msra.mxu0 0
  %429 = vmatprep.subr.bf16.mxu0 0
  %430 = vmatpush1.bf16.msra.mxu0 0
  %431 = vmatprep.subr.bf16.mxu0 0
  %432 = vmatpush1.bf16.msra.mxu0 0
  %433 = vmatprep.subr.bf16.mxu0 0
  %434 = vmatpush1.bf16.msra.mxu0 0
  %435 = vmatprep.subr.bf16.mxu0 0
  %436 = vmatpush1.bf16.msra.mxu0 0
  %437 = vmatprep.subr.bf16.mxu0 0
  %438 = vmatpush1.bf16.msra.mxu0 0
  %439 = vmatprep.subr.bf16.mxu0 0
  %440 = vmatpush1.bf16.msra.mxu0 0
  %441 = vmatprep.subr.bf16.mxu0 0
  %442 = vmatpush1.bf16.msra.mxu0 0
  %443 = vmatprep.subr.bf16.mxu0 0
  %444 = vmatpush1.bf16.msra.mxu0 0
  %445 = vmatprep.subr.bf16.mxu0 0
  %446 = vmatpush1.bf16.msra.mxu0 0
  %447 = vmatprep.subr.bf16.mxu0 0
  %448 = vmatpush1.bf16.msra.mxu0 0
  %449 = vmatprep.mubr.bf16.mxu0 0
  %450 = vmatmul.mubr.bf16.gmra.mrb[0].mxu0 %v415
  %v451 = vpop.f32.mrb[0].mxu0
  %v452 = vadd.f32 %v199, %v451
  %v453 = vpop.f32.mrb[0].mxu0
  %v454 = vpop.f32.mrb[0].mxu0
  %v455 = vpop.f32.mrb[0].mxu0
  %456 = vdwg.mxu0
  %v457 = vmax.f32 %v452, 0.0
  %459 = vrot.lane.b32.xlu0 %v457, 64
  %v460 = vpop.permute.xlu0 %459
  %vm462 = vcmask 916992
  %463 = vst.msk [vmem:[#allocation2 + $0x8] sm:$0xff] %vm462, %v460
  %v464 = vld [vmem:[%s0] sm:$0xff]
  %v465 = vpack.c.bf16 %v464, %v464
  %467 = vrot.lane.b32.xlu0 %v465, 92
  %v468 = vpop.permute.xlu0 %467
  %v470 = vsel %vm242, %v468, 0
  %472 = vmatprep.subr.bf16.mxu0 0
  %473 = vmatpush1.bf16.msra.mxu0 %v239
  %474 = vmatprep.subr.bf16.mxu0 0
  %475 = vmatpush1.bf16.msra.mxu0 %v248
  %476 = vmatprep.subr.bf16.mxu0 0
  %477 = vmatpush1.bf16.msra.mxu0 0
  %478 = vmatprep.subr.bf16.mxu0 0
  %479 = vmatpush1.bf16.msra.mxu0 0
  %480 = vmatprep.subr.bf16.mxu0 0
  %481 = vmatpush1.bf16.msra.mxu0 0
  %482 = vmatprep.subr.bf16.mxu0 0
  %483 = vmatpush1.bf16.msra.mxu0 0
  %484 = vmatprep.subr.bf16.mxu0 0
  %485 = vmatpush1.bf16.msra.mxu0 0
  %486 = vmatprep.subr.bf16.mxu0 0
  %487 = vmatpush1.bf16.msra.mxu0 0
  %488 = vmatprep.subr.bf16.mxu0 0
  %489 = vmatpush1.bf16.msra.mxu0 0
  %490 = vmatprep.subr.bf16.mxu0 0
  %491 = vmatpush1.bf16.msra.mxu0 0
  %492 = vmatprep.subr.bf16.mxu0 0
  %493 = vmatpush1.bf16.msra.mxu0 0
  %494 = vmatprep.subr.bf16.mxu0 0
  %495 = vmatpush1.bf16.msra.mxu0 0
  %496 = vmatprep.subr.bf16.mxu0 0
  %497 = vmatpush1.bf16.msra.mxu0 0
  %498 = vmatprep.subr.bf16.mxu0 0
  %499 = vmatpush1.bf16.msra.mxu0 0
  %500 = vmatprep.subr.bf16.mxu0 0
  %501 = vmatpush1.bf16.msra.mxu0 0
  %502 = vmatprep.subr.bf16.mxu0 0
  %503 = vmatpush1.bf16.msra.mxu0 0
  %504 = vmatprep.mubr.bf16.mxu0 0
  %505 = vmatmul.mubr.bf16.gmra.mrb[0].mxu0 %v470
  %v506 = vpop.f32.mrb[0].mxu0
  %v507 = vadd.f32 %v199, %v506
  %v508 = vpop.f32.mrb[0].mxu0
  %v509 = vpop.f32.mrb[0].mxu0
  %v510 = vpop.f32.mrb[0].mxu0
  %511 = vdwg.mxu0
  %v512 = vmax.f32 %v507, 0.0
  %514 = vrot.lane.b32.xlu0 %v512, 112
  %v515 = vpop.permute.xlu0 %514
  %vm517 = vcmask 1048448
  %518 = vst.msk [vmem:[#allocation2 + $0x8] sm:$0xff] %vm517, %v515
  %vm519 = vcmask 261120
  %520 = vst.msk [vmem:[#allocation2 + $0x10] sm:$0xff] %vm519, %v515
  %v521 = vld [vmem:[%s0] sm:$0xff]
  %v522 = vpack.c.bf16 %v521, %v521
  %524 = vrot.lane.b32.xlu0 %v522, 83
  %v525 = vpop.permute.xlu0 %524
  %v527 = vsel %vm242, %v525, 0
  %529 = vmatprep.subr.bf16.mxu0 0
  %530 = vmatpush1.bf16.msra.mxu0 %v239
  %531 = vmatprep.subr.bf16.mxu0 0
  %532 = vmatpush1.bf16.msra.mxu0 %v248
  %533 = vmatprep.subr.bf16.mxu0 0
  %534 = vmatpush1.bf16.msra.mxu0 0
  %535 = vmatprep.subr.bf16.mxu0 0
  %536 = vmatpush1.bf16.msra.mxu0 0
  %537 = vmatprep.subr.bf16.mxu0 0
  %538 = vmatpush1.bf16.msra.mxu0 0
  %539 = vmatprep.subr.bf16.mxu0 0
  %540 = vmatpush1.bf16.msra.mxu0 0
  %541 = vmatprep.subr.bf16.mxu0 0
  %542 = vmatpush1.bf16.msra.mxu0 0
  %543 = vmatprep.subr.bf16.mxu0 0
  %544 = vmatpush1.bf16.msra.mxu0 0
  %545 = vmatprep.subr.bf16.mxu0 0
  %546 = vmatpush1.bf16.msra.mxu0 0
  %547 = vmatprep.subr.bf16.mxu0 0
  %548 = vmatpush1.bf16.msra.mxu0 0
  %549 = vmatprep.subr.bf16.mxu0 0
  %550 = vmatpush1.bf16.msra.mxu0 0
  %551 = vmatprep.subr.bf16.mxu0 0
  %552 = vmatpush1.bf16.msra.mxu0 0
  %553 = vmatprep.subr.bf16.mxu0 0
  %554 = vmatpush1.bf16.msra.mxu0 0
  %555 = vmatprep.subr.bf16.mxu0 0
  %556 = vmatpush1.bf16.msra.mxu0 0
  %557 = vmatprep.subr.bf16.mxu0 0
  %558 = vmatpush1.bf16.msra.mxu0 0
  %559 = vmatprep.subr.bf16.mxu0 0
  %560 = vmatpush1.bf16.msra.mxu0 0
  %561 = vmatprep.mubr.bf16.mxu0 0
  %562 = vmatmul.mubr.bf16.gmra.mrb[0].mxu0 %v527
  %v563 = vpop.f32.mrb[0].mxu0
  %v564 = vadd.f32 %v199, %v563
  %v565 = vpop.f32.mrb[0].mxu0
  %v566 = vpop.f32.mrb[0].mxu0
  %v567 = vpop.f32.mrb[0].mxu0
  %568 = vdwg.mxu0
  %v569 = vmax.f32 %v564, 0.0
  %571 = vrot.lane.b32.xlu0 %v569, 32
  %v572 = vpop.permute.xlu0 %571
  %vm574 = vcmask 654592
  %575 = vst.msk [vmem:[#allocation2 + $0x10] sm:$0xff] %vm574, %v572
  %v576 = vld [vmem:[%s0] sm:$0xff]
  %v577 = vpack.c.bf16 %v576, %v576
  %579 = vrot.lane.b32.xlu0 %v577, 74
  %v580 = vpop.permute.xlu0 %579
  %v582 = vsel %vm242, %v580, 0
  %584 = vmatprep.subr.bf16.mxu0 0
  %585 = vmatpush1.bf16.msra.mxu0 %v239
  %586 = vmatprep.subr.bf16.mxu0 0
  %587 = vmatpush1.bf16.msra.mxu0 %v248
  %588 = vmatprep.subr.bf16.mxu0 0
  %589 = vmatpush1.bf16.msra.mxu0 0
  %590 = vmatprep.subr.bf16.mxu0 0
  %591 = vmatpush1.bf16.msra.mxu0 0
  %592 = vmatprep.subr.bf16.mxu0 0
  %593 = vmatpush1.bf16.msra.mxu0 0
  %594 = vmatprep.subr.bf16.mxu0 0
  %595 = vmatpush1.bf16.msra.mxu0 0
  %596 = vmatprep.subr.bf16.mxu0 0
  %597 = vmatpush1.bf16.msra.mxu0 0
  %598 = vmatprep.subr.bf16.mxu0 0
  %599 = vmatpush1.bf16.msra.mxu0 0
  %600 = vmatprep.subr.bf16.mxu0 0
  %601 = vmatpush1.bf16.msra.mxu0 0
  %602 = vmatprep.subr.bf16.mxu0 0
  %603 = vmatpush1.bf16.msra.mxu0 0
  %604 = vmatprep.subr.bf16.mxu0 0
  %605 = vmatpush1.bf16.msra.mxu0 0
  %606 = vmatprep.subr.bf16.mxu0 0
  %607 = vmatpush1.bf16.msra.mxu0 0
  %608 = vmatprep.subr.bf16.mxu0 0
  %609 = vmatpush1.bf16.msra.mxu0 0
  %610 = vmatprep.subr.bf16.mxu0 0
  %611 = vmatpush1.bf16.msra.mxu0 0
  %612 = vmatprep.subr.bf16.mxu0 0
  %613 = vmatpush1.bf16.msra.mxu0 0
  %614 = vmatprep.subr.bf16.mxu0 0
  %615 = vmatpush1.bf16.msra.mxu0 0
  %616 = vmatprep.mubr.bf16.mxu0 0
  %617 = vmatmul.mubr.bf16.gmra.mrb[0].mxu0 %v582
  %v618 = vpop.f32.mrb[0].mxu0
  %v619 = vadd.f32 %v199, %v618
  %v620 = vpop.f32.mrb[0].mxu0
  %v621 = vpop.f32.mrb[0].mxu0
  %v622 = vpop.f32.mrb[0].mxu0
  %623 = vdwg.mxu0
  %v624 = vmax.f32 %v619, 0.0
  %626 = vrot.lane.b32.xlu0 %v624, 80
  %v627 = vpop.permute.xlu0 %626
  %vm629 = vcmask 1048192
  %630 = vst.msk [vmem:[#allocation2 + $0x10] sm:$0xff] %vm629, %v627
  %v631 = vld [vmem:[%s0] sm:$0xff]
  %v632 = vpack.c.bf16 %v631, %v631
  %634 = vrot.lane.b32.xlu0 %v632, 65
  %v635 = vpop.permute.xlu0 %634
  %v637 = vsel %vm242, %v635, 0
  %639 = vmatprep.subr.bf16.mxu0 0
  %640 = vmatpush1.bf16.msra.mxu0 %v239
  %641 = vmatprep.subr.bf16.mxu0 0
  %642 = vmatpush1.bf16.msra.mxu0 %v248
  %643 = vmatprep.subr.bf16.mxu0 0
  %644 = vmatpush1.bf16.msra.mxu0 0
  %645 = vmatprep.subr.bf16.mxu0 0
  %646 = vmatpush1.bf16.msra.mxu0 0
  %647 = vmatprep.subr.bf16.mxu0 0
  %648 = vmatpush1.bf16.msra.mxu0 0
  %649 = vmatprep.subr.bf16.mxu0 0
  %650 = vmatpush1.bf16.msra.mxu0 0
  %651 = vmatprep.subr.bf16.mxu0 0
  %652 = vmatpush1.bf16.msra.mxu0 0
  %653 = vmatprep.subr.bf16.mxu0 0
  %654 = vmatpush1.bf16.msra.mxu0 0
  %655 = vmatprep.subr.bf16.mxu0 0
  %656 = vmatpush1.bf16.msra.mxu0 0
  %657 = vmatprep.subr.bf16.mxu0 0
  %658 = vmatpush1.bf16.msra.mxu0 0
  %659 = vmatprep.subr.bf16.mxu0 0
  %660 = vmatpush1.bf16.msra.mxu0 0
  %661 = vmatprep.subr.bf16.mxu0 0
  %662 = vmatpush1.bf16.msra.mxu0 0
  %663 = vmatprep.subr.bf16.mxu0 0
  %664 = vmatpush1.bf16.msra.mxu0 0
  %665 = vmatprep.subr.bf16.mxu0 0
  %666 = vmatpush1.bf16.msra.mxu0 0
  %667 = vmatprep.subr.bf16.mxu0 0
  %668 = vmatpush1.bf16.msra.mxu0 0
  %669 = vmatprep.subr.bf16.mxu0 0
  %670 = vmatpush1.bf16.msra.mxu0 0
  %671 = vmatprep.mubr.bf16.mxu0 0
  %672 = vmatmul.mubr.bf16.gmra.mrb[0].mxu0 %v637
  %v673 = vpop.f32.mrb[0].mxu0
  %v674 = vadd.f32 %v199, %v673
  %v675 = vpop.f32.mrb[0].mxu0
  %v676 = vpop.f32.mrb[0].mxu0
  %v677 = vpop.f32.mrb[0].mxu0
  %678 = vdwg.mxu0
  %v679 = vmax.f32 %v674, 0.0
  %680 = vst.msk [vmem:[#allocation2 + $0x18] sm:$0xff] %vm227, %v679
  %v681 = vld [vmem:[%s0] sm:$0xff]
  %v682 = vpack.c.bf16 %v681, %v681
  %684 = vrot.lane.b32.xlu0 %v682, 56
  %v685 = vpop.permute.xlu0 %684
  %v687 = vsel %vm242, %v685, 0
  %689 = vmatprep.subr.bf16.mxu0 0
  %690 = vmatpush1.bf16.msra.mxu0 %v239
  %691 = vmatprep.subr.bf16.mxu0 0
  %692 = vmatpush1.bf16.msra.mxu0 %v248
  %693 = vmatprep.subr.bf16.mxu0 0
  %694 = vmatpush1.bf16.msra.mxu0 0
  %695 = vmatprep.subr.bf16.mxu0 0
  %696 = vmatpush1.bf16.msra.mxu0 0
  %697 = vmatprep.subr.bf16.mxu0 0
  %698 = vmatpush1.bf16.msra.mxu0 0
  %699 = vmatprep.subr.bf16.mxu0 0
  %700 = vmatpush1.bf16.msra.mxu0 0
  %701 = vmatprep.subr.bf16.mxu0 0
  %702 = vmatpush1.bf16.msra.mxu0 0
  %703 = vmatprep.subr.bf16.mxu0 0
  %704 = vmatpush1.bf16.msra.mxu0 0
  %705 = vmatprep.subr.bf16.mxu0 0
  %706 = vmatpush1.bf16.msra.mxu0 0
  %707 = vmatprep.subr.bf16.mxu0 0
  %708 = vmatpush1.bf16.msra.mxu0 0
  %709 = vmatprep.subr.bf16.mxu0 0
  %710 = vmatpush1.bf16.msra.mxu0 0
  %711 = vmatprep.subr.bf16.mxu0 0
  %712 = vmatpush1.bf16.msra.mxu0 0
  %713 = vmatprep.subr.bf16.mxu0 0
  %714 = vmatpush1.bf16.msra.mxu0 0
  %715 = vmatprep.subr.bf16.mxu0 0
  %716 = vmatpush1.bf16.msra.mxu0 0
  %717 = vmatprep.subr.bf16.mxu0 0
  %718 = vmatpush1.bf16.msra.mxu0 0
  %719 = vmatprep.subr.bf16.mxu0 0
  %720 = vmatpush1.bf16.msra.mxu0 0
  %721 = vmatprep.mubr.bf16.mxu0 0
  %722 = vmatmul.mubr.bf16.gmra.mrb[0].mxu0 %v687
  %v723 = vpop.f32.mrb[0].mxu0
  %v724 = vadd.f32 %v199, %v723
  %v725 = vpop.f32.mrb[0].mxu0
  %v726 = vpop.f32.mrb[0].mxu0
  %v727 = vpop.f32.mrb[0].mxu0
  %728 = vdwg.mxu0
  %v729 = vmax.f32 %v724, 0.0
  %731 = vrot.lane.b32.xlu0 %v729, 48
  %v732 = vpop.permute.xlu0 %731
  %734 = vst.msk [vmem:[#allocation2 + $0x18] sm:$0xff] %vm295, %v732
  %v735 = vld [vmem:[%s0] sm:$0xff]
  %v736 = vpack.c.bf16 %v735, %v735
  %738 = vrot.lane.b32.xlu0 %v736, 47
  %v739 = vpop.permute.xlu0 %738
  %v741 = vsel %vm242, %v739, 0
  %743 = vmatprep.subr.bf16.mxu0 0
  %744 = vmatpush1.bf16.msra.mxu0 %v239
  %745 = vmatprep.subr.bf16.mxu0 0
  %746 = vmatpush1.bf16.msra.mxu0 %v248
  %747 = vmatprep.subr.bf16.mxu0 0
  %748 = vmatpush1.bf16.msra.mxu0 0
  %749 = vmatprep.subr.bf16.mxu0 0
  %750 = vmatpush1.bf16.msra.mxu0 0
  %751 = vmatprep.subr.bf16.mxu0 0
  %752 = vmatpush1.bf16.msra.mxu0 0
  %753 = vmatprep.subr.bf16.mxu0 0
  %754 = vmatpush1.bf16.msra.mxu0 0
  %755 = vmatprep.subr.bf16.mxu0 0
  %756 = vmatpush1.bf16.msra.mxu0 0
  %757 = vmatprep.subr.bf16.mxu0 0
  %758 = vmatpush1.bf16.msra.mxu0 0
  %759 = vmatprep.subr.bf16.mxu0 0
  %760 = vmatpush1.bf16.msra.mxu0 0
  %761 = vmatprep.subr.bf16.mxu0 0
  %762 = vmatpush1.bf16.msra.mxu0 0
  %763 = vmatprep.subr.bf16.mxu0 0
  %764 = vmatpush1.bf16.msra.mxu0 0
  %765 = vmatprep.subr.bf16.mxu0 0
  %766 = vmatpush1.bf16.msra.mxu0 0
  %767 = vmatprep.subr.bf16.mxu0 0
  %768 = vmatpush1.bf16.msra.mxu0 0
  %769 = vmatprep.subr.bf16.mxu0 0
  %770 = vmatpush1.bf16.msra.mxu0 0
  %771 = vmatprep.subr.bf16.mxu0 0
  %772 = vmatpush1.bf16.msra.mxu0 0
  %773 = vmatprep.subr.bf16.mxu0 0
  %774 = vmatpush1.bf16.msra.mxu0 0
  %775 = vmatprep.mubr.bf16.mxu0 0
  %776 = vmatmul.mubr.bf16.gmra.mrb[0].mxu0 %v741
  %v777 = vpop.f32.mrb[0].mxu0
  %v778 = vadd.f32 %v199, %v777
  %v779 = vpop.f32.mrb[0].mxu0
  %v780 = vpop.f32.mrb[0].mxu0
  %v781 = vpop.f32.mrb[0].mxu0
  %782 = vdwg.mxu0
  %v783 = vmax.f32 %v778, 0.0
  %785 = vrot.lane.b32.xlu0 %v783, 96
  %v786 = vpop.permute.xlu0 %785
  %788 = vst.msk [vmem:[#allocation2 + $0x18] sm:$0xff] %vm350, %v786
  %789 = vst.msk [vmem:[#allocation2 + $0x20] sm:$0xff] %vm352, %v786
  %v790 = vld [vmem:[%s0] sm:$0xff]
  %v791 = vpack.c.bf16 %v790, %v790
  %793 = vrot.lane.b32.xlu0 %v791, 38
  %v794 = vpop.permute.xlu0 %793
  %v796 = vsel %vm242, %v794, 0
  %798 = vmatprep.subr.bf16.mxu0 0
  %799 = vmatpush1.bf16.msra.mxu0 %v239
  %800 = vmatprep.subr.bf16.mxu0 0
  %801 = vmatpush1.bf16.msra.mxu0 %v248
  %802 = vmatprep.subr.bf16.mxu0 0
  %803 = vmatpush1.bf16.msra.mxu0 0
  %804 = vmatprep.subr.bf16.mxu0 0
  %805 = vmatpush1.bf16.msra.mxu0 0
  %806 = vmatprep.subr.bf16.mxu0 0
  %807 = vmatpush1.bf16.msra.mxu0 0
  %808 = vmatprep.subr.bf16.mxu0 0
  %809 = vmatpush1.bf16.msra.mxu0 0
  %810 = vmatprep.subr.bf16.mxu0 0
  %811 = vmatpush1.bf16.msra.mxu0 0
  %812 = vmatprep.subr.bf16.mxu0 0
  %813 = vmatpush1.bf16.msra.mxu0 0
  %814 = vmatprep.subr.bf16.mxu0 0
  %815 = vmatpush1.bf16.msra.mxu0 0
  %816 = vmatprep.subr.bf16.mxu0 0
  %817 = vmatpush1.bf16.msra.mxu0 0
  %818 = vmatprep.subr.bf16.mxu0 0
  %819 = vmatpush1.bf16.msra.mxu0 0
  %820 = vmatprep.subr.bf16.mxu0 0
  %821 = vmatpush1.bf16.msra.mxu0 0
  %822 = vmatprep.subr.bf16.mxu0 0
  %823 = vmatpush1.bf16.msra.mxu0 0
  %824 = vmatprep.subr.bf16.mxu0 0
  %825 = vmatpush1.bf16.msra.mxu0 0
  %826 = vmatprep.subr.bf16.mxu0 0
  %827 = vmatpush1.bf16.msra.mxu0 0
  %828 = vmatprep.subr.bf16.mxu0 0
  %829 = vmatpush1.bf16.msra.mxu0 0
  %830 = vmatprep.mubr.bf16.mxu0 0
  %831 = vmatmul.mubr.bf16.gmra.mrb[0].mxu0 %v796
  %v832 = vpop.f32.mrb[0].mxu0
  %v833 = vadd.f32 %v199, %v832
  %v834 = vpop.f32.mrb[0].mxu0
  %v835 = vpop.f32.mrb[0].mxu0
  %v836 = vpop.f32.mrb[0].mxu0
  %837 = vdwg.mxu0
  %v838 = vmax.f32 %v833, 0.0
  %840 = vrot.lane.b32.xlu0 %v838, 16
  %v841 = vpop.permute.xlu0 %840
  %843 = vst.msk [vmem:[#allocation2 + $0x20] sm:$0xff] %vm407, %v841
  %v844 = vld [vmem:[%s0] sm:$0xff]
  %v845 = vpack.c.bf16 %v844, %v844
  %847 = vrot.lane.b32.xlu0 %v845, 29
  %v848 = vpop.permute.xlu0 %847
  %v850 = vsel %vm242, %v848, 0
  %852 = vmatprep.subr.bf16.mxu0 0
  %853 = vmatpush1.bf16.msra.mxu0 %v239
  %854 = vmatprep.subr.bf16.mxu0 0
  %855 = vmatpush1.bf16.msra.mxu0 %v248
  %856 = vmatprep.subr.bf16.mxu0 0
  %857 = vmatpush1.bf16.msra.mxu0 0
  %858 = vmatprep.subr.bf16.mxu0 0
  %859 = vmatpush1.bf16.msra.mxu0 0
  %860 = vmatprep.subr.bf16.mxu0 0
  %861 = vmatpush1.bf16.msra.mxu0 0
  %862 = vmatprep.subr.bf16.mxu0 0
  %863 = vmatpush1.bf16.msra.mxu0 0
  %864 = vmatprep.subr.bf16.mxu0 0
  %865 = vmatpush1.bf16.msra.mxu0 0
  %866 = vmatprep.subr.bf16.mxu0 0
  %867 = vmatpush1.bf16.msra.mxu0 0
  %868 = vmatprep.subr.bf16.mxu0 0
  %869 = vmatpush1.bf16.msra.mxu0 0
  %870 = vmatprep.subr.bf16.mxu0 0
  %871 = vmatpush1.bf16.msra.mxu0 0
  %872 = vmatprep.subr.bf16.mxu0 0
  %873 = vmatpush1.bf16.msra.mxu0 0
  %874 = vmatprep.subr.bf16.mxu0 0
  %875 = vmatpush1.bf16.msra.mxu0 0
  %876 = vmatprep.subr.bf16.mxu0 0
  %877 = vmatpush1.bf16.msra.mxu0 0
  %878 = vmatprep.subr.bf16.mxu0 0
  %879 = vmatpush1.bf16.msra.mxu0 0
  %880 = vmatprep.subr.bf16.mxu0 0
  %881 = vmatpush1.bf16.msra.mxu0 0
  %882 = vmatprep.subr.bf16.mxu0 0
  %883 = vmatpush1.bf16.msra.mxu0 0
  %884 = vmatprep.mubr.bf16.mxu0 0
  %885 = vmatmul.mubr.bf16.gmra.mrb[0].mxu0 %v850
  %v886 = vpop.f32.mrb[0].mxu0
  %v887 = vadd.f32 %v199, %v886
  %v888 = vpop.f32.mrb[0].mxu0
  %v889 = vpop.f32.mrb[0].mxu0
  %v890 = vpop.f32.mrb[0].mxu0
  %891 = vdwg.mxu0
  %v892 = vmax.f32 %v887, 0.0
  %894 = vrot.lane.b32.xlu0 %v892, 64
  %v895 = vpop.permute.xlu0 %894
  %897 = vst.msk [vmem:[#allocation2 + $0x20] sm:$0xff] %vm462, %v895
  %v898 = vld [vmem:[%s0] sm:$0xff]
  %v899 = vpack.c.bf16 %v898, %v898
  %901 = vrot.lane.b32.xlu0 %v899, 20
  %v902 = vpop.permute.xlu0 %901
  %v904 = vsel %vm242, %v902, 0
  %906 = vmatprep.subr.bf16.mxu0 0
  %907 = vmatpush1.bf16.msra.mxu0 %v239
  %908 = vmatprep.subr.bf16.mxu0 0
  %909 = vmatpush1.bf16.msra.mxu0 %v248
  %910 = vmatprep.subr.bf16.mxu0 0
  %911 = vmatpush1.bf16.msra.mxu0 0
  %912 = vmatprep.subr.bf16.mxu0 0
  %913 = vmatpush1.bf16.msra.mxu0 0
  %914 = vmatprep.subr.bf16.mxu0 0
  %915 = vmatpush1.bf16.msra.mxu0 0
  %916 = vmatprep.subr.bf16.mxu0 0
  %917 = vmatpush1.bf16.msra.mxu0 0
  %918 = vmatprep.subr.bf16.mxu0 0
  %919 = vmatpush1.bf16.msra.mxu0 0
  %920 = vmatprep.subr.bf16.mxu0 0
  %921 = vmatpush1.bf16.msra.mxu0 0
  %922 = vmatprep.subr.bf16.mxu0 0
  %923 = vmatpush1.bf16.msra.mxu0 0
  %924 = vmatprep.subr.bf16.mxu0 0
  %925 = vmatpush1.bf16.msra.mxu0 0
  %926 = vmatprep.subr.bf16.mxu0 0
  %927 = vmatpush1.bf16.msra.mxu0 0
  %928 = vmatprep.subr.bf16.mxu0 0
  %929 = vmatpush1.bf16.msra.mxu0 0
  %930 = vmatprep.subr.bf16.mxu0 0
  %931 = vmatpush1.bf16.msra.mxu0 0
  %932 = vmatprep.subr.bf16.mxu0 0
  %933 = vmatpush1.bf16.msra.mxu0 0
  %934 = vmatprep.subr.bf16.mxu0 0
  %935 = vmatpush1.bf16.msra.mxu0 0
  %936 = vmatprep.subr.bf16.mxu0 0
  %937 = vmatpush1.bf16.msra.mxu0 0
  %938 = vmatprep.mubr.bf16.mxu0 0
  %939 = vmatmul.mubr.bf16.gmra.mrb[0].mxu0 %v904
  %v940 = vpop.f32.mrb[0].mxu0
  %v941 = vadd.f32 %v199, %v940
  %v942 = vpop.f32.mrb[0].mxu0
  %v943 = vpop.f32.mrb[0].mxu0
  %v944 = vpop.f32.mrb[0].mxu0
  %945 = vdwg.mxu0
  %v946 = vmax.f32 %v941, 0.0
  %948 = vrot.lane.b32.xlu0 %v946, 112
  %v949 = vpop.permute.xlu0 %948
  %951 = vst.msk [vmem:[#allocation2 + $0x20] sm:$0xff] %vm517, %v949
  %952 = vst.msk [vmem:[#allocation2 + $0x28] sm:$0xff] %vm519, %v949
  %v953 = vld [vmem:[%s0] sm:$0xff]
  %v954 = vld [vmem:[%s0 + $0x8] sm:$0xff]
  %v955 = vpack.c.bf16 %v953, %v953
  %v956 = vpack.c.bf16 %v954, %v954
  %959 = vrot.lane.b32.xlu0 %v955, 11
  %v960 = vpop.permute.xlu0 %959
  %961 = vrot.lane.b32.xlu0 %v956, 11
  %v962 = vpop.permute.xlu0 %961
  %vm963 = vcmask 89088
  %v964 = vsel %vm963, %v960, %v962
  %v966 = vsel %vm242, %v964, 0
  %968 = vmatprep.subr.bf16.mxu0 0
  %969 = vmatpush1.bf16.msra.mxu0 %v239
  %970 = vmatprep.subr.bf16.mxu0 0
  %971 = vmatpush1.bf16.msra.mxu0 %v248
  %972 = vmatprep.subr.bf16.mxu0 0
  %973 = vmatpush1.bf16.msra.mxu0 0
  %974 = vmatprep.subr.bf16.mxu0 0
  %975 = vmatpush1.bf16.msra.mxu0 0
  %976 = vmatprep.subr.bf16.mxu0 0
  %977 = vmatpush1.bf16.msra.mxu0 0
  %978 = vmatprep.subr.bf16.mxu0 0
  %979 = vmatpush1.bf16.msra.mxu0 0
  %980 = vmatprep.subr.bf16.mxu0 0
  %981 = vmatpush1.bf16.msra.mxu0 0
  %982 = vmatprep.subr.bf16.mxu0 0
  %983 = vmatpush1.bf16.msra.mxu0 0
  %984 = vmatprep.subr.bf16.mxu0 0
  %985 = vmatpush1.bf16.msra.mxu0 0
  %986 = vmatprep.subr.bf16.mxu0 0
  %987 = vmatpush1.bf16.msra.mxu0 0
  %988 = vmatprep.subr.bf16.mxu0 0
  %989 = vmatpush1.bf16.msra.mxu0 0
  %990 = vmatprep.subr.bf16.mxu0 0
  %991 = vmatpush1.bf16.msra.mxu0 0
  %992 = vmatprep.subr.bf16.mxu0 0
  %993 = vmatpush1.bf16.msra.mxu0 0
  %994 = vmatprep.subr.bf16.mxu0 0
  %995 = vmatpush1.bf16.msra.mxu0 0
  %996 = vmatprep.subr.bf16.mxu0 0
  %997 = vmatpush1.bf16.msra.mxu0 0
  %998 = vmatprep.subr.bf16.mxu0 0
  %999 = vmatpush1.bf16.msra.mxu0 0
  %1000 = vmatprep.mubr.bf16.mxu0 0
  %1001 = vmatmul.mubr.bf16.gmra.mrb[0].mxu0 %v966
  %v1002 = vpop.f32.mrb[0].mxu0
  %v1003 = vadd.f32 %v199, %v1002
  %v1004 = vpop.f32.mrb[0].mxu0
  %v1005 = vpop.f32.mrb[0].mxu0
  %v1006 = vpop.f32.mrb[0].mxu0
  %1007 = vdwg.mxu0
  %v1008 = vmax.f32 %v1003, 0.0
  %1010 = vrot.lane.b32.xlu0 %v1008, 32
  %v1011 = vpop.permute.xlu0 %1010
  %1013 = vst.msk [vmem:[#allocation2 + $0x28] sm:$0xff] %vm574, %v1011
  %v1014 = vld [vmem:[%s0] sm:$0xff]
  %v1015 = vld [vmem:[%s0 + $0x8] sm:$0xff]
  %v1016 = vpack.c.bf16 %v1014, %v1014
  %v1017 = vpack.c.bf16 %v1015, %v1015
  %1020 = vrot.lane.b32.xlu0 %v1016, 2
  %v1021 = vpop.permute.xlu0 %1020
  %1022 = vrot.lane.b32.xlu0 %v1017, 2
  %v1023 = vpop.permute.xlu0 %1022
  %vm1024 = vcmask 15360
  %v1025 = vsel %vm1024, %v1021, %v1023
  %v1027 = vsel %vm242, %v1025, 0
  %1029 = vmatprep.subr.bf16.mxu0 0
  %1030 = vmatpush1.bf16.msra.mxu0 %v239
  %1031 = vmatprep.subr.bf16.mxu0 0
  %1032 = vmatpush1.bf16.msra.mxu0 %v248
  %1033 = vmatprep.subr.bf16.mxu0 0
  %1034 = vmatpush1.bf16.msra.mxu0 0
  %1035 = vmatprep.subr.bf16.mxu0 0
  %1036 = vmatpush1.bf16.msra.mxu0 0
  %1037 = vmatprep.subr.bf16.mxu0 0
  %1038 = vmatpush1.bf16.msra.mxu0 0
  %1039 = vmatprep.subr.bf16.mxu0 0
  %1040 = vmatpush1.bf16.msra.mxu0 0
  %1041 = vmatprep.subr.bf16.mxu0 0
  %1042 = vmatpush1.bf16.msra.mxu0 0
  %1043 = vmatprep.subr.bf16.mxu0 0
  %1044 = vmatpush1.bf16.msra.mxu0 0
  %1045 = vmatprep.subr.bf16.mxu0 0
  %1046 = vmatpush1.bf16.msra.mxu0 0
  %1047 = vmatprep.subr.bf16.mxu0 0
  %1048 = vmatpush1.bf16.msra.mxu0 0
  %1049 = vmatprep.subr.bf16.mxu0 0
  %1050 = vmatpush1.bf16.msra.mxu0 0
  %1051 = vmatprep.subr.bf16.mxu0 0
  %1052 = vmatpush1.bf16.msra.mxu0 0
  %1053 = vmatprep.subr.bf16.mxu0 0
  %1054 = vmatpush1.bf16.msra.mxu0 0
  %1055 = vmatprep.subr.bf16.mxu0 0
  %1056 = vmatpush1.bf16.msra.mxu0 0
  %1057 = vmatprep.subr.bf16.mxu0 0
  %1058 = vmatpush1.bf16.msra.mxu0 0
  %1059 = vmatprep.subr.bf16.mxu0 0
  %1060 = vmatpush1.bf16.msra.mxu0 0
  %1061 = vmatprep.mubr.bf16.mxu0 0
  %1062 = vmatmul.mubr.bf16.gmra.mrb[0].mxu0 %v1027
  %v1063 = vpop.f32.mrb[0].mxu0
  %v1064 = vadd.f32 %v199, %v1063
  %v1065 = vpop.f32.mrb[0].mxu0
  %v1066 = vpop.f32.mrb[0].mxu0
  %v1067 = vpop.f32.mrb[0].mxu0
  %1068 = vdwg.mxu0
  %v1069 = vmax.f32 %v1064, 0.0
  %1071 = vrot.lane.b32.xlu0 %v1069, 80
  %v1072 = vpop.permute.xlu0 %1071
  %1074 = vst.msk [vmem:[#allocation2 + $0x28] sm:$0xff] %vm629, %v1072
  %v1075 = vld [vmem:[%s0 + $0x8] sm:$0xff]
  %v1076 = vpack.c.bf16 %v1075, %v1075
  %1078 = vrot.lane.b32.xlu0 %v1076, 121
  %v1079 = vpop.permute.xlu0 %1078
  %v1081 = vsel %vm242, %v1079, 0
  %1083 = vmatprep.subr.bf16.mxu0 0
  %1084 = vmatpush1.bf16.msra.mxu0 %v239
  %1085 = vmatprep.subr.bf16.mxu0 0
  %1086 = vmatpush1.bf16.msra.mxu0 %v248
  %1087 = vmatprep.subr.bf16.mxu0 0
  %1088 = vmatpush1.bf16.msra.mxu0 0
  %1089 = vmatprep.subr.bf16.mxu0 0
  %1090 = vmatpush1.bf16.msra.mxu0 0
  %1091 = vmatprep.subr.bf16.mxu0 0
  %1092 = vmatpush1.bf16.msra.mxu0 0
  %1093 = vmatprep.subr.bf16.mxu0 0
  %1094 = vmatpush1.bf16.msra.mxu0 0
  %1095 = vmatprep.subr.bf16.mxu0 0
  %1096 = vmatpush1.bf16.msra.mxu0 0
  %1097 = vmatprep.subr.bf16.mxu0 0
  %1098 = vmatpush1.bf16.msra.mxu0 0
  %1099 = vmatprep.subr.bf16.mxu0 0
  %1100 = vmatpush1.bf16.msra.mxu0 0
  %1101 = vmatprep.subr.bf16.mxu0 0
  %1102 = vmatpush1.bf16.msra.mxu0 0
  %1103 = vmatprep.subr.bf16.mxu0 0
  %1104 = vmatpush1.bf16.msra.mxu0 0
  %1105 = vmatprep.subr.bf16.mxu0 0
  %1106 = vmatpush1.bf16.msra.mxu0 0
  %1107 = vmatprep.subr.bf16.mxu0 0
  %1108 = vmatpush1.bf16.msra.mxu0 0
  %1109 = vmatprep.subr.bf16.mxu0 0
  %1110 = vmatpush1.bf16.msra.mxu0 0
  %1111 = vmatprep.subr.bf16.mxu0 0
  %1112 = vmatpush1.bf16.msra.mxu0 0
  %1113 = vmatprep.subr.bf16.mxu0 0
  %1114 = vmatpush1.bf16.msra.mxu0 0
  %1115 = vmatprep.mubr.bf16.mxu0 0
  %1116 = vmatmul.mubr.bf16.gmra.mrb[0].mxu0 %v1081
  %v1117 = vpop.f32.mrb[0].mxu0
  %v1118 = vadd.f32 %v199, %v1117
  %v1119 = vpop.f32.mrb[0].mxu0
  %v1120 = vpop.f32.mrb[0].mxu0
  %v1121 = vpop.f32.mrb[0].mxu0
  %1122 = vdwg.mxu0
  %v1123 = vmax.f32 %v1118, 0.0
  %1124 = vst.msk [vmem:[#allocation2 + $0x30] sm:$0xff] %vm227, %v1123
  %v1125 = vld [vmem:[%s0 + $0x8] sm:$0xff]
  %v1126 = vpack.c.bf16 %v1125, %v1125
  %1128 = vrot.lane.b32.xlu0 %v1126, 112
  %v1129 = vpop.permute.xlu0 %1128
  %v1131 = vsel %vm242, %v1129, 0
  %1133 = vmatprep.subr.bf16.mxu0 0
  %1134 = vmatpush1.bf16.msra.mxu0 %v239
  %1135 = vmatprep.subr.bf16.mxu0 0
  %1136 = vmatpush1.bf16.msra.mxu0 %v248
  %1137 = vmatprep.subr.bf16.mxu0 0
  %1138 = vmatpush1.bf16.msra.mxu0 0
  %1139 = vmatprep.subr.bf16.mxu0 0
  %1140 = vmatpush1.bf16.msra.mxu0 0
  %1141 = vmatprep.subr.bf16.mxu0 0
  %1142 = vmatpush1.bf16.msra.mxu0 0
  %1143 = vmatprep.subr.bf16.mxu0 0
  %1144 = vmatpush1.bf16.msra.mxu0 0
  %1145 = vmatprep.subr.bf16.mxu0 0
  %1146 = vmatpush1.bf16.msra.mxu0 0
  %1147 = vmatprep.subr.bf16.mxu0 0
  %1148 = vmatpush1.bf16.msra.mxu0 0
  %1149 = vmatprep.subr.bf16.mxu0 0
  %1150 = vmatpush1.bf16.msra.mxu0 0
  %1151 = vmatprep.subr.bf16.mxu0 0
  %1152 = vmatpush1.bf16.msra.mxu0 0
  %1153 = vmatprep.subr.bf16.mxu0 0
  %1154 = vmatpush1.bf16.msra.mxu0 0
  %1155 = vmatprep.subr.bf16.mxu0 0
  %1156 = vmatpush1.bf16.msra.mxu0 0
  %1157 = vmatprep.subr.bf16.mxu0 0
  %1158 = vmatpush1.bf16.msra.mxu0 0
  %1159 = vmatprep.subr.bf16.mxu0 0
  %1160 = vmatpush1.bf16.msra.mxu0 0
  %1161 = vmatprep.subr.bf16.mxu0 0
  %1162 = vmatpush1.bf16.msra.mxu0 0
  %1163 = vmatprep.subr.bf16.mxu0 0
  %1164 = vmatpush1.bf16.msra.mxu0 0
  %1165 = vmatprep.mubr.bf16.mxu0 0
  %1166 = vmatmul.mubr.bf16.gmra.mrb[0].mxu0 %v1131
  %v1167 = vpop.f32.mrb[0].mxu0
  %v1168 = vadd.f32 %v199, %v1167
  %v1169 = vpop.f32.mrb[0].mxu0
  %v1170 = vpop.f32.mrb[0].mxu0
  %v1171 = vpop.f32.mrb[0].mxu0
  %1172 = vdwg.mxu0
  %v1173 = vmax.f32 %v1168, 0.0
  %1175 = vrot.lane.b32.xlu0 %v1173, 48
  %v1176 = vpop.permute.xlu0 %1175
  %1178 = vst.msk [vmem:[#allocation2 + $0x30] sm:$0xff] %vm295, %v1176
  %v1179 = vld [vmem:[%s0 + $0x8] sm:$0xff]
  %v1180 = vpack.c.bf16 %v1179, %v1179
  %1182 = vrot.lane.b32.xlu0 %v1180, 103
  %v1183 = vpop.permute.xlu0 %1182
  %v1185 = vsel %vm242, %v1183, 0
  %1187 = vmatprep.subr.bf16.mxu0 0
  %1188 = vmatpush1.bf16.msra.mxu0 %v239
  %1189 = vmatprep.subr.bf16.mxu0 0
  %1190 = vmatpush1.bf16.msra.mxu0 %v248
  %1191 = vmatprep.subr.bf16.mxu0 0
  %1192 = vmatpush1.bf16.msra.mxu0 0
  %1193 = vmatprep.subr.bf16.mxu0 0
  %1194 = vmatpush1.bf16.msra.mxu0 0
  %1195 = vmatprep.subr.bf16.mxu0 0
  %1196 = vmatpush1.bf16.msra.mxu0 0
  %1197 = vmatprep.subr.bf16.mxu0 0
  %1198 = vmatpush1.bf16.msra.mxu0 0
  %1199 = vmatprep.subr.bf16.mxu0 0
  %1200 = vmatpush1.bf16.msra.mxu0 0
  %1201 = vmatprep.subr.bf16.mxu0 0
  %1202 = vmatpush1.bf16.msra.mxu0 0
  %1203 = vmatprep.subr.bf16.mxu0 0
  %1204 = vmatpush1.bf16.msra.mxu0 0
  %1205 = vmatprep.subr.bf16.mxu0 0
  %1206 = vmatpush1.bf16.msra.mxu0 0
  %1207 = vmatprep.subr.bf16.mxu0 0
  %1208 = vmatpush1.bf16.msra.mxu0 0
  %1209 = vmatprep.subr.bf16.mxu0 0
  %1210 = vmatpush1.bf16.msra.mxu0 0
  %1211 = vmatprep.subr.bf16.mxu0 0
  %1212 = vmatpush1.bf16.msra.mxu0 0
  %1213 = vmatprep.subr.bf16.mxu0 0
  %1214 = vmatpush1.bf16.msra.mxu0 0
  %1215 = vmatprep.subr.bf16.mxu0 0
  %1216 = vmatpush1.bf16.msra.mxu0 0
  %1217 = vmatprep.subr.bf16.mxu0 0
  %1218 = vmatpush1.bf16.msra.mxu0 0
  %1219 = vmatprep.mubr.bf16.mxu0 0
  %1220 = vmatmul.mubr.bf16.gmra.mrb[0].mxu0 %v1185
  %v1221 = vpop.f32.mrb[0].mxu0
  %v1222 = vadd.f32 %v199, %v1221
  %v1223 = vpop.f32.mrb[0].mxu0
  %v1224 = vpop.f32.mrb[0].mxu0
  %v1225 = vpop.f32.mrb[0].mxu0
  %1226 = vdwg.mxu0
  %v1227 = vmax.f32 %v1222, 0.0
  %1229 = vrot.lane.b32.xlu0 %v1227, 96
  %v1230 = vpop.permute.xlu0 %1229
  %1232 = vst.msk [vmem:[#allocation2 + $0x30] sm:$0xff] %vm350, %v1230
  %1233 = vst.msk [vmem:[#allocation2 + $0x38] sm:$0xff] %vm352, %v1230
  %v1234 = vld [vmem:[%s0 + $0x8] sm:$0xff]
  %v1235 = vpack.c.bf16 %v1234, %v1234
  %1237 = vrot.lane.b32.xlu0 %v1235, 94
  %v1238 = vpop.permute.xlu0 %1237
  %v1240 = vsel %vm242, %v1238, 0
  %1242 = vmatprep.subr.bf16.mxu0 0
  %1243 = vmatpush1.bf16.msra.mxu0 %v239
  %1244 = vmatprep.subr.bf16.mxu0 0
  %1245 = vmatpush1.bf16.msra.mxu0 %v248
  %1246 = vmatprep.subr.bf16.mxu0 0
  %1247 = vmatpush1.bf16.msra.mxu0 0
  %1248 = vmatprep.subr.bf16.mxu0 0
  %1249 = vmatpush1.bf16.msra.mxu0 0
  %1250 = vmatprep.subr.bf16.mxu0 0
  %1251 = vmatpush1.bf16.msra.mxu0 0
  %1252 = vmatprep.subr.bf16.mxu0 0
  %1253 = vmatpush1.bf16.msra.mxu0 0
  %1254 = vmatprep.subr.bf16.mxu0 0
  %1255 = vmatpush1.bf16.msra.mxu0 0
  %1256 = vmatprep.subr.bf16.mxu0 0
  %1257 = vmatpush1.bf16.msra.mxu0 0
  %1258 = vmatprep.subr.bf16.mxu0 0
  %1259 = vmatpush1.bf16.msra.mxu0 0
  %1260 = vmatprep.subr.bf16.mxu0 0
  %1261 = vmatpush1.bf16.msra.mxu0 0
  %1262 = vmatprep.subr.bf16.mxu0 0
  %1263 = vmatpush1.bf16.msra.mxu0 0
  %1264 = vmatprep.subr.bf16.mxu0 0
  %1265 = vmatpush1.bf16.msra.mxu0 0
  %1266 = vmatprep.subr.bf16.mxu0 0
  %1267 = vmatpush1.bf16.msra.mxu0 0
  %1268 = vmatprep.subr.bf16.mxu0 0
  %1269 = vmatpush1.bf16.msra.mxu0 0
  %1270 = vmatprep.subr.bf16.mxu0 0
  %1271 = vmatpush1.bf16.msra.mxu0 0
  %1272 = vmatprep.subr.bf16.mxu0 0
  %1273 = vmatpush1.bf16.msra.mxu0 0
  %1274 = vmatprep.mubr.bf16.mxu0 0
  %1275 = vmatmul.mubr.bf16.gmra.mrb[0].mxu0 %v1240
  %v1276 = vpop.f32.mrb[0].mxu0
  %v1277 = vadd.f32 %v199, %v1276
  %v1278 = vpop.f32.mrb[0].mxu0
  %v1279 = vpop.f32.mrb[0].mxu0
  %v1280 = vpop.f32.mrb[0].mxu0
  %1281 = vdwg.mxu0
  %v1282 = vmax.f32 %v1277, 0.0
  %1284 = vrot.lane.b32.xlu0 %v1282, 16
  %v1285 = vpop.permute.xlu0 %1284
  %1287 = vst.msk [vmem:[#allocation2 + $0x38] sm:$0xff] %vm407, %v1285
  %v1288 = vld [vmem:[%s0 + $0x8] sm:$0xff]
  %v1289 = vpack.c.bf16 %v1288, %v1288
  %1291 = vrot.lane.b32.xlu0 %v1289, 85
  %v1292 = vpop.permute.xlu0 %1291
  %v1294 = vsel %vm242, %v1292, 0
  %1296 = vmatprep.subr.bf16.mxu0 0
  %1297 = vmatpush1.bf16.msra.mxu0 %v239
  %1298 = vmatprep.subr.bf16.mxu0 0
  %1299 = vmatpush1.bf16.msra.mxu0 %v248
  %1300 = vmatprep.subr.bf16.mxu0 0
  %1301 = vmatpush1.bf16.msra.mxu0 0
  %1302 = vmatprep.subr.bf16.mxu0 0
  %1303 = vmatpush1.bf16.msra.mxu0 0
  %1304 = vmatprep.subr.bf16.mxu0 0
  %1305 = vmatpush1.bf16.msra.mxu0 0
  %1306 = vmatprep.subr.bf16.mxu0 0
  %1307 = vmatpush1.bf16.msra.mxu0 0
  %1308 = vmatprep.subr.bf16.mxu0 0
  %1309 = vmatpush1.bf16.msra.mxu0 0
  %1310 = vmatprep.subr.bf16.mxu0 0
  %1311 = vmatpush1.bf16.msra.mxu0 0
  %1312 = vmatprep.subr.bf16.mxu0 0
  %1313 = vmatpush1.bf16.msra.mxu0 0
  %1314 = vmatprep.subr.bf16.mxu0 0
  %1315 = vmatpush1.bf16.msra.mxu0 0
  %1316 = vmatprep.subr.bf16.mxu0 0
  %1317 = vmatpush1.bf16.msra.mxu0 0
  %1318 = vmatprep.subr.bf16.mxu0 0
  %1319 = vmatpush1.bf16.msra.mxu0 0
  %1320 = vmatprep.subr.bf16.mxu0 0
  %1321 = vmatpush1.bf16.msra.mxu0 0
  %1322 = vmatprep.subr.bf16.mxu0 0
  %1323 = vmatpush1.bf16.msra.mxu0 0
  %1324 = vmatprep.subr.bf16.mxu0 0
  %1325 = vmatpush1.bf16.msra.mxu0 0
  %1326 = vmatprep.subr.bf16.mxu0 0
  %1327 = vmatpush1.bf16.msra.mxu0 0
  %1328 = vmatprep.mubr.bf16.mxu0 0
  %1329 = vmatmul.mubr.bf16.gmra.mrb[0].mxu0 %v1294
  %v1330 = vpop.f32.mrb[0].mxu0
  %v1331 = vadd.f32 %v199, %v1330
  %v1332 = vpop.f32.mrb[0].mxu0
  %v1333 = vpop.f32.mrb[0].mxu0
  %v1334 = vpop.f32.mrb[0].mxu0
  %1335 = vdwg.mxu0
  %v1336 = vmax.f32 %v1331, 0.0
  %1338 = vrot.lane.b32.xlu0 %v1336, 64
  %v1339 = vpop.permute.xlu0 %1338
  %1341 = vst.msk [vmem:[#allocation2 + $0x38] sm:$0xff] %vm462, %v1339
  %v1342 = vld [vmem:[%s0 + $0x8] sm:$0xff]
  %v1343 = vpack.c.bf16 %v1342, %v1342
  %1345 = vrot.lane.b32.xlu0 %v1343, 76
  %v1346 = vpop.permute.xlu0 %1345
  %v1348 = vsel %vm242, %v1346, 0
  %1350 = vmatprep.subr.bf16.mxu0 0
  %1351 = vmatpush1.bf16.msra.mxu0 %v239
  %1352 = vmatprep.subr.bf16.mxu0 0
  %1353 = vmatpush1.bf16.msra.mxu0 %v248
  %1354 = vmatprep.subr.bf16.mxu0 0
  %1355 = vmatpush1.bf16.msra.mxu0 0
  %1356 = vmatprep.subr.bf16.mxu0 0
  %1357 = vmatpush1.bf16.msra.mxu0 0
  %1358 = vmatprep.subr.bf16.mxu0 0
  %1359 = vmatpush1.bf16.msra.mxu0 0
  %1360 = vmatprep.subr.bf16.mxu0 0
  %1361 = vmatpush1.bf16.msra.mxu0 0
  %1362 = vmatprep.subr.bf16.mxu0 0
  %1363 = vmatpush1.bf16.msra.mxu0 0
  %1364 = vmatprep.subr.bf16.mxu0 0
  %1365 = vmatpush1.bf16.msra.mxu0 0
  %1366 = vmatprep.subr.bf16.mxu0 0
  %1367 = vmatpush1.bf16.msra.mxu0 0
  %1368 = vmatprep.subr.bf16.mxu0 0
  %1369 = vmatpush1.bf16.msra.mxu0 0
  %1370 = vmatprep.subr.bf16.mxu0 0
  %1371 = vmatpush1.bf16.msra.mxu0 0
  %1372 = vmatprep.subr.bf16.mxu0 0
  %1373 = vmatpush1.bf16.msra.mxu0 0
  %1374 = vmatprep.subr.bf16.mxu0 0
  %1375 = vmatpush1.bf16.msra.mxu0 0
  %1376 = vmatprep.subr.bf16.mxu0 0
  %1377 = vmatpush1.bf16.msra.mxu0 0
  %1378 = vmatprep.subr.bf16.mxu0 0
  %1379 = vmatpush1.bf16.msra.mxu0 0
  %1380 = vmatprep.subr.bf16.mxu0 0
  %1381 = vmatpush1.bf16.msra.mxu0 0
  %1382 = vmatprep.mubr.bf16.mxu0 0
  %1383 = vmatmul.mubr.bf16.gmra.mrb[0].mxu0 %v1348
  %v1384 = vpop.f32.mrb[0].mxu0
  %v1385 = vadd.f32 %v199, %v1384
  %v1386 = vpop.f32.mrb[0].mxu0
  %v1387 = vpop.f32.mrb[0].mxu0
  %v1388 = vpop.f32.mrb[0].mxu0
  %1389 = vdwg.mxu0
  %v1390 = vmax.f32 %v1385, 0.0
  %1392 = vrot.lane.b32.xlu0 %v1390, 112
  %v1393 = vpop.permute.xlu0 %1392
  %1395 = vst.msk [vmem:[#allocation2 + $0x38] sm:$0xff] %vm517, %v1393
  %1396 = vst.msk [vmem:[#allocation2 + $0x40] sm:$0xff] %vm519, %v1393
  %v1397 = vld [vmem:[%s0 + $0x8] sm:$0xff]
  %v1398 = vpack.c.bf16 %v1397, %v1397
  %1400 = vrot.lane.b32.xlu0 %v1398, 67
  %v1401 = vpop.permute.xlu0 %1400
  %v1403 = vsel %vm242, %v1401, 0
  %1405 = vmatprep.subr.bf16.mxu0 0
  %1406 = vmatpush1.bf16.msra.mxu0 %v239
  %1407 = vmatprep.subr.bf16.mxu0 0
  %1408 = vmatpush1.bf16.msra.mxu0 %v248
  %1409 = vmatprep.subr.bf16.mxu0 0
  %1410 = vmatpush1.bf16.msra.mxu0 0
  %1411 = vmatprep.subr.bf16.mxu0 0
  %1412 = vmatpush1.bf16.msra.mxu0 0
  %1413 = vmatprep.subr.bf16.mxu0 0
  %1414 = vmatpush1.bf16.msra.mxu0 0
  %1415 = vmatprep.subr.bf16.mxu0 0
  %1416 = vmatpush1.bf16.msra.mxu0 0
  %1417 = vmatprep.subr.bf16.mxu0 0
  %1418 = vmatpush1.bf16.msra.mxu0 0
  %1419 = vmatprep.subr.bf16.mxu0 0
  %1420 = vmatpush1.bf16.msra.mxu0 0
  %1421 = vmatprep.subr.bf16.mxu0 0
  %1422 = vmatpush1.bf16.msra.mxu0 0
  %1423 = vmatprep.subr.bf16.mxu0 0
  %1424 = vmatpush1.bf16.msra.mxu0 0
  %1425 = vmatprep.subr.bf16.mxu0 0
  %1426 = vmatpush1.bf16.msra.mxu0 0
  %1427 = vmatprep.subr.bf16.mxu0 0
  %1428 = vmatpush1.bf16.msra.mxu0 0
  %1429 = vmatprep.subr.bf16.mxu0 0
  %1430 = vmatpush1.bf16.msra.mxu0 0
  %1431 = vmatprep.subr.bf16.mxu0 0
  %1432 = vmatpush1.bf16.msra.mxu0 0
  %1433 = vmatprep.subr.bf16.mxu0 0
  %1434 = vmatpush1.bf16.msra.mxu0 0
  %1435 = vmatprep.subr.bf16.mxu0 0
  %1436 = vmatpush1.bf16.msra.mxu0 0
  %1437 = vmatprep.mubr.bf16.mxu0 0
  %1438 = vmatmul.mubr.bf16.gmra.mrb[0].mxu0 %v1403
  %v1439 = vpop.f32.mrb[0].mxu0
  %v1440 = vadd.f32 %v199, %v1439
  %v1441 = vpop.f32.mrb[0].mxu0
  %v1442 = vpop.f32.mrb[0].mxu0
  %v1443 = vpop.f32.mrb[0].mxu0
  %1444 = vdwg.mxu0
  %v1445 = vmax.f32 %v1440, 0.0
  %1447 = vrot.lane.b32.xlu0 %v1445, 32
  %v1448 = vpop.permute.xlu0 %1447
  %1450 = vst.msk [vmem:[#allocation2 + $0x40] sm:$0xff] %vm574, %v1448
  %v1451 = vld [vmem:[%s0 + $0x8] sm:$0xff]
  %v1452 = vpack.c.bf16 %v1451, %v1451
  %1454 = vrot.lane.b32.xlu0 %v1452, 58
  %v1455 = vpop.permute.xlu0 %1454
  %v1457 = vsel %vm242, %v1455, 0
  %1459 = vmatprep.subr.bf16.mxu0 0
  %1460 = vmatpush1.bf16.msra.mxu0 %v239
  %1461 = vmatprep.subr.bf16.mxu0 0
  %1462 = vmatpush1.bf16.msra.mxu0 %v248
  %1463 = vmatprep.subr.bf16.mxu0 0
  %1464 = vmatpush1.bf16.msra.mxu0 0
  %1465 = vmatprep.subr.bf16.mxu0 0
  %1466 = vmatpush1.bf16.msra.mxu0 0
  %1467 = vmatprep.subr.bf16.mxu0 0
  %1468 = vmatpush1.bf16.msra.mxu0 0
  %1469 = vmatprep.subr.bf16.mxu0 0
  %1470 = vmatpush1.bf16.msra.mxu0 0
  %1471 = vmatprep.subr.bf16.mxu0 0
  %1472 = vmatpush1.bf16.msra.mxu0 0
  %1473 = vmatprep.subr.bf16.mxu0 0
  %1474 = vmatpush1.bf16.msra.mxu0 0
  %1475 = vmatprep.subr.bf16.mxu0 0
  %1476 = vmatpush1.bf16.msra.mxu0 0
  %1477 = vmatprep.subr.bf16.mxu0 0
  %1478 = vmatpush1.bf16.msra.mxu0 0
  %1479 = vmatprep.subr.bf16.mxu0 0
  %1480 = vmatpush1.bf16.msra.mxu0 0
  %1481 = vmatprep.subr.bf16.mxu0 0
  %1482 = vmatpush1.bf16.msra.mxu0 0
  %1483 = vmatprep.subr.bf16.mxu0 0
  %1484 = vmatpush1.bf16.msra.mxu0 0
  %1485 = vmatprep.subr.bf16.mxu0 0
  %1486 = vmatpush1.bf16.msra.mxu0 0
  %1487 = vmatprep.subr.bf16.mxu0 0
  %1488 = vmatpush1.bf16.msra.mxu0 0
  %1489 = vmatprep.subr.bf16.mxu0 0
  %1490 = vmatpush1.bf16.msra.mxu0 0
  %1491 = vmatprep.mubr.bf16.mxu0 0
  %1492 = vmatmul.mubr.bf16.gmra.mrb[0].mxu0 %v1457
  %v1493 = vpop.f32.mrb[0].mxu0
  %v1494 = vadd.f32 %v199, %v1493
  %v1495 = vpop.f32.mrb[0].mxu0
  %v1496 = vpop.f32.mrb[0].mxu0
  %v1497 = vpop.f32.mrb[0].mxu0
  %1498 = vdwg.mxu0
  %v1499 = vmax.f32 %v1494, 0.0
  %1501 = vrot.lane.b32.xlu0 %v1499, 80
  %v1502 = vpop.permute.xlu0 %1501
  %1504 = vst.msk [vmem:[#allocation2 + $0x40] sm:$0xff] %vm629, %v1502
  %v1505 = vld [vmem:[%s0 + $0x8] sm:$0xff]
  %v1506 = vpack.c.bf16 %v1505, %v1505
  %1508 = vrot.lane.b32.xlu0 %v1506, 49
  %v1509 = vpop.permute.xlu0 %1508
  %v1511 = vsel %vm242, %v1509, 0
  %1513 = vmatprep.subr.bf16.mxu0 0
  %1514 = vmatpush1.bf16.msra.mxu0 %v239
  %1515 = vmatprep.subr.bf16.mxu0 0
  %1516 = vmatpush1.bf16.msra.mxu0 %v248
  %1517 = vmatprep.subr.bf16.mxu0 0
  %1518 = vmatpush1.bf16.msra.mxu0 0
  %1519 = vmatprep.subr.bf16.mxu0 0
  %1520 = vmatpush1.bf16.msra.mxu0 0
  %1521 = vmatprep.subr.bf16.mxu0 0
  %1522 = vmatpush1.bf16.msra.mxu0 0
  %1523 = vmatprep.subr.bf16.mxu0 0
  %1524 = vmatpush1.bf16.msra.mxu0 0
  %1525 = vmatprep.subr.bf16.mxu0 0
  %1526 = vmatpush1.bf16.msra.mxu0 0
  %1527 = vmatprep.subr.bf16.mxu0 0
  %1528 = vmatpush1.bf16.msra.mxu0 0
  %1529 = vmatprep.subr.bf16.mxu0 0
  %1530 = vmatpush1.bf16.msra.mxu0 0
  %1531 = vmatprep.subr.bf16.mxu0 0
  %1532 = vmatpush1.bf16.msra.mxu0 0
  %1533 = vmatprep.subr.bf16.mxu0 0
  %1534 = vmatpush1.bf16.msra.mxu0 0
  %1535 = vmatprep.subr.bf16.mxu0 0
  %1536 = vmatpush1.bf16.msra.mxu0 0
  %1537 = vmatprep.subr.bf16.mxu0 0
  %1538 = vmatpush1.bf16.msra.mxu0 0
  %1539 = vmatprep.subr.bf16.mxu0 0
  %1540 = vmatpush1.bf16.msra.mxu0 0
  %1541 = vmatprep.subr.bf16.mxu0 0
  %1542 = vmatpush1.bf16.msra.mxu0 0
  %1543 = vmatprep.subr.bf16.mxu0 0
  %1544 = vmatpush1.bf16.msra.mxu0 0
  %1545 = vmatprep.mubr.bf16.mxu0 0
  %1546 = vmatmul.mubr.bf16.gmra.mrb[0].mxu0 %v1511
  %v1547 = vpop.f32.mrb[0].mxu0
  %v1548 = vadd.f32 %v199, %v1547
  %v1549 = vpop.f32.mrb[0].mxu0
  %v1550 = vpop.f32.mrb[0].mxu0
  %v1551 = vpop.f32.mrb[0].mxu0
  %1552 = vdwg.mxu0
  %v1553 = vmax.f32 %v1548, 0.0
  %1554 = vst.msk [vmem:[#allocation2 + $0x48] sm:$0xff] %vm227, %v1553
  %v1555 = vld [vmem:[%s0 + $0x8] sm:$0xff]
  %v1556 = vpack.c.bf16 %v1555, %v1555
  %1558 = vrot.lane.b32.xlu0 %v1556, 40
  %v1559 = vpop.permute.xlu0 %1558
  %v1561 = vsel %vm242, %v1559, 0
  %1563 = vmatprep.subr.bf16.mxu0 0
  %1564 = vmatpush1.bf16.msra.mxu0 %v239
  %1565 = vmatprep.subr.bf16.mxu0 0
  %1566 = vmatpush1.bf16.msra.mxu0 %v248
  %1567 = vmatprep.subr.bf16.mxu0 0
  %1568 = vmatpush1.bf16.msra.mxu0 0
  %1569 = vmatprep.subr.bf16.mxu0 0
  %1570 = vmatpush1.bf16.msra.mxu0 0
  %1571 = vmatprep.subr.bf16.mxu0 0
  %1572 = vmatpush1.bf16.msra.mxu0 0
  %1573 = vmatprep.subr.bf16.mxu0 0
  %1574 = vmatpush1.bf16.msra.mxu0 0
  %1575 = vmatprep.subr.bf16.mxu0 0
  %1576 = vmatpush1.bf16.msra.mxu0 0
  %1577 = vmatprep.subr.bf16.mxu0 0
  %1578 = vmatpush1.bf16.msra.mxu0 0
  %1579 = vmatprep.subr.bf16.mxu0 0
  %1580 = vmatpush1.bf16.msra.mxu0 0
  %1581 = vmatprep.subr.bf16.mxu0 0
  %1582 = vmatpush1.bf16.msra.mxu0 0
  %1583 = vmatprep.subr.bf16.mxu0 0
  %1584 = vmatpush1.bf16.msra.mxu0 0
  %1585 = vmatprep.subr.bf16.mxu0 0
  %1586 = vmatpush1.bf16.msra.mxu0 0
  %1587 = vmatprep.subr.bf16.mxu0 0
  %1588 = vmatpush1.bf16.msra.mxu0 0
  %1589 = vmatprep.subr.bf16.mxu0 0
  %1590 = vmatpush1.bf16.msra.mxu0 0
  %1591 = vmatprep.subr.bf16.mxu0 0
  %1592 = vmatpush1.bf16.msra.mxu0 0
  %1593 = vmatprep.subr.bf16.mxu0 0
  %1594 = vmatpush1.bf16.msra.mxu0 0
  %1595 = vmatprep.mubr.bf16.mxu0 0
  %1596 = vmatmul.mubr.bf16.gmra.mrb[0].mxu0 %v1561
  %v1597 = vpop.f32.mrb[0].mxu0
  %v1598 = vadd.f32 %v199, %v1597
  %v1599 = vpop.f32.mrb[0].mxu0
  %v1600 = vpop.f32.mrb[0].mxu0
  %v1601 = vpop.f32.mrb[0].mxu0
  %1602 = vdwg.mxu0
  %v1603 = vmax.f32 %v1598, 0.0
  %1605 = vrot.lane.b32.xlu0 %v1603, 48
  %v1606 = vpop.permute.xlu0 %1605
  %1608 = vst.msk [vmem:[#allocation2 + $0x48] sm:$0xff] %vm295, %v1606
  %v1609 = vld [vmem:[%s0 + $0x8] sm:$0xff]
  %v1610 = vpack.c.bf16 %v1609, %v1609
  %1612 = vrot.lane.b32.xlu0 %v1610, 31
  %v1613 = vpop.permute.xlu0 %1612
  %v1615 = vsel %vm242, %v1613, 0
  %1617 = vmatprep.subr.bf16.mxu0 0
  %1618 = vmatpush1.bf16.msra.mxu0 %v239
  %1619 = vmatprep.subr.bf16.mxu0 0
  %1620 = vmatpush1.bf16.msra.mxu0 %v248
  %1621 = vmatprep.subr.bf16.mxu0 0
  %1622 = vmatpush1.bf16.msra.mxu0 0
  %1623 = vmatprep.subr.bf16.mxu0 0
  %1624 = vmatpush1.bf16.msra.mxu0 0
  %1625 = vmatprep.subr.bf16.mxu0 0
  %1626 = vmatpush1.bf16.msra.mxu0 0
  %1627 = vmatprep.subr.bf16.mxu0 0
  %1628 = vmatpush1.bf16.msra.mxu0 0
  %1629 = vmatprep.subr.bf16.mxu0 0
  %1630 = vmatpush1.bf16.msra.mxu0 0
  %1631 = vmatprep.subr.bf16.mxu0 0
  %1632 = vmatpush1.bf16.msra.mxu0 0
  %1633 = vmatprep.subr.bf16.mxu0 0
  %1634 = vmatpush1.bf16.msra.mxu0 0
  %1635 = vmatprep.subr.bf16.mxu0 0
  %1636 = vmatpush1.bf16.msra.mxu0 0
  %1637 = vmatprep.subr.bf16.mxu0 0
  %1638 = vmatpush1.bf16.msra.mxu0 0
  %1639 = vmatprep.subr.bf16.mxu0 0
  %1640 = vmatpush1.bf16.msra.mxu0 0
  %1641 = vmatprep.subr.bf16.mxu0 0
  %1642 = vmatpush1.bf16.msra.mxu0 0
  %1643 = vmatprep.subr.bf16.mxu0 0
  %1644 = vmatpush1.bf16.msra.mxu0 0
  %1645 = vmatprep.subr.bf16.mxu0 0
  %1646 = vmatpush1.bf16.msra.mxu0 0
  %1647 = vmatprep.subr.bf16.mxu0 0
  %1648 = vmatpush1.bf16.msra.mxu0 0
  %1649 = vmatprep.mubr.bf16.mxu0 0
  %1650 = vmatmul.mubr.bf16.gmra.mrb[0].mxu0 %v1615
  %v1651 = vpop.f32.mrb[0].mxu0
  %v1652 = vadd.f32 %v199, %v1651
  %v1653 = vpop.f32.mrb[0].mxu0
  %v1654 = vpop.f32.mrb[0].mxu0
  %v1655 = vpop.f32.mrb[0].mxu0
  %1656 = vdwg.mxu0
  %v1657 = vmax.f32 %v1652, 0.0
  %1659 = vrot.lane.b32.xlu0 %v1657, 96
  %v1660 = vpop.permute.xlu0 %1659
  %1662 = vst.msk [vmem:[#allocation2 + $0x48] sm:$0xff] %vm350, %v1660
  %1663 = vst.msk [vmem:[#allocation2 + $0x50] sm:$0xff] %vm352, %v1660
  %v1664 = vld [vmem:[#allocation2] sm:$0xff]
  %v1665 = vld [vmem:[#allocation2 + $0x8] sm:$0xff]
  %v1666 = vld [vmem:[#allocation2 + $0x10] sm:$0xff]
  %v1667 = vpack.c.bf16 %v1664, %v1664
  %v1668 = vpack.c.bf16 %v1665, %v1665
  %v1669 = vpack.c.bf16 %v1666, %v1666
  %v1706 = vunpack.c.l.b16 %v38
  %v1707 = vunpack.c.l.b16 %v39
  %v1708 = vunpack.c.l.b16 %v40
  %v1709 = vunpack.c.l.b16 %v41
  %v1710 = vunpack.c.l.b16 %v42
  %v1711 = vunpack.c.l.b16 %v43
  %v1712 = vunpack.c.l.b16 %v44
  %v1713 = vunpack.c.l.b16 %v45
  %v1714 = vunpack.c.l.b16 %v46
  %v1715 = vunpack.c.l.b16 %v47
  %v1716 = vunpack.c.l.b16 %v48
  %v1717 = vunpack.c.l.b16 %v49
  %v1718 = vunpack.c.l.b16 %v50
  %v1719 = vunpack.c.l.b16 %v51
  %v1720 = vunpack.c.l.b16 %v52
  %v1721 = vunpack.c.l.b16 %v53
  %v1722 = vunpack.c.l.b16 %v54
  %v1723 = vunpack.c.l.b16 %v55
  %v1724 = vunpack.c.l.b16 %v56
  %v1725 = vunpack.c.l.b16 %v57
  %v1726 = vunpack.c.l.b16 %v58
  %v1727 = vunpack.c.l.b16 %v59
  %v1728 = vunpack.c.l.b16 %v60
  %v1729 = vunpack.c.l.b16 %v61
  %v1730 = vunpack.c.l.b16 %v62
  %v1731 = vunpack.c.l.b16 %v63
  %v1732 = vunpack.c.l.b16 %v64
  %v1733 = vunpack.c.l.b16 %v65
  %v1734 = vunpack.c.l.b16 %v66
  %v1735 = vunpack.c.l.b16 %v67
  %v1736 = vunpack.c.l.b16 %v68
  %v1737 = vunpack.c.l.b16 %v69
  %v1738 = vunpack.c.l.b16 %v70
  %v1739 = vunpack.c.l.b16 %v71
  %v1740 = vunpack.c.l.b16 %v72
  %v1741 = vunpack.c.l.b16 %v73
  %v1742 = vpack.c.b16 %v1707, %v1706
  %v1743 = vpack.c.b16 %v1709, %v1708
  %v1744 = vpack.c.b16 %v1711, %v1710
  %v1745 = vpack.c.b16 %v1713, %v1712
  %v1746 = vpack.c.b16 %v1715, %v1714
  %v1747 = vpack.c.b16 %v1717, %v1716
  %v1748 = vpack.c.b16 %v1719, %v1718
  %v1749 = vpack.c.b16 %v1721, %v1720
  %v1750 = vpack.c.b16 %v1723, %v1722
  %v1751 = vpack.c.b16 %v1725, %v1724
  %v1752 = vpack.c.b16 %v1727, %v1726
  %v1753 = vpack.c.b16 %v1729, %v1728
  %v1754 = vpack.c.b16 %v1731, %v1730
  %v1755 = vpack.c.b16 %v1733, %v1732
  %v1756 = vpack.c.b16 %v1735, %v1734
  %v1757 = vpack.c.b16 %v1737, %v1736
  %v1758 = vpack.c.b16 %v1739, %v1738
  %v1759 = vpack.c.b16 %v1741, %v1740
  %v1779 = vsel %vm519, %v1669, 0
  %1781 = vmatprep.subr.bf16.mxu0 0
  %1782 = vmatpush1.bf16.msra.mxu0 %v1742
  %1783 = vmatprep.subr.bf16.mxu0 0
  %1784 = vmatpush1.bf16.msra.mxu0 %v1743
  %1785 = vmatprep.subr.bf16.mxu0 0
  %1786 = vmatpush1.bf16.msra.mxu0 %v1744
  %1787 = vmatprep.subr.bf16.mxu0 0
  %1788 = vmatpush1.bf16.msra.mxu0 %v1745
  %1789 = vmatprep.subr.bf16.mxu0 0
  %1790 = vmatpush1.bf16.msra.mxu0 %v1746
  %1791 = vmatprep.subr.bf16.mxu0 0
  %1792 = vmatpush1.bf16.msra.mxu0 %v1747
  %1793 = vmatprep.subr.bf16.mxu0 0
  %1794 = vmatpush1.bf16.msra.mxu0 %v1748
  %1795 = vmatprep.subr.bf16.mxu0 0
  %1796 = vmatpush1.bf16.msra.mxu0 %v1749
  %1797 = vmatprep.subr.bf16.mxu0 0
  %1798 = vmatpush1.bf16.msra.mxu0 %v1750
  %1799 = vmatprep.subr.bf16.mxu0 0
  %1800 = vmatpush1.bf16.msra.mxu0 %v1751
  %1801 = vmatprep.subr.bf16.mxu0 0
  %1802 = vmatpush1.bf16.msra.mxu0 %v1752
  %1803 = vmatprep.subr.bf16.mxu0 0
  %1804 = vmatpush1.bf16.msra.mxu0 %v1753
  %1805 = vmatprep.subr.bf16.mxu0 0
  %1806 = vmatpush1.bf16.msra.mxu0 %v1754
  %1807 = vmatprep.subr.bf16.mxu0 0
  %1808 = vmatpush1.bf16.msra.mxu0 %v1755
  %1809 = vmatprep.subr.bf16.mxu0 0
  %1810 = vmatpush1.bf16.msra.mxu0 %v1756
  %1811 = vmatprep.subr.bf16.mxu0 0
  %1812 = vmatpush1.bf16.msra.mxu0 %v1757
  %1813 = vmatprep.mubr.bf16.mxu0 %v1668
  %1814 = vmatmul.mubr.bf16.gmra.mrb[0].mxu0 %v1667
  %v1815 = vpop.f32.mrb[0].mxu0
  %v1816 = vadd.f32 %v206, %v1815
  %v1817 = vpop.f32.mrb[0].mxu0
  %v1818 = vpop.f32.mrb[0].mxu0
  %v1819 = vpop.f32.mrb[0].mxu0
  %1820 = vdwg.mxu0
  %1821 = vmatprep.subr.bf16.mxu0 0
  %1822 = vmatpush1.bf16.msra.mxu0 %v1758
  %1823 = vmatprep.subr.bf16.mxu0 0
  %1824 = vmatpush1.bf16.msra.mxu0 %v1759
  %1825 = vmatprep.subr.bf16.mxu0 0
  %1826 = vmatpush1.bf16.msra.mxu0 0
  %1827 = vmatprep.subr.bf16.mxu0 0
  %1828 = vmatpush1.bf16.msra.mxu0 0
  %1829 = vmatprep.subr.bf16.mxu0 0
  %1830 = vmatpush1.bf16.msra.mxu0 0
  %1831 = vmatprep.subr.bf16.mxu0 0
  %1832 = vmatpush1.bf16.msra.mxu0 0
  %1833 = vmatprep.subr.bf16.mxu0 0
  %1834 = vmatpush1.bf16.msra.mxu0 0
  %1835 = vmatprep.subr.bf16.mxu0 0
  %1836 = vmatpush1.bf16.msra.mxu0 0
  %1837 = vmatprep.subr.bf16.mxu0 0
  %1838 = vmatpush1.bf16.msra.mxu0 0
  %1839 = vmatprep.subr.bf16.mxu0 0
  %1840 = vmatpush1.bf16.msra.mxu0 0
  %1841 = vmatprep.subr.bf16.mxu0 0
  %1842 = vmatpush1.bf16.msra.mxu0 0
  %1843 = vmatprep.subr.bf16.mxu0 0
  %1844 = vmatpush1.bf16.msra.mxu0 0
  %1845 = vmatprep.subr.bf16.mxu0 0
  %1846 = vmatpush1.bf16.msra.mxu0 0
  %1847 = vmatprep.subr.bf16.mxu0 0
  %1848 = vmatpush1.bf16.msra.mxu0 0
  %1849 = vmatprep.subr.bf16.mxu0 0
  %1850 = vmatpush1.bf16.msra.mxu0 0
  %1851 = vmatprep.subr.bf16.mxu0 0
  %1852 = vmatpush1.bf16.msra.mxu0 0
  %1853 = vmatprep.mubr.bf16.mxu0 0
  %1854 = vmatmul.mubr.bf16.gmra.mrb[0].mxu0 %v1779
  %v1855 = vpop.f32.mrb[0].mxu0
  %v1856 = vadd.f32 %v1816, %v1855
  %v1857 = vpop.f32.mrb[0].mxu0
  %v1858 = vpop.f32.mrb[0].mxu0
  %v1859 = vpop.f32.mrb[0].mxu0
  %1860 = vdwg.mxu0
  %v1861 = vmax.f32 %v1856, 0.0
  %1863 = vrot.lane.b32.xlu0 %v1861, 96
  %v1864 = vpop.permute.xlu0 %1863
  %1866 = vst.msk [vmem:[#allocation3] sm:$0xff] %vm350, %v1864
  %vm1867 = vcmask 523264
  %1868 = vst.msk [vmem:[#allocation3 + $0x8] sm:$0xff] %vm1867, %v1864
  %v1869 = vld [vmem:[#allocation2 + $0x8] sm:$0xff]
  %v1870 = vld [vmem:[#allocation2 + $0x10] sm:$0xff]
  %v1871 = vld [vmem:[#allocation2 + $0x18] sm:$0xff]
  %v1872 = vpack.c.bf16 %v1869, %v1869
  %v1873 = vpack.c.bf16 %v1870, %v1870
  %v1874 = vpack.c.bf16 %v1871, %v1871
  %1878 = vrot.lane.b32.xlu0 %v1872, 112
  %v1879 = vpop.permute.xlu0 %1878
  %1880 = vrot.lane.b32.xlu0 %v1873, 112
  %v1881 = vpop.permute.xlu0 %1880
  %1882 = vrot.lane.b32.xlu0 %v1874, 112
  %v1883 = vpop.permute.xlu0 %1882
  %vm1884 = vcmask 916480
  %v1885 = vsel %vm1884, %v1879, %v1881
  %v1886 = vsel %vm1884, %v1881, %v1883
  %v1890 = vsel %vm519, %v1883, 0
  %1892 = vmatprep.subr.bf16.mxu0 0
  %1893 = vmatpush1.bf16.msra.mxu0 %v1742
  %1894 = vmatprep.subr.bf16.mxu0 0
  %1895 = vmatpush1.bf16.msra.mxu0 %v1743
  %1896 = vmatprep.subr.bf16.mxu0 0
  %1897 = vmatpush1.bf16.msra.mxu0 %v1744
  %1898 = vmatprep.subr.bf16.mxu0 0
  %1899 = vmatpush1.bf16.msra.mxu0 %v1745
  %1900 = vmatprep.subr.bf16.mxu0 0
  %1901 = vmatpush1.bf16.msra.mxu0 %v1746
  %1902 = vmatprep.subr.bf16.mxu0 0
  %1903 = vmatpush1.bf16.msra.mxu0 %v1747
  %1904 = vmatprep.subr.bf16.mxu0 0
  %1905 = vmatpush1.bf16.msra.mxu0 %v1748
  %1906 = vmatprep.subr.bf16.mxu0 0
  %1907 = vmatpush1.bf16.msra.mxu0 %v1749
  %1908 = vmatprep.subr.bf16.mxu0 0
  %1909 = vmatpush1.bf16.msra.mxu0 %v1750
  %1910 = vmatprep.subr.bf16.mxu0 0
  %1911 = vmatpush1.bf16.msra.mxu0 %v1751
  %1912 = vmatprep.subr.bf16.mxu0 0
  %1913 = vmatpush1.bf16.msra.mxu0 %v1752
  %1914 = vmatprep.subr.bf16.mxu0 0
  %1915 = vmatpush1.bf16.msra.mxu0 %v1753
  %1916 = vmatprep.subr.bf16.mxu0 0
  %1917 = vmatpush1.bf16.msra.mxu0 %v1754
  %1918 = vmatprep.subr.bf16.mxu0 0
  %1919 = vmatpush1.bf16.msra.mxu0 %v1755
  %1920 = vmatprep.subr.bf16.mxu0 0
  %1921 = vmatpush1.bf16.msra.mxu0 %v1756
  %1922 = vmatprep.subr.bf16.mxu0 0
  %1923 = vmatpush1.bf16.msra.mxu0 %v1757
  %1924 = vmatprep.mubr.bf16.mxu0 %v1886
  %1925 = vmatmul.mubr.bf16.gmra.mrb[0].mxu0 %v1885
  %v1926 = vpop.f32.mrb[0].mxu0
  %v1927 = vadd.f32 %v206, %v1926
  %v1928 = vpop.f32.mrb[0].mxu0
  %v1929 = vpop.f32.mrb[0].mxu0
  %v1930 = vpop.f32.mrb[0].mxu0
  %1931 = vdwg.mxu0
  %1932 = vmatprep.subr.bf16.mxu0 0
  %1933 = vmatpush1.bf16.msra.mxu0 %v1758
  %1934 = vmatprep.subr.bf16.mxu0 0
  %1935 = vmatpush1.bf16.msra.mxu0 %v1759
  %1936 = vmatprep.subr.bf16.mxu0 0
  %1937 = vmatpush1.bf16.msra.mxu0 0
  %1938 = vmatprep.subr.bf16.mxu0 0
  %1939 = vmatpush1.bf16.msra.mxu0 0
  %1940 = vmatprep.subr.bf16.mxu0 0
  %1941 = vmatpush1.bf16.msra.mxu0 0
  %1942 = vmatprep.subr.bf16.mxu0 0
  %1943 = vmatpush1.bf16.msra.mxu0 0
  %1944 = vmatprep.subr.bf16.mxu0 0
  %1945 = vmatpush1.bf16.msra.mxu0 0
  %1946 = vmatprep.subr.bf16.mxu0 0
  %1947 = vmatpush1.bf16.msra.mxu0 0
  %1948 = vmatprep.subr.bf16.mxu0 0
  %1949 = vmatpush1.bf16.msra.mxu0 0
  %1950 = vmatprep.subr.bf16.mxu0 0
  %1951 = vmatpush1.bf16.msra.mxu0 0
  %1952 = vmatprep.subr.bf16.mxu0 0
  %1953 = vmatpush1.bf16.msra.mxu0 0
  %1954 = vmatprep.subr.bf16.mxu0 0
  %1955 = vmatpush1.bf16.msra.mxu0 0
  %1956 = vmatprep.subr.bf16.mxu0 0
  %1957 = vmatpush1.bf16.msra.mxu0 0
  %1958 = vmatprep.subr.bf16.mxu0 0
  %1959 = vmatpush1.bf16.msra.mxu0 0
  %1960 = vmatprep.subr.bf16.mxu0 0
  %1961 = vmatpush1.bf16.msra.mxu0 0
  %1962 = vmatprep.subr.bf16.mxu0 0
  %1963 = vmatpush1.bf16.msra.mxu0 0
  %1964 = vmatprep.mubr.bf16.mxu0 0
  %1965 = vmatmul.mubr.bf16.gmra.mrb[0].mxu0 %v1890
  %v1966 = vpop.f32.mrb[0].mxu0
  %v1967 = vadd.f32 %v1927, %v1966
  %v1968 = vpop.f32.mrb[0].mxu0
  %v1969 = vpop.f32.mrb[0].mxu0
  %v1970 = vpop.f32.mrb[0].mxu0
  %1971 = vdwg.mxu0
  %v1972 = vmax.f32 %v1967, 0.0
  %1974 = vrot.lane.b32.xlu0 %v1972, 64
  %v1975 = vpop.permute.xlu0 %1974
  %vm1977 = vcmask 1048064
  %1978 = vst.msk [vmem:[#allocation3 + $0x8] sm:$0xff] %vm1977, %v1975
  %1979 = vst.msk [vmem:[#allocation3 + $0x10] sm:$0xff] %vm519, %v1975
  %v1980 = vld [vmem:[#allocation2 + $0x10] sm:$0xff]
  %v1981 = vld [vmem:[#allocation2 + $0x18] sm:$0xff]
  %v1982 = vld [vmem:[#allocation2 + $0x20] sm:$0xff]
  %v1983 = vpack.c.bf16 %v1980, %v1980
  %v1984 = vpack.c.bf16 %v1981, %v1981
  %v1985 = vpack.c.bf16 %v1982, %v1982
  %1989 = vrot.lane.b32.xlu0 %v1983, 96
  %v1990 = vpop.permute.xlu0 %1989
  %1991 = vrot.lane.b32.xlu0 %v1984, 96
  %v1992 = vpop.permute.xlu0 %1991
  %1993 = vrot.lane.b32.xlu0 %v1985, 96
  %v1994 = vpop.permute.xlu0 %1993
  %vm1995 = vcmask 785408
  %v1996 = vsel %vm1995, %v1990, %v1992
  %v1997 = vsel %vm1995, %v1992, %v1994
  %v2001 = vsel %vm519, %v1994, 0
  %2003 = vmatprep.subr.bf16.mxu0 0
  %2004 = vmatpush1.bf16.msra.mxu0 %v1742
  %2005 = vmatprep.subr.bf16.mxu0 0
  %2006 = vmatpush1.bf16.msra.mxu0 %v1743
  %2007 = vmatprep.subr.bf16.mxu0 0
  %2008 = vmatpush1.bf16.msra.mxu0 %v1744
  %2009 = vmatprep.subr.bf16.mxu0 0
  %2010 = vmatpush1.bf16.msra.mxu0 %v1745
  %2011 = vmatprep.subr.bf16.mxu0 0
  %2012 = vmatpush1.bf16.msra.mxu0 %v1746
  %2013 = vmatprep.subr.bf16.mxu0 0
  %2014 = vmatpush1.bf16.msra.mxu0 %v1747
  %2015 = vmatprep.subr.bf16.mxu0 0
  %2016 = vmatpush1.bf16.msra.mxu0 %v1748
  %2017 = vmatprep.subr.bf16.mxu0 0
  %2018 = vmatpush1.bf16.msra.mxu0 %v1749
  %2019 = vmatprep.subr.bf16.mxu0 0
  %2020 = vmatpush1.bf16.msra.mxu0 %v1750
  %2021 = vmatprep.subr.bf16.mxu0 0
  %2022 = vmatpush1.bf16.msra.mxu0 %v1751
  %2023 = vmatprep.subr.bf16.mxu0 0
  %2024 = vmatpush1.bf16.msra.mxu0 %v1752
  %2025 = vmatprep.subr.bf16.mxu0 0
  %2026 = vmatpush1.bf16.msra.mxu0 %v1753
  %2027 = vmatprep.subr.bf16.mxu0 0
  %2028 = vmatpush1.bf16.msra.mxu0 %v1754
  %2029 = vmatprep.subr.bf16.mxu0 0
  %2030 = vmatpush1.bf16.msra.mxu0 %v1755
  %2031 = vmatprep.subr.bf16.mxu0 0
  %2032 = vmatpush1.bf16.msra.mxu0 %v1756
  %2033 = vmatprep.subr.bf16.mxu0 0
  %2034 = vmatpush1.bf16.msra.mxu0 %v1757
  %2035 = vmatprep.mubr.bf16.mxu0 %v1997
  %2036 = vmatmul.mubr.bf16.gmra.mrb[0].mxu0 %v1996
  %v2037 = vpop.f32.mrb[0].mxu0
  %v2038 = vadd.f32 %v206, %v2037
  %v2039 = vpop.f32.mrb[0].mxu0
  %v2040 = vpop.f32.mrb[0].mxu0
  %v2041 = vpop.f32.mrb[0].mxu0
  %2042 = vdwg.mxu0
  %2043 = vmatprep.subr.bf16.mxu0 0
  %2044 = vmatpush1.bf16.msra.mxu0 %v1758
  %2045 = vmatprep.subr.bf16.mxu0 0
  %2046 = vmatpush1.bf16.msra.mxu0 %v1759
  %2047 = vmatprep.subr.bf16.mxu0 0
  %2048 = vmatpush1.bf16.msra.mxu0 0
  %2049 = vmatprep.subr.bf16.mxu0 0
  %2050 = vmatpush1.bf16.msra.mxu0 0
  %2051 = vmatprep.subr.bf16.mxu0 0
  %2052 = vmatpush1.bf16.msra.mxu0 0
  %2053 = vmatprep.subr.bf16.mxu0 0
  %2054 = vmatpush1.bf16.msra.mxu0 0
  %2055 = vmatprep.subr.bf16.mxu0 0
  %2056 = vmatpush1.bf16.msra.mxu0 0
  %2057 = vmatprep.subr.bf16.mxu0 0
  %2058 = vmatpush1.bf16.msra.mxu0 0
  %2059 = vmatprep.subr.bf16.mxu0 0
  %2060 = vmatpush1.bf16.msra.mxu0 0
  %2061 = vmatprep.subr.bf16.mxu0 0
  %2062 = vmatpush1.bf16.msra.mxu0 0
  %2063 = vmatprep.subr.bf16.mxu0 0
  %2064 = vmatpush1.bf16.msra.mxu0 0
  %2065 = vmatprep.subr.bf16.mxu0 0
  %2066 = vmatpush1.bf16.msra.mxu0 0
  %2067 = vmatprep.subr.bf16.mxu0 0
  %2068 = vmatpush1.bf16.msra.mxu0 0
  %2069 = vmatprep.subr.bf16.mxu0 0
  %2070 = vmatpush1.bf16.msra.mxu0 0
  %2071 = vmatprep.subr.bf16.mxu0 0
  %2072 = vmatpush1.bf16.msra.mxu0 0
  %2073 = vmatprep.subr.bf16.mxu0 0
  %2074 = vmatpush1.bf16.msra.mxu0 0
  %2075 = vmatprep.mubr.bf16.mxu0 0
  %2076 = vmatmul.mubr.bf16.gmra.mrb[0].mxu0 %v2001
  %v2077 = vpop.f32.mrb[0].mxu0
  %v2078 = vadd.f32 %v2038, %v2077
  %v2079 = vpop.f32.mrb[0].mxu0
  %v2080 = vpop.f32.mrb[0].mxu0
  %v2081 = vpop.f32.mrb[0].mxu0
  %2082 = vdwg.mxu0
  %v2083 = vmax.f32 %v2078, 0.0
  %2085 = vrot.lane.b32.xlu0 %v2083, 32
  %v2086 = vpop.permute.xlu0 %2085
  %vm2088 = vcmask 1047808
  %2089 = vst.msk [vmem:[#allocation3 + $0x10] sm:$0xff] %vm2088, %v2086
  %v2090 = vld [vmem:[#allocation2 + $0x18] sm:$0xff]
  %v2091 = vld [vmem:[#allocation2 + $0x20] sm:$0xff]
  %v2092 = vld [vmem:[#allocation2 + $0x28] sm:$0xff]
  %v2093 = vpack.c.bf16 %v2090, %v2090
  %v2094 = vpack.c.bf16 %v2091, %v2091
  %v2095 = vpack.c.bf16 %v2092, %v2092
  %2099 = vrot.lane.b32.xlu0 %v2093, 80
  %v2100 = vpop.permute.xlu0 %2099
  %2101 = vrot.lane.b32.xlu0 %v2094, 80
  %v2102 = vpop.permute.xlu0 %2101
  %2103 = vrot.lane.b32.xlu0 %v2095, 80
  %v2104 = vpop.permute.xlu0 %2103
  %vm2105 = vcmask 654336
  %v2106 = vsel %vm2105, %v2100, %v2102
  %v2107 = vsel %vm2105, %v2102, %v2104
  %v2111 = vsel %vm519, %v2104, 0
  %2113 = vmatprep.subr.bf16.mxu0 0
  %2114 = vmatpush1.bf16.msra.mxu0 %v1742
  %2115 = vmatprep.subr.bf16.mxu0 0
  %2116 = vmatpush1.bf16.msra.mxu0 %v1743
  %2117 = vmatprep.subr.bf16.mxu0 0
  %2118 = vmatpush1.bf16.msra.mxu0 %v1744
  %2119 = vmatprep.subr.bf16.mxu0 0
  %2120 = vmatpush1.bf16.msra.mxu0 %v1745
  %2121 = vmatprep.subr.bf16.mxu0 0
  %2122 = vmatpush1.bf16.msra.mxu0 %v1746
  %2123 = vmatprep.subr.bf16.mxu0 0
  %2124 = vmatpush1.bf16.msra.mxu0 %v1747
  %2125 = vmatprep.subr.bf16.mxu0 0
  %2126 = vmatpush1.bf16.msra.mxu0 %v1748
  %2127 = vmatprep.subr.bf16.mxu0 0
  %2128 = vmatpush1.bf16.msra.mxu0 %v1749
  %2129 = vmatprep.subr.bf16.mxu0 0
  %2130 = vmatpush1.bf16.msra.mxu0 %v1750
  %2131 = vmatprep.subr.bf16.mxu0 0
  %2132 = vmatpush1.bf16.msra.mxu0 %v1751
  %2133 = vmatprep.subr.bf16.mxu0 0
  %2134 = vmatpush1.bf16.msra.mxu0 %v1752
  %2135 = vmatprep.subr.bf16.mxu0 0
  %2136 = vmatpush1.bf16.msra.mxu0 %v1753
  %2137 = vmatprep.subr.bf16.mxu0 0
  %2138 = vmatpush1.bf16.msra.mxu0 %v1754
  %2139 = vmatprep.subr.bf16.mxu0 0
  %2140 = vmatpush1.bf16.msra.mxu0 %v1755
  %2141 = vmatprep.subr.bf16.mxu0 0
  %2142 = vmatpush1.bf16.msra.mxu0 %v1756
  %2143 = vmatprep.subr.bf16.mxu0 0
  %2144 = vmatpush1.bf16.msra.mxu0 %v1757
  %2145 = vmatprep.mubr.bf16.mxu0 %v2107
  %2146 = vmatmul.mubr.bf16.gmra.mrb[0].mxu0 %v2106
  %v2147 = vpop.f32.mrb[0].mxu0
  %v2148 = vadd.f32 %v206, %v2147
  %v2149 = vpop.f32.mrb[0].mxu0
  %v2150 = vpop.f32.mrb[0].mxu0
  %v2151 = vpop.f32.mrb[0].mxu0
  %2152 = vdwg.mxu0
  %2153 = vmatprep.subr.bf16.mxu0 0
  %2154 = vmatpush1.bf16.msra.mxu0 %v1758
  %2155 = vmatprep.subr.bf16.mxu0 0
  %2156 = vmatpush1.bf16.msra.mxu0 %v1759
  %2157 = vmatprep.subr.bf16.mxu0 0
  %2158 = vmatpush1.bf16.msra.mxu0 0
  %2159 = vmatprep.subr.bf16.mxu0 0
  %2160 = vmatpush1.bf16.msra.mxu0 0
  %2161 = vmatprep.subr.bf16.mxu0 0
  %2162 = vmatpush1.bf16.msra.mxu0 0
  %2163 = vmatprep.subr.bf16.mxu0 0
  %2164 = vmatpush1.bf16.msra.mxu0 0
  %2165 = vmatprep.subr.bf16.mxu0 0
  %2166 = vmatpush1.bf16.msra.mxu0 0
  %2167 = vmatprep.subr.bf16.mxu0 0
  %2168 = vmatpush1.bf16.msra.mxu0 0
  %2169 = vmatprep.subr.bf16.mxu0 0
  %2170 = vmatpush1.bf16.msra.mxu0 0
  %2171 = vmatprep.subr.bf16.mxu0 0
  %2172 = vmatpush1.bf16.msra.mxu0 0
  %2173 = vmatprep.subr.bf16.mxu0 0
  %2174 = vmatpush1.bf16.msra.mxu0 0
  %2175 = vmatprep.subr.bf16.mxu0 0
  %2176 = vmatpush1.bf16.msra.mxu0 0
  %2177 = vmatprep.subr.bf16.mxu0 0
  %2178 = vmatpush1.bf16.msra.mxu0 0
  %2179 = vmatprep.subr.bf16.mxu0 0
  %2180 = vmatpush1.bf16.msra.mxu0 0
  %2181 = vmatprep.subr.bf16.mxu0 0
  %2182 = vmatpush1.bf16.msra.mxu0 0
  %2183 = vmatprep.subr.bf16.mxu0 0
  %2184 = vmatpush1.bf16.msra.mxu0 0
  %2185 = vmatprep.mubr.bf16.mxu0 0
  %2186 = vmatmul.mubr.bf16.gmra.mrb[0].mxu0 %v2111
  %v2187 = vpop.f32.mrb[0].mxu0
  %v2188 = vadd.f32 %v2148, %v2187
  %v2189 = vpop.f32.mrb[0].mxu0
  %v2190 = vpop.f32.mrb[0].mxu0
  %v2191 = vpop.f32.mrb[0].mxu0
  %2192 = vdwg.mxu0
  %v2193 = vmax.f32 %v2188, 0.0
  %2194 = vst.msk [vmem:[#allocation3 + $0x18] sm:$0xff] %vm229, %v2193
  %v2195 = vld [vmem:[#allocation2 + $0x20] sm:$0xff]
  %v2196 = vld [vmem:[#allocation2 + $0x28] sm:$0xff]
  %v2197 = vld [vmem:[#allocation2 + $0x30] sm:$0xff]
  %v2198 = vpack.c.bf16 %v2195, %v2195
  %v2199 = vpack.c.bf16 %v2196, %v2196
  %v2200 = vpack.c.bf16 %v2197, %v2197
  %2204 = vrot.lane.b32.xlu0 %v2198, 64
  %v2205 = vpop.permute.xlu0 %2204
  %2206 = vrot.lane.b32.xlu0 %v2199, 64
  %v2207 = vpop.permute.xlu0 %2206
  %2208 = vrot.lane.b32.xlu0 %v2200, 64
  %v2209 = vpop.permute.xlu0 %2208
  %vm2210 = vcmask 523264
  %v2211 = vsel %vm2210, %v2205, %v2207
  %v2212 = vsel %vm2210, %v2207, %v2209
  %v2216 = vsel %vm519, %v2209, 0
  %2218 = vmatprep.subr.bf16.mxu0 0
  %2219 = vmatpush1.bf16.msra.mxu0 %v1742
  %2220 = vmatprep.subr.bf16.mxu0 0
  %2221 = vmatpush1.bf16.msra.mxu0 %v1743
  %2222 = vmatprep.subr.bf16.mxu0 0
  %2223 = vmatpush1.bf16.msra.mxu0 %v1744
  %2224 = vmatprep.subr.bf16.mxu0 0
  %2225 = vmatpush1.bf16.msra.mxu0 %v1745
  %2226 = vmatprep.subr.bf16.mxu0 0
  %2227 = vmatpush1.bf16.msra.mxu0 %v1746
  %2228 = vmatprep.subr.bf16.mxu0 0
  %2229 = vmatpush1.bf16.msra.mxu0 %v1747
  %2230 = vmatprep.subr.bf16.mxu0 0
  %2231 = vmatpush1.bf16.msra.mxu0 %v1748
  %2232 = vmatprep.subr.bf16.mxu0 0
  %2233 = vmatpush1.bf16.msra.mxu0 %v1749
  %2234 = vmatprep.subr.bf16.mxu0 0
  %2235 = vmatpush1.bf16.msra.mxu0 %v1750
  %2236 = vmatprep.subr.bf16.mxu0 0
  %2237 = vmatpush1.bf16.msra.mxu0 %v1751
  %2238 = vmatprep.subr.bf16.mxu0 0
  %2239 = vmatpush1.bf16.msra.mxu0 %v1752
  %2240 = vmatprep.subr.bf16.mxu0 0
  %2241 = vmatpush1.bf16.msra.mxu0 %v1753
  %2242 = vmatprep.subr.bf16.mxu0 0
  %2243 = vmatpush1.bf16.msra.mxu0 %v1754
  %2244 = vmatprep.subr.bf16.mxu0 0
  %2245 = vmatpush1.bf16.msra.mxu0 %v1755
  %2246 = vmatprep.subr.bf16.mxu0 0
  %2247 = vmatpush1.bf16.msra.mxu0 %v1756
  %2248 = vmatprep.subr.bf16.mxu0 0
  %2249 = vmatpush1.bf16.msra.mxu0 %v1757
  %2250 = vmatprep.mubr.bf16.mxu0 %v2212
  %2251 = vmatmul.mubr.bf16.gmra.mrb[0].mxu0 %v2211
  %v2252 = vpop.f32.mrb[0].mxu0
  %v2253 = vadd.f32 %v206, %v2252
  %v2254 = vpop.f32.mrb[0].mxu0
  %v2255 = vpop.f32.mrb[0].mxu0
  %v2256 = vpop.f32.mrb[0].mxu0
  %2257 = vdwg.mxu0
  %2258 = vmatprep.subr.bf16.mxu0 0
  %2259 = vmatpush1.bf16.msra.mxu0 %v1758
  %2260 = vmatprep.subr.bf16.mxu0 0
  %2261 = vmatpush1.bf16.msra.mxu0 %v1759
  %2262 = vmatprep.subr.bf16.mxu0 0
  %2263 = vmatpush1.bf16.msra.mxu0 0
  %2264 = vmatprep.subr.bf16.mxu0 0
  %2265 = vmatpush1.bf16.msra.mxu0 0
  %2266 = vmatprep.subr.bf16.mxu0 0
  %2267 = vmatpush1.bf16.msra.mxu0 0
  %2268 = vmatprep.subr.bf16.mxu0 0
  %2269 = vmatpush1.bf16.msra.mxu0 0
  %2270 = vmatprep.subr.bf16.mxu0 0
  %2271 = vmatpush1.bf16.msra.mxu0 0
  %2272 = vmatprep.subr.bf16.mxu0 0
  %2273 = vmatpush1.bf16.msra.mxu0 0
  %2274 = vmatprep.subr.bf16.mxu0 0
  %2275 = vmatpush1.bf16.msra.mxu0 0
  %2276 = vmatprep.subr.bf16.mxu0 0
  %2277 = vmatpush1.bf16.msra.mxu0 0
  %2278 = vmatprep.subr.bf16.mxu0 0
  %2279 = vmatpush1.bf16.msra.mxu0 0
  %2280 = vmatprep.subr.bf16.mxu0 0
  %2281 = vmatpush1.bf16.msra.mxu0 0
  %2282 = vmatprep.subr.bf16.mxu0 0
  %2283 = vmatpush1.bf16.msra.mxu0 0
  %2284 = vmatprep.subr.bf16.mxu0 0
  %2285 = vmatpush1.bf16.msra.mxu0 0
  %2286 = vmatprep.subr.bf16.mxu0 0
  %2287 = vmatpush1.bf16.msra.mxu0 0
  %2288 = vmatprep.subr.bf16.mxu0 0
  %2289 = vmatpush1.bf16.msra.mxu0 0
  %2290 = vmatprep.mubr.bf16.mxu0 0
  %2291 = vmatmul.mubr.bf16.gmra.mrb[0].mxu0 %v2216
  %v2292 = vpop.f32.mrb[0].mxu0
  %v2293 = vadd.f32 %v2253, %v2292
  %v2294 = vpop.f32.mrb[0].mxu0
  %v2295 = vpop.f32.mrb[0].mxu0
  %v2296 = vpop.f32.mrb[0].mxu0
  %2297 = vdwg.mxu0
  %v2298 = vmax.f32 %v2293, 0.0
  %2300 = vrot.lane.b32.xlu0 %v2298, 96
  %v2301 = vpop.permute.xlu0 %2300
  %2303 = vst.msk [vmem:[#allocation3 + $0x18] sm:$0xff] %vm350, %v2301
  %2304 = vst.msk [vmem:[#allocation3 + $0x20] sm:$0xff] %vm1867, %v2301
  %v2305 = vld [vmem:[#allocation2 + $0x28] sm:$0xff]
  %v2306 = vld [vmem:[#allocation2 + $0x30] sm:$0xff]
  %v2307 = vld [vmem:[#allocation2 + $0x38] sm:$0xff]
  %v2308 = vpack.c.bf16 %v2305, %v2305
  %v2309 = vpack.c.bf16 %v2306, %v2306
  %v2310 = vpack.c.bf16 %v2307, %v2307
  %2314 = vrot.lane.b32.xlu0 %v2308, 48
  %v2315 = vpop.permute.xlu0 %2314
  %2316 = vrot.lane.b32.xlu0 %v2309, 48
  %v2317 = vpop.permute.xlu0 %2316
  %2318 = vrot.lane.b32.xlu0 %v2310, 48
  %v2319 = vpop.permute.xlu0 %2318
  %vm2320 = vcmask 392192
  %v2321 = vsel %vm2320, %v2315, %v2317
  %v2322 = vsel %vm2320, %v2317, %v2319
  %v2326 = vsel %vm519, %v2319, 0
  %2328 = vmatprep.subr.bf16.mxu0 0
  %2329 = vmatpush1.bf16.msra.mxu0 %v1742
  %2330 = vmatprep.subr.bf16.mxu0 0
  %2331 = vmatpush1.bf16.msra.mxu0 %v1743
  %2332 = vmatprep.subr.bf16.mxu0 0
  %2333 = vmatpush1.bf16.msra.mxu0 %v1744
  %2334 = vmatprep.subr.bf16.mxu0 0
  %2335 = vmatpush1.bf16.msra.mxu0 %v1745
  %2336 = vmatprep.subr.bf16.mxu0 0
  %2337 = vmatpush1.bf16.msra.mxu0 %v1746
  %2338 = vmatprep.subr.bf16.mxu0 0
  %2339 = vmatpush1.bf16.msra.mxu0 %v1747
  %2340 = vmatprep.subr.bf16.mxu0 0
  %2341 = vmatpush1.bf16.msra.mxu0 %v1748
  %2342 = vmatprep.subr.bf16.mxu0 0
  %2343 = vmatpush1.bf16.msra.mxu0 %v1749
  %2344 = vmatprep.subr.bf16.mxu0 0
  %2345 = vmatpush1.bf16.msra.mxu0 %v1750
  %2346 = vmatprep.subr.bf16.mxu0 0
  %2347 = vmatpush1.bf16.msra.mxu0 %v1751
  %2348 = vmatprep.subr.bf16.mxu0 0
  %2349 = vmatpush1.bf16.msra.mxu0 %v1752
  %2350 = vmatprep.subr.bf16.mxu0 0
  %2351 = vmatpush1.bf16.msra.mxu0 %v1753
  %2352 = vmatprep.subr.bf16.mxu0 0
  %2353 = vmatpush1.bf16.msra.mxu0 %v1754
  %2354 = vmatprep.subr.bf16.mxu0 0
  %2355 = vmatpush1.bf16.msra.mxu0 %v1755
  %2356 = vmatprep.subr.bf16.mxu0 0
  %2357 = vmatpush1.bf16.msra.mxu0 %v1756
  %2358 = vmatprep.subr.bf16.mxu0 0
  %2359 = vmatpush1.bf16.msra.mxu0 %v1757
  %2360 = vmatprep.mubr.bf16.mxu0 %v2322
  %2361 = vmatmul.mubr.bf16.gmra.mrb[0].mxu0 %v2321
  %v2362 = vpop.f32.mrb[0].mxu0
  %v2363 = vadd.f32 %v206, %v2362
  %v2364 = vpop.f32.mrb[0].mxu0
  %v2365 = vpop.f32.mrb[0].mxu0
  %v2366 = vpop.f32.mrb[0].mxu0
  %2367 = vdwg.mxu0
  %2368 = vmatprep.subr.bf16.mxu0 0
  %2369 = vmatpush1.bf16.msra.mxu0 %v1758
  %2370 = vmatprep.subr.bf16.mxu0 0
  %2371 = vmatpush1.bf16.msra.mxu0 %v1759
  %2372 = vmatprep.subr.bf16.mxu0 0
  %2373 = vmatpush1.bf16.msra.mxu0 0
  %2374 = vmatprep.subr.bf16.mxu0 0
  %2375 = vmatpush1.bf16.msra.mxu0 0
  %2376 = vmatprep.subr.bf16.mxu0 0
  %2377 = vmatpush1.bf16.msra.mxu0 0
  %2378 = vmatprep.subr.bf16.mxu0 0
  %2379 = vmatpush1.bf16.msra.mxu0 0
  %2380 = vmatprep.subr.bf16.mxu0 0
  %2381 = vmatpush1.bf16.msra.mxu0 0
  %2382 = vmatprep.subr.bf16.mxu0 0
  %2383 = vmatpush1.bf16.msra.mxu0 0
  %2384 = vmatprep.subr.bf16.mxu0 0
  %2385 = vmatpush1.bf16.msra.mxu0 0
  %2386 = vmatprep.subr.bf16.mxu0 0
  %2387 = vmatpush1.bf16.msra.mxu0 0
  %2388 = vmatprep.subr.bf16.mxu0 0
  %2389 = vmatpush1.bf16.msra.mxu0 0
  %2390 = vmatprep.subr.bf16.mxu0 0
  %2391 = vmatpush1.bf16.msra.mxu0 0
  %2392 = vmatprep.subr.bf16.mxu0 0
  %2393 = vmatpush1.bf16.msra.mxu0 0
  %2394 = vmatprep.subr.bf16.mxu0 0
  %2395 = vmatpush1.bf16.msra.mxu0 0
  %2396 = vmatprep.subr.bf16.mxu0 0
  %2397 = vmatpush1.bf16.msra.mxu0 0
  %2398 = vmatprep.subr.bf16.mxu0 0
  %2399 = vmatpush1.bf16.msra.mxu0 0
  %2400 = vmatprep.mubr.bf16.mxu0 0
  %2401 = vmatmul.mubr.bf16.gmra.mrb[0].mxu0 %v2326
  %v2402 = vpop.f32.mrb[0].mxu0
  %v2403 = vadd.f32 %v2363, %v2402
  %v2404 = vpop.f32.mrb[0].mxu0
  %v2405 = vpop.f32.mrb[0].mxu0
  %v2406 = vpop.f32.mrb[0].mxu0
  %2407 = vdwg.mxu0
  %v2408 = vmax.f32 %v2403, 0.0
  %2410 = vrot.lane.b32.xlu0 %v2408, 64
  %v2411 = vpop.permute.xlu0 %2410
  %2413 = vst.msk [vmem:[#allocation3 + $0x20] sm:$0xff] %vm1977, %v2411
  %2414 = vst.msk [vmem:[#allocation3 + $0x28] sm:$0xff] %vm519, %v2411
  %v2415 = vld [vmem:[#allocation2 + $0x30] sm:$0xff]
  %v2416 = vld [vmem:[#allocation2 + $0x38] sm:$0xff]
  %v2417 = vld [vmem:[#allocation2 + $0x40] sm:$0xff]
  %v2418 = vpack.c.bf16 %v2415, %v2415
  %v2419 = vpack.c.bf16 %v2416, %v2416
  %v2420 = vpack.c.bf16 %v2417, %v2417
  %2424 = vrot.lane.b32.xlu0 %v2418, 32
  %v2425 = vpop.permute.xlu0 %2424
  %2426 = vrot.lane.b32.xlu0 %v2419, 32
  %v2427 = vpop.permute.xlu0 %2426
  %2428 = vrot.lane.b32.xlu0 %v2420, 32
  %v2429 = vpop.permute.xlu0 %2428
  %vm2430 = vcmask 261120
  %v2431 = vsel %vm2430, %v2425, %v2427
  %v2432 = vsel %vm2430, %v2427, %v2429
  %v2436 = vsel %vm519, %v2429, 0
  %2438 = vmatprep.subr.bf16.mxu0 0
  %2439 = vmatpush1.bf16.msra.mxu0 %v1742
  %2440 = vmatprep.subr.bf16.mxu0 0
  %2441 = vmatpush1.bf16.msra.mxu0 %v1743
  %2442 = vmatprep.subr.bf16.mxu0 0
  %2443 = vmatpush1.bf16.msra.mxu0 %v1744
  %2444 = vmatprep.subr.bf16.mxu0 0
  %2445 = vmatpush1.bf16.msra.mxu0 %v1745
  %2446 = vmatprep.subr.bf16.mxu0 0
  %2447 = vmatpush1.bf16.msra.mxu0 %v1746
  %2448 = vmatprep.subr.bf16.mxu0 0
  %2449 = vmatpush1.bf16.msra.mxu0 %v1747
  %2450 = vmatprep.subr.bf16.mxu0 0
  %2451 = vmatpush1.bf16.msra.mxu0 %v1748
  %2452 = vmatprep.subr.bf16.mxu0 0
  %2453 = vmatpush1.bf16.msra.mxu0 %v1749
  %2454 = vmatprep.subr.bf16.mxu0 0
  %2455 = vmatpush1.bf16.msra.mxu0 %v1750
  %2456 = vmatprep.subr.bf16.mxu0 0
  %2457 = vmatpush1.bf16.msra.mxu0 %v1751
  %2458 = vmatprep.subr.bf16.mxu0 0
  %2459 = vmatpush1.bf16.msra.mxu0 %v1752
  %2460 = vmatprep.subr.bf16.mxu0 0
  %2461 = vmatpush1.bf16.msra.mxu0 %v1753
  %2462 = vmatprep.subr.bf16.mxu0 0
  %2463 = vmatpush1.bf16.msra.mxu0 %v1754
  %2464 = vmatprep.subr.bf16.mxu0 0
  %2465 = vmatpush1.bf16.msra.mxu0 %v1755
  %2466 = vmatprep.subr.bf16.mxu0 0
  %2467 = vmatpush1.bf16.msra.mxu0 %v1756
  %2468 = vmatprep.subr.bf16.mxu0 0
  %2469 = vmatpush1.bf16.msra.mxu0 %v1757
  %2470 = vmatprep.mubr.bf16.mxu0 %v2432
  %2471 = vmatmul.mubr.bf16.gmra.mrb[0].mxu0 %v2431
  %v2472 = vpop.f32.mrb[0].mxu0
  %v2473 = vadd.f32 %v206, %v2472
  %v2474 = vpop.f32.mrb[0].mxu0
  %v2475 = vpop.f32.mrb[0].mxu0
  %v2476 = vpop.f32.mrb[0].mxu0
  %2477 = vdwg.mxu0
  %2478 = vmatprep.subr.bf16.mxu0 0
  %2479 = vmatpush1.bf16.msra.mxu0 %v1758
  %2480 = vmatprep.subr.bf16.mxu0 0
  %2481 = vmatpush1.bf16.msra.mxu0 %v1759
  %2482 = vmatprep.subr.bf16.mxu0 0
  %2483 = vmatpush1.bf16.msra.mxu0 0
  %2484 = vmatprep.subr.bf16.mxu0 0
  %2485 = vmatpush1.bf16.msra.mxu0 0
  %2486 = vmatprep.subr.bf16.mxu0 0
  %2487 = vmatpush1.bf16.msra.mxu0 0
  %2488 = vmatprep.subr.bf16.mxu0 0
  %2489 = vmatpush1.bf16.msra.mxu0 0
  %2490 = vmatprep.subr.bf16.mxu0 0
  %2491 = vmatpush1.bf16.msra.mxu0 0
  %2492 = vmatprep.subr.bf16.mxu0 0
  %2493 = vmatpush1.bf16.msra.mxu0 0
  %2494 = vmatprep.subr.bf16.mxu0 0
  %2495 = vmatpush1.bf16.msra.mxu0 0
  %2496 = vmatprep.subr.bf16.mxu0 0
  %2497 = vmatpush1.bf16.msra.mxu0 0
  %2498 = vmatprep.subr.bf16.mxu0 0
  %2499 = vmatpush1.bf16.msra.mxu0 0
  %2500 = vmatprep.subr.bf16.mxu0 0
  %2501 = vmatpush1.bf16.msra.mxu0 0
  %2502 = vmatprep.subr.bf16.mxu0 0
  %2503 = vmatpush1.bf16.msra.mxu0 0
  %2504 = vmatprep.subr.bf16.mxu0 0
  %2505 = vmatpush1.bf16.msra.mxu0 0
  %2506 = vmatprep.subr.bf16.mxu0 0
  %2507 = vmatpush1.bf16.msra.mxu0 0
  %2508 = vmatprep.subr.bf16.mxu0 0
  %2509 = vmatpush1.bf16.msra.mxu0 0
  %2510 = vmatprep.mubr.bf16.mxu0 0
  %2511 = vmatmul.mubr.bf16.gmra.mrb[0].mxu0 %v2436
  %v2512 = vpop.f32.mrb[0].mxu0
  %v2513 = vadd.f32 %v2473, %v2512
  %v2514 = vpop.f32.mrb[0].mxu0
  %v2515 = vpop.f32.mrb[0].mxu0
  %v2516 = vpop.f32.mrb[0].mxu0
  %2517 = vdwg.mxu0
  %v2518 = vmax.f32 %v2513, 0.0
  %2520 = vrot.lane.b32.xlu0 %v2518, 32
  %v2521 = vpop.permute.xlu0 %2520
  %2523 = vst.msk [vmem:[#allocation3 + $0x28] sm:$0xff] %vm2088, %v2521
  %v2524 = vld [vmem:[#allocation2 + $0x38] sm:$0xff]
  %v2525 = vld [vmem:[#allocation2 + $0x40] sm:$0xff]
  %v2526 = vld [vmem:[#allocation2 + $0x48] sm:$0xff]
  %v2527 = vld [vmem:[#allocation2 + $0x50] sm:$0xff]
  %v2528 = vpack.c.bf16 %v2524, %v2524
  %v2529 = vpack.c.bf16 %v2525, %v2525
  %v2530 = vpack.c.bf16 %v2526, %v2526
  %v2531 = vpack.c.bf16 %v2527, %v2527
  %2536 = vrot.lane.b32.xlu0 %v2528, 16
  %v2537 = vpop.permute.xlu0 %2536
  %2538 = vrot.lane.b32.xlu0 %v2529, 16
  %v2539 = vpop.permute.xlu0 %2538
  %2540 = vrot.lane.b32.xlu0 %v2530, 16
  %v2541 = vpop.permute.xlu0 %2540
  %2542 = vrot.lane.b32.xlu0 %v2531, 16
  %v2543 = vpop.permute.xlu0 %2542
  %vm2544 = vcmask 130048
  %v2545 = vsel %vm2544, %v2537, %v2539
  %v2546 = vsel %vm2544, %v2539, %v2541
  %v2547 = vsel %vm2544, %v2541, %v2543
  %v2551 = vsel %vm519, %v2547, 0
  %2553 = vmatprep.subr.bf16.mxu0 0
  %2554 = vmatpush1.bf16.msra.mxu0 %v1742
  %2555 = vmatprep.subr.bf16.mxu0 0
  %2556 = vmatpush1.bf16.msra.mxu0 %v1743
  %2557 = vmatprep.subr.bf16.mxu0 0
  %2558 = vmatpush1.bf16.msra.mxu0 %v1744
  %2559 = vmatprep.subr.bf16.mxu0 0
  %2560 = vmatpush1.bf16.msra.mxu0 %v1745
  %2561 = vmatprep.subr.bf16.mxu0 0
  %2562 = vmatpush1.bf16.msra.mxu0 %v1746
  %2563 = vmatprep.subr.bf16.mxu0 0
  %2564 = vmatpush1.bf16.msra.mxu0 %v1747
  %2565 = vmatprep.subr.bf16.mxu0 0
  %2566 = vmatpush1.bf16.msra.mxu0 %v1748
  %2567 = vmatprep.subr.bf16.mxu0 0
  %2568 = vmatpush1.bf16.msra.mxu0 %v1749
  %2569 = vmatprep.subr.bf16.mxu0 0
  %2570 = vmatpush1.bf16.msra.mxu0 %v1750
  %2571 = vmatprep.subr.bf16.mxu0 0
  %2572 = vmatpush1.bf16.msra.mxu0 %v1751
  %2573 = vmatprep.subr.bf16.mxu0 0
  %2574 = vmatpush1.bf16.msra.mxu0 %v1752
  %2575 = vmatprep.subr.bf16.mxu0 0
  %2576 = vmatpush1.bf16.msra.mxu0 %v1753
  %2577 = vmatprep.subr.bf16.mxu0 0
  %2578 = vmatpush1.bf16.msra.mxu0 %v1754
  %2579 = vmatprep.subr.bf16.mxu0 0
  %2580 = vmatpush1.bf16.msra.mxu0 %v1755
  %2581 = vmatprep.subr.bf16.mxu0 0
  %2582 = vmatpush1.bf16.msra.mxu0 %v1756
  %2583 = vmatprep.subr.bf16.mxu0 0
  %2584 = vmatpush1.bf16.msra.mxu0 %v1757
  %2585 = vmatprep.mubr.bf16.mxu0 %v2546
  %2586 = vmatmul.mubr.bf16.gmra.mrb[0].mxu0 %v2545
  %v2587 = vpop.f32.mrb[0].mxu0
  %v2588 = vadd.f32 %v206, %v2587
  %v2589 = vpop.f32.mrb[0].mxu0
  %v2590 = vpop.f32.mrb[0].mxu0
  %v2591 = vpop.f32.mrb[0].mxu0
  %2592 = vdwg.mxu0
  %2593 = vmatprep.subr.bf16.mxu0 0
  %2594 = vmatpush1.bf16.msra.mxu0 %v1758
  %2595 = vmatprep.subr.bf16.mxu0 0
  %2596 = vmatpush1.bf16.msra.mxu0 %v1759
  %2597 = vmatprep.subr.bf16.mxu0 0
  %2598 = vmatpush1.bf16.msra.mxu0 0
  %2599 = vmatprep.subr.bf16.mxu0 0
  %2600 = vmatpush1.bf16.msra.mxu0 0
  %2601 = vmatprep.subr.bf16.mxu0 0
  %2602 = vmatpush1.bf16.msra.mxu0 0
  %2603 = vmatprep.subr.bf16.mxu0 0
  %2604 = vmatpush1.bf16.msra.mxu0 0
  %2605 = vmatprep.subr.bf16.mxu0 0
  %2606 = vmatpush1.bf16.msra.mxu0 0
  %2607 = vmatprep.subr.bf16.mxu0 0
  %2608 = vmatpush1.bf16.msra.mxu0 0
  %2609 = vmatprep.subr.bf16.mxu0 0
  %2610 = vmatpush1.bf16.msra.mxu0 0
  %2611 = vmatprep.subr.bf16.mxu0 0
  %2612 = vmatpush1.bf16.msra.mxu0 0
  %2613 = vmatprep.subr.bf16.mxu0 0
  %2614 = vmatpush1.bf16.msra.mxu0 0
  %2615 = vmatprep.subr.bf16.mxu0 0
  %2616 = vmatpush1.bf16.msra.mxu0 0
  %2617 = vmatprep.subr.bf16.mxu0 0
  %2618 = vmatpush1.bf16.msra.mxu0 0
  %2619 = vmatprep.subr.bf16.mxu0 0
  %2620 = vmatpush1.bf16.msra.mxu0 0
  %2621 = vmatprep.subr.bf16.mxu0 0
  %2622 = vmatpush1.bf16.msra.mxu0 0
  %2623 = vmatprep.subr.bf16.mxu0 0
  %2624 = vmatpush1.bf16.msra.mxu0 0
  %2625 = vmatprep.mubr.bf16.mxu0 0
  %2626 = vmatmul.mubr.bf16.gmra.mrb[0].mxu0 %v2551
  %v2627 = vpop.f32.mrb[0].mxu0
  %v2628 = vadd.f32 %v2588, %v2627
  %v2629 = vpop.f32.mrb[0].mxu0
  %v2630 = vpop.f32.mrb[0].mxu0
  %v2631 = vpop.f32.mrb[0].mxu0
  %2632 = vdwg.mxu0
  %v2633 = vmax.f32 %v2628, 0.0
  %2634 = vst.msk [vmem:[#allocation3 + $0x30] sm:$0xff] %vm229, %v2633
  %v2635 = vld [vmem:[#allocation3] sm:$0xff]
  %v2636 = vld [vmem:[#allocation3 + $0x8] sm:$0xff]
  %v2637 = vld [vmem:[#allocation3 + $0x10] sm:$0xff]
  %v2638 = vld [vmem:[#allocation3 + $0x18] sm:$0xff]
  %v2639 = vld [vmem:[#allocation3 + $0x20] sm:$0xff]
  %v2640 = vpack.c.bf16 %v2635, %v2635
  %v2641 = vpack.c.bf16 %v2636, %v2636
  %v2642 = vpack.c.bf16 %v2637, %v2637
  %v2643 = vpack.c.bf16 %v2638, %v2638
  %v2644 = vpack.c.bf16 %v2639, %v2639
  %v2717 = vunpack.c.l.b16 %v74
  %v2718 = vunpack.c.h.b16 %v74
  %v2719 = vunpack.c.l.b16 %v75
  %v2720 = vunpack.c.h.b16 %v75
  %v2721 = vunpack.c.l.b16 %v76
  %v2722 = vunpack.c.h.b16 %v76
  %v2723 = vunpack.c.l.b16 %v77
  %v2724 = vunpack.c.h.b16 %v77
  %v2725 = vunpack.c.l.b16 %v78
  %v2726 = vunpack.c.h.b16 %v78
  %v2727 = vunpack.c.l.b16 %v79
  %v2728 = vunpack.c.h.b16 %v79
  %v2729 = vunpack.c.l.b16 %v80
  %v2730 = vunpack.c.h.b16 %v80
  %v2731 = vunpack.c.l.b16 %v81
  %v2732 = vunpack.c.h.b16 %v81
  %v2733 = vunpack.c.l.b16 %v82
  %v2734 = vunpack.c.h.b16 %v82
  %v2735 = vunpack.c.l.b16 %v83
  %v2736 = vunpack.c.h.b16 %v83
  %v2737 = vunpack.c.l.b16 %v84
  %v2738 = vunpack.c.h.b16 %v84
  %v2739 = vunpack.c.l.b16 %v85
  %v2740 = vunpack.c.h.b16 %v85
  %v2741 = vunpack.c.l.b16 %v86
  %v2742 = vunpack.c.h.b16 %v86
  %v2743 = vunpack.c.l.b16 %v87
  %v2744 = vunpack.c.h.b16 %v87
  %v2745 = vunpack.c.l.b16 %v88
  %v2746 = vunpack.c.h.b16 %v88
  %v2747 = vunpack.c.l.b16 %v89
  %v2748 = vunpack.c.h.b16 %v89
  %v2749 = vunpack.c.l.b16 %v90
  %v2750 = vunpack.c.h.b16 %v90
  %v2751 = vunpack.c.l.b16 %v91
  %v2752 = vunpack.c.h.b16 %v91
  %v2753 = vunpack.c.l.b16 %v92
  %v2754 = vunpack.c.h.b16 %v92
  %v2755 = vunpack.c.l.b16 %v93
  %v2756 = vunpack.c.h.b16 %v93
  %v2757 = vunpack.c.l.b16 %v94
  %v2758 = vunpack.c.h.b16 %v94
  %v2759 = vunpack.c.l.b16 %v95
  %v2760 = vunpack.c.h.b16 %v95
  %v2761 = vunpack.c.l.b16 %v96
  %v2762 = vunpack.c.h.b16 %v96
  %v2763 = vunpack.c.l.b16 %v97
  %v2764 = vunpack.c.h.b16 %v97
  %v2765 = vunpack.c.l.b16 %v98
  %v2766 = vunpack.c.h.b16 %v98
  %v2767 = vunpack.c.l.b16 %v99
  %v2768 = vunpack.c.h.b16 %v99
  %v2769 = vunpack.c.l.b16 %v100
  %v2770 = vunpack.c.h.b16 %v100
  %v2771 = vunpack.c.l.b16 %v101
  %v2772 = vunpack.c.h.b16 %v101
  %v2773 = vunpack.c.l.b16 %v102
  %v2774 = vunpack.c.h.b16 %v102
  %v2775 = vunpack.c.l.b16 %v103
  %v2776 = vunpack.c.h.b16 %v103
  %v2777 = vunpack.c.l.b16 %v104
  %v2778 = vunpack.c.h.b16 %v104
  %v2779 = vunpack.c.l.b16 %v105
  %v2780 = vunpack.c.h.b16 %v105
  %v2781 = vunpack.c.l.b16 %v106
  %v2782 = vunpack.c.h.b16 %v106
  %v2783 = vunpack.c.l.b16 %v107
  %v2784 = vunpack.c.h.b16 %v107
  %v2785 = vunpack.c.l.b16 %v108
  %v2786 = vunpack.c.h.b16 %v108
  %v2787 = vunpack.c.l.b16 %v109
  %v2788 = vunpack.c.h.b16 %v109
  %v2789 = vunpack.c.l.b16 %v110
  %v2790 = vunpack.c.h.b16 %v110
  %v2791 = vunpack.c.l.b16 %v111
  %v2792 = vunpack.c.h.b16 %v111
  %v2793 = vunpack.c.l.b16 %v112
  %v2794 = vunpack.c.h.b16 %v112
  %v2795 = vunpack.c.l.b16 %v113
  %v2796 = vunpack.c.h.b16 %v113
  %v2797 = vunpack.c.l.b16 %v114
  %v2798 = vunpack.c.h.b16 %v114
  %v2799 = vunpack.c.l.b16 %v115
  %v2800 = vunpack.c.h.b16 %v115
  %v2801 = vunpack.c.l.b16 %v116
  %v2802 = vunpack.c.h.b16 %v116
  %v2803 = vunpack.c.l.b16 %v117
  %v2804 = vunpack.c.h.b16 %v117
  %v2805 = vunpack.c.l.b16 %v118
  %v2806 = vunpack.c.h.b16 %v118
  %v2807 = vunpack.c.l.b16 %v119
  %v2808 = vunpack.c.h.b16 %v119
  %v2809 = vunpack.c.l.b16 %v120
  %v2810 = vunpack.c.h.b16 %v120
  %v2811 = vunpack.c.l.b16 %v121
  %v2812 = vunpack.c.h.b16 %v121
  %v2813 = vunpack.c.l.b16 %v122
  %v2814 = vunpack.c.h.b16 %v122
  %v2815 = vunpack.c.l.b16 %v123
  %v2816 = vunpack.c.h.b16 %v123
  %v2817 = vunpack.c.l.b16 %v124
  %v2818 = vunpack.c.h.b16 %v124
  %v2819 = vunpack.c.l.b16 %v125
  %v2820 = vunpack.c.h.b16 %v125
  %v2821 = vunpack.c.l.b16 %v126
  %v2822 = vunpack.c.h.b16 %v126
  %v2823 = vunpack.c.l.b16 %v127
  %v2824 = vunpack.c.h.b16 %v127
  %v2825 = vunpack.c.l.b16 %v128
  %v2826 = vunpack.c.h.b16 %v128
  %v2827 = vunpack.c.l.b16 %v129
  %v2828 = vunpack.c.h.b16 %v129
  %v2829 = vunpack.c.l.b16 %v130
  %v2830 = vunpack.c.h.b16 %v130
  %v2831 = vunpack.c.l.b16 %v131
  %v2832 = vunpack.c.h.b16 %v131
  %v2833 = vunpack.c.l.b16 %v132
  %v2834 = vunpack.c.h.b16 %v132
  %v2835 = vunpack.c.l.b16 %v133
  %v2836 = vunpack.c.h.b16 %v133
  %v2837 = vunpack.c.l.b16 %v134
  %v2838 = vunpack.c.h.b16 %v134
  %v2839 = vunpack.c.l.b16 %v135
  %v2840 = vunpack.c.h.b16 %v135
  %v2841 = vunpack.c.l.b16 %v136
  %v2842 = vunpack.c.h.b16 %v136
  %v2843 = vunpack.c.l.b16 %v137
  %v2844 = vunpack.c.h.b16 %v137
  %v2845 = vunpack.c.l.b16 %v138
  %v2846 = vunpack.c.h.b16 %v138
  %v2847 = vunpack.c.l.b16 %v139
  %v2848 = vunpack.c.h.b16 %v139
  %v2849 = vunpack.c.l.b16 %v140
  %v2850 = vunpack.c.h.b16 %v140
  %v2851 = vunpack.c.l.b16 %v141
  %v2852 = vunpack.c.h.b16 %v141
  %v2853 = vunpack.c.l.b16 %v142
  %v2854 = vunpack.c.h.b16 %v142
  %v2855 = vunpack.c.l.b16 %v143
  %v2856 = vunpack.c.h.b16 %v143
  %v2857 = vunpack.c.l.b16 %v144
  %v2858 = vunpack.c.h.b16 %v144
  %v2859 = vunpack.c.l.b16 %v145
  %v2860 = vunpack.c.h.b16 %v145
  %v2861 = vpack.c.b16 %v2719, %v2717
  %v2862 = vpack.c.b16 %v2720, %v2718
  %v2863 = vpack.c.b16 %v2723, %v2721
  %v2864 = vpack.c.b16 %v2724, %v2722
  %v2865 = vpack.c.b16 %v2727, %v2725
  %v2866 = vpack.c.b16 %v2728, %v2726
  %v2867 = vpack.c.b16 %v2731, %v2729
  %v2868 = vpack.c.b16 %v2732, %v2730
  %v2869 = vpack.c.b16 %v2735, %v2733
  %v2870 = vpack.c.b16 %v2736, %v2734
  %v2871 = vpack.c.b16 %v2739, %v2737
  %v2872 = vpack.c.b16 %v2740, %v2738
  %v2873 = vpack.c.b16 %v2743, %v2741
  %v2874 = vpack.c.b16 %v2744, %v2742
  %v2875 = vpack.c.b16 %v2747, %v2745
  %v2876 = vpack.c.b16 %v2748, %v2746
  %v2877 = vpack.c.b16 %v2751, %v2749
  %v2878 = vpack.c.b16 %v2752, %v2750
  %v2879 = vpack.c.b16 %v2755, %v2753
  %v2880 = vpack.c.b16 %v2756, %v2754
  %v2881 = vpack.c.b16 %v2759, %v2757
  %v2882 = vpack.c.b16 %v2760, %v2758
  %v2883 = vpack.c.b16 %v2763, %v2761
  %v2884 = vpack.c.b16 %v2764, %v2762
  %v2885 = vpack.c.b16 %v2767, %v2765
  %v2886 = vpack.c.b16 %v2768, %v2766
  %v2887 = vpack.c.b16 %v2771, %v2769
  %v2888 = vpack.c.b16 %v2772, %v2770
  %v2889 = vpack.c.b16 %v2775, %v2773
  %v2890 = vpack.c.b16 %v2776, %v2774
  %v2891 = vpack.c.b16 %v2779, %v2777
  %v2892 = vpack.c.b16 %v2780, %v2778
  %v2893 = vpack.c.b16 %v2783, %v2781
  %v2894 = vpack.c.b16 %v2784, %v2782
  %v2895 = vpack.c.b16 %v2787, %v2785
  %v2896 = vpack.c.b16 %v2788, %v2786
  %v2897 = vpack.c.b16 %v2791, %v2789
  %v2898 = vpack.c.b16 %v2792, %v2790
  %v2899 = vpack.c.b16 %v2795, %v2793
  %v2900 = vpack.c.b16 %v2796, %v2794
  %v2901 = vpack.c.b16 %v2799, %v2797
  %v2902 = vpack.c.b16 %v2800, %v2798
  %v2903 = vpack.c.b16 %v2803, %v2801
  %v2904 = vpack.c.b16 %v2804, %v2802
  %v2905 = vpack.c.b16 %v2807, %v2805
  %v2906 = vpack.c.b16 %v2808, %v2806
  %v2907 = vpack.c.b16 %v2811, %v2809
  %v2908 = vpack.c.b16 %v2812, %v2810
  %v2909 = vpack.c.b16 %v2815, %v2813
  %v2910 = vpack.c.b16 %v2816, %v2814
  %v2911 = vpack.c.b16 %v2819, %v2817
  %v2912 = vpack.c.b16 %v2820, %v2818
  %v2913 = vpack.c.b16 %v2823, %v2821
  %v2914 = vpack.c.b16 %v2824, %v2822
  %v2915 = vpack.c.b16 %v2827, %v2825
  %v2916 = vpack.c.b16 %v2828, %v2826
  %v2917 = vpack.c.b16 %v2831, %v2829
  %v2918 = vpack.c.b16 %v2832, %v2830
  %v2919 = vpack.c.b16 %v2835, %v2833
  %v2920 = vpack.c.b16 %v2836, %v2834
  %v2921 = vpack.c.b16 %v2839, %v2837
  %v2922 = vpack.c.b16 %v2840, %v2838
  %v2923 = vpack.c.b16 %v2843, %v2841
  %v2924 = vpack.c.b16 %v2844, %v2842
  %v2925 = vpack.c.b16 %v2847, %v2845
  %v2926 = vpack.c.b16 %v2848, %v2846
  %v2927 = vpack.c.b16 %v2851, %v2849
  %v2928 = vpack.c.b16 %v2852, %v2850
  %v2929 = vpack.c.b16 %v2855, %v2853
  %v2930 = vpack.c.b16 %v2856, %v2854
  %v2931 = vpack.c.b16 %v2859, %v2857
  %v2932 = vpack.c.b16 %v2860, %v2858
  %v3006 = vsel %vm1867, %v2644, 0
  %3008 = vmatprep.subr.bf16.mxu0 %v2862
  %3009 = vmatpush1.bf16.msra.mxu0 %v2861
  %3010 = vmatprep.subr.bf16.mxu0 %v2864
  %3011 = vmatpush1.bf16.msra.mxu0 %v2863
  %3012 = vmatprep.subr.bf16.mxu0 %v2866
  %3013 = vmatpush1.bf16.msra.mxu0 %v2865
  %3014 = vmatprep.subr.bf16.mxu0 %v2868
  %3015 = vmatpush1.bf16.msra.mxu0 %v2867
  %3016 = vmatprep.subr.bf16.mxu0 %v2870
  %3017 = vmatpush1.bf16.msra.mxu0 %v2869
  %3018 = vmatprep.subr.bf16.mxu0 %v2872
  %3019 = vmatpush1.bf16.msra.mxu0 %v2871
  %3020 = vmatprep.subr.bf16.mxu0 %v2874
  %3021 = vmatpush1.bf16.msra.mxu0 %v2873
  %3022 = vmatprep.subr.bf16.mxu0 %v2876
  %3023 = vmatpush1.bf16.msra.mxu0 %v2875
  %3024 = vmatprep.subr.bf16.mxu0 %v2878
  %3025 = vmatpush1.bf16.msra.mxu0 %v2877
  %3026 = vmatprep.subr.bf16.mxu0 %v2880
  %3027 = vmatpush1.bf16.msra.mxu0 %v2879
  %3028 = vmatprep.subr.bf16.mxu0 %v2882
  %3029 = vmatpush1.bf16.msra.mxu0 %v2881
  %3030 = vmatprep.subr.bf16.mxu0 %v2884
  %3031 = vmatpush1.bf16.msra.mxu0 %v2883
  %3032 = vmatprep.subr.bf16.mxu0 %v2886
  %3033 = vmatpush1.bf16.msra.mxu0 %v2885
  %3034 = vmatprep.subr.bf16.mxu0 %v2888
  %3035 = vmatpush1.bf16.msra.mxu0 %v2887
  %3036 = vmatprep.subr.bf16.mxu0 %v2890
  %3037 = vmatpush1.bf16.msra.mxu0 %v2889
  %3038 = vmatprep.subr.bf16.mxu0 %v2892
  %3039 = vmatpush1.bf16.msra.mxu0 %v2891
  %3040 = vmatprep.mubr.bf16.mxu0 %v2641
  %3041 = vmatmul.mubr.bf16.gmra.mrb[0].mxu0 %v2640
  %v3042 = vpop.f32.mrb[0].mxu0
  %v3043 = vadd.f32 %v213, %v3042
  %v3044 = vpop.f32.mrb[0].mxu0
  %v3045 = vadd.f32 %v217, %v3044
  %v3046 = vpop.f32.mrb[0].mxu0
  %v3047 = vpop.f32.mrb[0].mxu0
  %3048 = vdwg.mxu0
  %3049 = vmatprep.subr.bf16.mxu0 %v2894
  %3050 = vmatpush1.bf16.msra.mxu0 %v2893
  %3051 = vmatprep.subr.bf16.mxu0 %v2896
  %3052 = vmatpush1.bf16.msra.mxu0 %v2895
  %3053 = vmatprep.subr.bf16.mxu0 %v2898
  %3054 = vmatpush1.bf16.msra.mxu0 %v2897
  %3055 = vmatprep.subr.bf16.mxu0 %v2900
  %3056 = vmatpush1.bf16.msra.mxu0 %v2899
  %3057 = vmatprep.subr.bf16.mxu0 %v2902
  %3058 = vmatpush1.bf16.msra.mxu0 %v2901
  %3059 = vmatprep.subr.bf16.mxu0 %v2904
  %3060 = vmatpush1.bf16.msra.mxu0 %v2903
  %3061 = vmatprep.subr.bf16.mxu0 %v2906
  %3062 = vmatpush1.bf16.msra.mxu0 %v2905
  %3063 = vmatprep.subr.bf16.mxu0 %v2908
  %3064 = vmatpush1.bf16.msra.mxu0 %v2907
  %3065 = vmatprep.subr.bf16.mxu0 %v2910
  %3066 = vmatpush1.bf16.msra.mxu0 %v2909
  %3067 = vmatprep.subr.bf16.mxu0 %v2912
  %3068 = vmatpush1.bf16.msra.mxu0 %v2911
  %3069 = vmatprep.subr.bf16.mxu0 %v2914
  %3070 = vmatpush1.bf16.msra.mxu0 %v2913
  %3071 = vmatprep.subr.bf16.mxu0 %v2916
  %3072 = vmatpush1.bf16.msra.mxu0 %v2915
  %3073 = vmatprep.subr.bf16.mxu0 %v2918
  %3074 = vmatpush1.bf16.msra.mxu0 %v2917
  %3075 = vmatprep.subr.bf16.mxu0 %v2920
  %3076 = vmatpush1.bf16.msra.mxu0 %v2919
  %3077 = vmatprep.subr.bf16.mxu0 %v2922
  %3078 = vmatpush1.bf16.msra.mxu0 %v2921
  %3079 = vmatprep.subr.bf16.mxu0 %v2924
  %3080 = vmatpush1.bf16.msra.mxu0 %v2923
  %3081 = vmatprep.mubr.bf16.mxu0 %v2643
  %3082 = vmatmul.mubr.bf16.gmra.mrb[0].mxu0 %v2642
  %v3083 = vpop.f32.mrb[0].mxu0
  %v3084 = vadd.f32 %v3043, %v3083
  %v3085 = vpop.f32.mrb[0].mxu0
  %v3086 = vadd.f32 %v3045, %v3085
  %v3087 = vpop.f32.mrb[0].mxu0
  %v3088 = vpop.f32.mrb[0].mxu0
  %3089 = vdwg.mxu0
  %3090 = vmatprep.subr.bf16.mxu0 %v2926
  %3091 = vmatpush1.bf16.msra.mxu0 %v2925
  %3092 = vmatprep.subr.bf16.mxu0 %v2928
  %3093 = vmatpush1.bf16.msra.mxu0 %v2927
  %3094 = vmatprep.subr.bf16.mxu0 %v2930
  %3095 = vmatpush1.bf16.msra.mxu0 %v2929
  %3096 = vmatprep.subr.bf16.mxu0 %v2932
  %3097 = vmatpush1.bf16.msra.mxu0 %v2931
  %3098 = vmatprep.subr.bf16.mxu0 0
  %3099 = vmatpush1.bf16.msra.mxu0 0
  %3100 = vmatprep.subr.bf16.mxu0 0
  %3101 = vmatpush1.bf16.msra.mxu0 0
  %3102 = vmatprep.subr.bf16.mxu0 0
  %3103 = vmatpush1.bf16.msra.mxu0 0
  %3104 = vmatprep.subr.bf16.mxu0 0
  %3105 = vmatpush1.bf16.msra.mxu0 0
  %3106 = vmatprep.subr.bf16.mxu0 0
  %3107 = vmatpush1.bf16.msra.mxu0 0
  %3108 = vmatprep.subr.bf16.mxu0 0
  %3109 = vmatpush1.bf16.msra.mxu0 0
  %3110 = vmatprep.subr.bf16.mxu0 0
  %3111 = vmatpush1.bf16.msra.mxu0 0
  %3112 = vmatprep.subr.bf16.mxu0 0
  %3113 = vmatpush1.bf16.msra.mxu0 0
  %3114 = vmatprep.subr.bf16.mxu0 0
  %3115 = vmatpush1.bf16.msra.mxu0 0
  %3116 = vmatprep.subr.bf16.mxu0 0
  %3117 = vmatpush1.bf16.msra.mxu0 0
  %3118 = vmatprep.subr.bf16.mxu0 0
  %3119 = vmatpush1.bf16.msra.mxu0 0
  %3120 = vmatprep.subr.bf16.mxu0 0
  %3121 = vmatpush1.bf16.msra.mxu0 0
  %3122 = vmatprep.mubr.bf16.mxu0 0
  %3123 = vmatmul.mubr.bf16.gmra.mrb[0].mxu0 %v3006
  %v3124 = vpop.f32.mrb[0].mxu0
  %v3125 = vadd.f32 %v3084, %v3124
  %v3126 = vpop.f32.mrb[0].mxu0
  %v3127 = vadd.f32 %v3086, %v3126
  %v3128 = vpop.f32.mrb[0].mxu0
  %v3129 = vpop.f32.mrb[0].mxu0
  %3130 = vdwg.mxu0
  %v3131 = vmax.f32 %v3125, 0.0
  %v3132 = vmax.f32 %v3127, 0.0
  %3133 = vst [vmem:[%s9] sm:$0xff] %v3131
  %3134 = vst.msk [vmem:[%s9 + $0x8] sm:$0xff] %vm1867, %v3132
  %v3135 = vld [vmem:[#allocation3 + $0x10] sm:$0xff]
  %v3136 = vld [vmem:[#allocation3 + $0x18] sm:$0xff]
  %v3137 = vld [vmem:[#allocation3 + $0x20] sm:$0xff]
  %v3138 = vld [vmem:[#allocation3 + $0x28] sm:$0xff]
  %v3139 = vld [vmem:[#allocation3 + $0x30] sm:$0xff]
  %v3140 = vpack.c.bf16 %v3135, %v3135
  %v3141 = vpack.c.bf16 %v3136, %v3136
  %v3142 = vpack.c.bf16 %v3137, %v3137
  %v3143 = vpack.c.bf16 %v3138, %v3138
  %v3144 = vpack.c.bf16 %v3139, %v3139
  %3150 = vrot.lane.b32.xlu0 %v3140, 96
  %v3151 = vpop.permute.xlu0 %3150
  %3152 = vrot.lane.b32.xlu0 %v3141, 96
  %v3153 = vpop.permute.xlu0 %3152
  %3154 = vrot.lane.b32.xlu0 %v3142, 96
  %v3155 = vpop.permute.xlu0 %3154
  %3156 = vrot.lane.b32.xlu0 %v3143, 96
  %v3157 = vpop.permute.xlu0 %3156
  %3158 = vrot.lane.b32.xlu0 %v3144, 96
  %v3159 = vpop.permute.xlu0 %3158
  %v3160 = vsel %vm1995, %v3151, %v3153
  %v3161 = vsel %vm1995, %v3153, %v3155
  %v3162 = vsel %vm1995, %v3155, %v3157
  %v3163 = vsel %vm1995, %v3157, %v3159
  %v3169 = vsel %vm1867, %v3159, 0
  %3171 = vmatprep.subr.bf16.mxu0 %v2862
  %3172 = vmatpush1.bf16.msra.mxu0 %v2861
  %3173 = vmatprep.subr.bf16.mxu0 %v2864
  %3174 = vmatpush1.bf16.msra.mxu0 %v2863
  %3175 = vmatprep.subr.bf16.mxu0 %v2866
  %3176 = vmatpush1.bf16.msra.mxu0 %v2865
  %3177 = vmatprep.subr.bf16.mxu0 %v2868
  %3178 = vmatpush1.bf16.msra.mxu0 %v2867
  %3179 = vmatprep.subr.bf16.mxu0 %v2870
  %3180 = vmatpush1.bf16.msra.mxu0 %v2869
  %3181 = vmatprep.subr.bf16.mxu0 %v2872
  %3182 = vmatpush1.bf16.msra.mxu0 %v2871
  %3183 = vmatprep.subr.bf16.mxu0 %v2874
  %3184 = vmatpush1.bf16.msra.mxu0 %v2873
  %3185 = vmatprep.subr.bf16.mxu0 %v2876
  %3186 = vmatpush1.bf16.msra.mxu0 %v2875
  %3187 = vmatprep.subr.bf16.mxu0 %v2878
  %3188 = vmatpush1.bf16.msra.mxu0 %v2877
  %3189 = vmatprep.subr.bf16.mxu0 %v2880
  %3190 = vmatpush1.bf16.msra.mxu0 %v2879
  %3191 = vmatprep.subr.bf16.mxu0 %v2882
  %3192 = vmatpush1.bf16.msra.mxu0 %v2881
  %3193 = vmatprep.subr.bf16.mxu0 %v2884
  %3194 = vmatpush1.bf16.msra.mxu0 %v2883
  %3195 = vmatprep.subr.bf16.mxu0 %v2886
  %3196 = vmatpush1.bf16.msra.mxu0 %v2885
  %3197 = vmatprep.subr.bf16.mxu0 %v2888
  %3198 = vmatpush1.bf16.msra.mxu0 %v2887
  %3199 = vmatprep.subr.bf16.mxu0 %v2890
  %3200 = vmatpush1.bf16.msra.mxu0 %v2889
  %3201 = vmatprep.subr.bf16.mxu0 %v2892
  %3202 = vmatpush1.bf16.msra.mxu0 %v2891
  %3203 = vmatprep.mubr.bf16.mxu0 %v3161
  %3204 = vmatmul.mubr.bf16.gmra.mrb[0].mxu0 %v3160
  %v3205 = vpop.f32.mrb[0].mxu0
  %v3206 = vadd.f32 %v213, %v3205
  %v3207 = vpop.f32.mrb[0].mxu0
  %v3208 = vadd.f32 %v217, %v3207
  %v3209 = vpop.f32.mrb[0].mxu0
  %v3210 = vpop.f32.mrb[0].mxu0
  %3211 = vdwg.mxu0
  %3212 = vmatprep.subr.bf16.mxu0 %v2894
  %3213 = vmatpush1.bf16.msra.mxu0 %v2893
  %3214 = vmatprep.subr.bf16.mxu0 %v2896
  %3215 = vmatpush1.bf16.msra.mxu0 %v2895
  %3216 = vmatprep.subr.bf16.mxu0 %v2898
  %3217 = vmatpush1.bf16.msra.mxu0 %v2897
  %3218 = vmatprep.subr.bf16.mxu0 %v2900
  %3219 = vmatpush1.bf16.msra.mxu0 %v2899
  %3220 = vmatprep.subr.bf16.mxu0 %v2902
  %3221 = vmatpush1.bf16.msra.mxu0 %v2901
  %3222 = vmatprep.subr.bf16.mxu0 %v2904
  %3223 = vmatpush1.bf16.msra.mxu0 %v2903
  %3224 = vmatprep.subr.bf16.mxu0 %v2906
  %3225 = vmatpush1.bf16.msra.mxu0 %v2905
  %3226 = vmatprep.subr.bf16.mxu0 %v2908
  %3227 = vmatpush1.bf16.msra.mxu0 %v2907
  %3228 = vmatprep.subr.bf16.mxu0 %v2910
  %3229 = vmatpush1.bf16.msra.mxu0 %v2909
  %3230 = vmatprep.subr.bf16.mxu0 %v2912
  %3231 = vmatpush1.bf16.msra.mxu0 %v2911
  %3232 = vmatprep.subr.bf16.mxu0 %v2914
  %3233 = vmatpush1.bf16.msra.mxu0 %v2913
  %3234 = vmatprep.subr.bf16.mxu0 %v2916
  %3235 = vmatpush1.bf16.msra.mxu0 %v2915
  %3236 = vmatprep.subr.bf16.mxu0 %v2918
  %3237 = vmatpush1.bf16.msra.mxu0 %v2917
  %3238 = vmatprep.subr.bf16.mxu0 %v2920
  %3239 = vmatpush1.bf16.msra.mxu0 %v2919
  %3240 = vmatprep.subr.bf16.mxu0 %v2922
  %3241 = vmatpush1.bf16.msra.mxu0 %v2921
  %3242 = vmatprep.subr.bf16.mxu0 %v2924
  %3243 = vmatpush1.bf16.msra.mxu0 %v2923
  %3244 = vmatprep.mubr.bf16.mxu0 %v3163
  %3245 = vmatmul.mubr.bf16.gmra.mrb[0].mxu0 %v3162
  %v3246 = vpop.f32.mrb[0].mxu0
  %v3247 = vadd.f32 %v3206, %v3246
  %v3248 = vpop.f32.mrb[0].mxu0
  %v3249 = vadd.f32 %v3208, %v3248
  %v3250 = vpop.f32.mrb[0].mxu0
  %v3251 = vpop.f32.mrb[0].mxu0
  %3252 = vdwg.mxu0
  %3253 = vmatprep.subr.bf16.mxu0 %v2926
  %3254 = vmatpush1.bf16.msra.mxu0 %v2925
  %3255 = vmatprep.subr.bf16.mxu0 %v2928
  %3256 = vmatpush1.bf16.msra.mxu0 %v2927
  %3257 = vmatprep.subr.bf16.mxu0 %v2930
  %3258 = vmatpush1.bf16.msra.mxu0 %v2929
  %3259 = vmatprep.subr.bf16.mxu0 %v2932
  %3260 = vmatpush1.bf16.msra.mxu0 %v2931
  %3261 = vmatprep.subr.bf16.mxu0 0
  %3262 = vmatpush1.bf16.msra.mxu0 0
  %3263 = vmatprep.subr.bf16.mxu0 0
  %3264 = vmatpush1.bf16.msra.mxu0 0
  %3265 = vmatprep.subr.bf16.mxu0 0
  %3266 = vmatpush1.bf16.msra.mxu0 0
  %3267 = vmatprep.subr.bf16.mxu0 0
  %3268 = vmatpush1.bf16.msra.mxu0 0
  %3269 = vmatprep.subr.bf16.mxu0 0
  %3270 = vmatpush1.bf16.msra.mxu0 0
  %3271 = vmatprep.subr.bf16.mxu0 0
  %3272 = vmatpush1.bf16.msra.mxu0 0
  %3273 = vmatprep.subr.bf16.mxu0 0
  %3274 = vmatpush1.bf16.msra.mxu0 0
  %3275 = vmatprep.subr.bf16.mxu0 0
  %3276 = vmatpush1.bf16.msra.mxu0 0
  %3277 = vmatprep.subr.bf16.mxu0 0
  %3278 = vmatpush1.bf16.msra.mxu0 0
  %3279 = vmatprep.subr.bf16.mxu0 0
  %3280 = vmatpush1.bf16.msra.mxu0 0
  %3281 = vmatprep.subr.bf16.mxu0 0
  %3282 = vmatpush1.bf16.msra.mxu0 0
  %3283 = vmatprep.subr.bf16.mxu0 0
  %3284 = vmatpush1.bf16.msra.mxu0 0
  %3285 = vmatprep.mubr.bf16.mxu0 0
  %3286 = vmatmul.mubr.bf16.gmra.mrb[0].mxu0 %v3169
  %v3287 = vpop.f32.mrb[0].mxu0
  %v3288 = vadd.f32 %v3247, %v3287
  %v3289 = vpop.f32.mrb[0].mxu0
  %v3290 = vadd.f32 %v3249, %v3289
  %v3291 = vpop.f32.mrb[0].mxu0
  %v3292 = vpop.f32.mrb[0].mxu0
  %3293 = vdwg.mxu0
  %v3294 = vmax.f32 %v3288, 0.0
  %v3295 = vmax.f32 %v3290, 0.0
  %3298 = vrot.lane.b32.xlu0 %v3294, 64
  %v3299 = vpop.permute.xlu0 %3298
  %3300 = vrot.lane.b32.xlu0 %v3295, 64
  %v3301 = vpop.permute.xlu0 %3300
  %v3302 = vsel %vm1867, %v3299, %v3301
  %3305 = vst.msk [vmem:[%s9 + $0x8] sm:$0xff] %vm1977, %v3299
  %3306 = vst [vmem:[%s9 + $0x10] sm:$0xff] %v3302
  %v3307 = vld [vmem:[%s9] sm:$0xff]
  %v3308 = vld [vmem:[%s9 + $0x8] sm:$0xff]
  %v3309 = vld [vmem:[%s9 + $0x10] sm:$0xff]
  %v3310 = vpack.c.bf16 %v3307, %v3307
  %v3311 = vpack.c.bf16 %v3308, %v3308
  %v3312 = vpack.c.bf16 %v3309, %v3309
  %v3361 = vunpack.c.l.b16 %v146
  %v3362 = vunpack.c.l.b16 %v147
  %v3363 = vunpack.c.l.b16 %v148
  %v3364 = vunpack.c.l.b16 %v149
  %v3365 = vunpack.c.l.b16 %v150
  %v3366 = vunpack.c.l.b16 %v151
  %v3367 = vunpack.c.l.b16 %v152
  %v3368 = vunpack.c.l.b16 %v153
  %v3369 = vunpack.c.l.b16 %v154
  %v3370 = vunpack.c.l.b16 %v155
  %v3371 = vunpack.c.l.b16 %v156
  %v3372 = vunpack.c.l.b16 %v157
  %v3373 = vunpack.c.l.b16 %v158
  %v3374 = vunpack.c.l.b16 %v159
  %v3375 = vunpack.c.l.b16 %v160
  %v3376 = vunpack.c.l.b16 %v161
  %v3377 = vunpack.c.l.b16 %v162
  %v3378 = vunpack.c.l.b16 %v163
  %v3379 = vunpack.c.l.b16 %v164
  %v3380 = vunpack.c.l.b16 %v165
  %v3381 = vunpack.c.l.b16 %v166
  %v3382 = vunpack.c.l.b16 %v167
  %v3383 = vunpack.c.l.b16 %v168
  %v3384 = vunpack.c.l.b16 %v169
  %v3385 = vunpack.c.l.b16 %v170
  %v3386 = vunpack.c.l.b16 %v171
  %v3387 = vunpack.c.l.b16 %v172
  %v3388 = vunpack.c.l.b16 %v173
  %v3389 = vunpack.c.l.b16 %v174
  %v3390 = vunpack.c.l.b16 %v175
  %v3391 = vunpack.c.l.b16 %v176
  %v3392 = vunpack.c.l.b16 %v177
  %v3393 = vunpack.c.l.b16 %v178
  %v3394 = vunpack.c.l.b16 %v179
  %v3395 = vunpack.c.l.b16 %v180
  %v3396 = vunpack.c.l.b16 %v181
  %v3397 = vunpack.c.l.b16 %v182
  %v3398 = vunpack.c.l.b16 %v183
  %v3399 = vunpack.c.l.b16 %v184
  %v3400 = vunpack.c.l.b16 %v185
  %v3401 = vunpack.c.l.b16 %v186
  %v3402 = vunpack.c.l.b16 %v187
  %v3403 = vunpack.c.l.b16 %v188
  %v3404 = vunpack.c.l.b16 %v189
  %v3405 = vunpack.c.l.b16 %v190
  %v3406 = vunpack.c.l.b16 %v191
  %v3407 = vunpack.c.l.b16 %v192
  %v3408 = vunpack.c.l.b16 %v193
  %v3409 = vpack.c.b16 %v3362, %v3361
  %v3410 = vpack.c.b16 %v3364, %v3363
  %v3411 = vpack.c.b16 %v3366, %v3365
  %v3412 = vpack.c.b16 %v3368, %v3367
  %v3413 = vpack.c.b16 %v3370, %v3369
  %v3414 = vpack.c.b16 %v3372, %v3371
  %v3415 = vpack.c.b16 %v3374, %v3373
  %v3416 = vpack.c.b16 %v3376, %v3375
  %v3417 = vpack.c.b16 %v3378, %v3377
  %v3418 = vpack.c.b16 %v3380, %v3379
  %v3419 = vpack.c.b16 %v3382, %v3381
  %v3420 = vpack.c.b16 %v3384, %v3383
  %v3421 = vpack.c.b16 %v3386, %v3385
  %v3422 = vpack.c.b16 %v3388, %v3387
  %v3423 = vpack.c.b16 %v3390, %v3389
  %v3424 = vpack.c.b16 %v3392, %v3391
  %v3425 = vpack.c.b16 %v3394, %v3393
  %v3426 = vpack.c.b16 %v3396, %v3395
  %v3427 = vpack.c.b16 %v3398, %v3397
  %v3428 = vpack.c.b16 %v3400, %v3399
  %v3429 = vpack.c.b16 %v3402, %v3401
  %v3430 = vpack.c.b16 %v3404, %v3403
  %v3431 = vpack.c.b16 %v3406, %v3405
  %v3432 = vpack.c.b16 %v3408, %v3407
  %3457 = vmatprep.subr.bf16.mxu0 0
  %3458 = vmatpush1.bf16.msra.mxu0 %v3409
  %3459 = vmatprep.subr.bf16.mxu0 0
  %3460 = vmatpush1.bf16.msra.mxu0 %v3410
  %3461 = vmatprep.subr.bf16.mxu0 0
  %3462 = vmatpush1.bf16.msra.mxu0 %v3411
  %3463 = vmatprep.subr.bf16.mxu0 0
  %3464 = vmatpush1.bf16.msra.mxu0 %v3412
  %3465 = vmatprep.subr.bf16.mxu0 0
  %3466 = vmatpush1.bf16.msra.mxu0 %v3413
  %3467 = vmatprep.subr.bf16.mxu0 0
  %3468 = vmatpush1.bf16.msra.mxu0 %v3414
  %3469 = vmatprep.subr.bf16.mxu0 0
  %3470 = vmatpush1.bf16.msra.mxu0 %v3415
  %3471 = vmatprep.subr.bf16.mxu0 0
  %3472 = vmatpush1.bf16.msra.mxu0 %v3416
  %3473 = vmatprep.subr.bf16.mxu0 0
  %3474 = vmatpush1.bf16.msra.mxu0 %v3417
  %3475 = vmatprep.subr.bf16.mxu0 0
  %3476 = vmatpush1.bf16.msra.mxu0 %v3418
  %3477 = vmatprep.subr.bf16.mxu0 0
  %3478 = vmatpush1.bf16.msra.mxu0 %v3419
  %3479 = vmatprep.subr.bf16.mxu0 0
  %3480 = vmatpush1.bf16.msra.mxu0 %v3420
  %3481 = vmatprep.subr.bf16.mxu0 0
  %3482 = vmatpush1.bf16.msra.mxu0 %v3421
  %3483 = vmatprep.subr.bf16.mxu0 0
  %3484 = vmatpush1.bf16.msra.mxu0 %v3422
  %3485 = vmatprep.subr.bf16.mxu0 0
  %3486 = vmatpush1.bf16.msra.mxu0 %v3423
  %3487 = vmatprep.subr.bf16.mxu0 0
  %3488 = vmatpush1.bf16.msra.mxu0 %v3424
  %3489 = vmatprep.mubr.bf16.mxu0 %v3311
  %3490 = vmatmul.mubr.bf16.gmra.mrb[0].mxu0 %v3310
  %v3491 = vpop.f32.mrb[0].mxu0
  %v3492 = vadd.f32 %v225, %v3491
  %v3493 = vpop.f32.mrb[0].mxu0
  %v3494 = vpop.f32.mrb[0].mxu0
  %v3495 = vpop.f32.mrb[0].mxu0
  %3496 = vdwg.mxu0
  %3497 = vmatprep.subr.bf16.mxu0 0
  %3498 = vmatpush1.bf16.msra.mxu0 %v3425
  %3499 = vmatprep.subr.bf16.mxu0 0
  %3500 = vmatpush1.bf16.msra.mxu0 %v3426
  %3501 = vmatprep.subr.bf16.mxu0 0
  %3502 = vmatpush1.bf16.msra.mxu0 %v3427
  %3503 = vmatprep.subr.bf16.mxu0 0
  %3504 = vmatpush1.bf16.msra.mxu0 %v3428
  %3505 = vmatprep.subr.bf16.mxu0 0
  %3506 = vmatpush1.bf16.msra.mxu0 %v3429
  %3507 = vmatprep.subr.bf16.mxu0 0
  %3508 = vmatpush1.bf16.msra.mxu0 %v3430
  %3509 = vmatprep.subr.bf16.mxu0 0
  %3510 = vmatpush1.bf16.msra.mxu0 %v3431
  %3511 = vmatprep.subr.bf16.mxu0 0
  %3512 = vmatpush1.bf16.msra.mxu0 %v3432
  %3513 = vmatprep.subr.bf16.mxu0 0
  %3514 = vmatpush1.bf16.msra.mxu0 0
  %3515 = vmatprep.subr.bf16.mxu0 0
  %3516 = vmatpush1.bf16.msra.mxu0 0
  %3517 = vmatprep.subr.bf16.mxu0 0
  %3518 = vmatpush1.bf16.msra.mxu0 0
  %3519 = vmatprep.subr.bf16.mxu0 0
  %3520 = vmatpush1.bf16.msra.mxu0 0
  %3521 = vmatprep.subr.bf16.mxu0 0
  %3522 = vmatpush1.bf16.msra.mxu0 0
  %3523 = vmatprep.subr.bf16.mxu0 0
  %3524 = vmatpush1.bf16.msra.mxu0 0
  %3525 = vmatprep.subr.bf16.mxu0 0
  %3526 = vmatpush1.bf16.msra.mxu0 0
  %3527 = vmatprep.subr.bf16.mxu0 0
  %3528 = vmatpush1.bf16.msra.mxu0 0
  %3529 = vmatprep.mubr.bf16.mxu0 0
  %3530 = vmatmul.mubr.bf16.gmra.mrb[0].mxu0 %v3312
  %v3531 = vpop.f32.mrb[0].mxu0
  %v3532 = vadd.f32 %v3492, %v3531
  %v3533 = vpop.f32.mrb[0].mxu0
  %v3534 = vpop.f32.mrb[0].mxu0
  %v3535 = vpop.f32.mrb[0].mxu0
  %3536 = vdwg.mxu0
  %3537 = vst [vmem:[%s10] sm:$0xff] %v3532
  // Predicated region
  $region38: #{cnn_reduce_filters_forward.1} parent=0 // pred_check
    _
  $region39: #{cnn_reduce_filters_forward.1} parent=0 // pred_check_branch
    %3539 = sbr.rel (0) target = $region41
  $region40: #{cnn_reduce_filters_forward.1} parent=0 // pred_region
    _
  $region41: #{cnn_reduce_filters_forward.1} parent=0 // pred_fallthru
    _
  // Predicated region
  $region42: #{cnn_reduce_filters_forward.1} parent=0 // pred_check
    _
  $region43: #{cnn_reduce_filters_forward.1} parent=0 // pred_check_branch
    %3541 = sbr.rel (0) target = $region45
  $region44: #{cnn_reduce_filters_forward.1} parent=0 // pred_region
    _
  $region45: #{cnn_reduce_filters_forward.1} parent=0 // pred_fallthru
    _
  // Predicated region
  $region46: #{cnn_reduce_filters_forward.1} parent=0 // pred_check
    _
  $region47: #{cnn_reduce_filters_forward.1} parent=0 // pred_check_branch
    %3543 = sbr.rel (0) target = $region49
  $region48: #{cnn_reduce_filters_forward.1} parent=0 // pred_region
    _
  $region49: #{cnn_reduce_filters_forward.1} parent=0 // pred_fallthru
    _
  // Predicated region
  $region50: #{cnn_reduce_filters_forward.1} parent=0 // pred_check
    _
  $region51: #{cnn_reduce_filters_forward.1} parent=0 // pred_check_branch
    %3545 = sbr.rel (0) target = $region53
  $region52: #{cnn_reduce_filters_forward.1} parent=0 // pred_region
    _
  $region53: #{cnn_reduce_filters_forward.1} parent=0 // pred_fallthru
    _

</llo_original>
